<compile_context>
chip_gen: v6e
topology: v6e:2x2x1
jax: 0.10.0
libtpu: 0.0.40
codegen_flags: <defaults>
</compile_context>

<pallas_src>
import jax
import jax.numpy as jnp
from jax import lax
from jax.experimental import pallas as pl
from jax.experimental.pallas import tpu as pltpu


def _make_block_kernel(T, H, W, C):
    THW = T * H * W

    def shift3(v, axis, z):
        """Zero-padded +-1 taps along `axis`: returns (v[i-1], v[i], v[i+1]).

        `z` is a pre-built zero slab of the correct shape (hoisted by the
        caller so the broadcast is materialized once per conv, not per tap).
        """
        n = v.shape[axis]
        lo = lax.slice_in_dim(v, 0, n - 1, axis=axis)
        hi = lax.slice_in_dim(v, 1, n, axis=axis)
        prev = jnp.concatenate([z, lo], axis=axis)   # tap k=0 uses x[i-1]
        nxt = jnp.concatenate([hi, z], axis=axis)    # tap k=2 uses x[i+1]
        return prev, v, nxt

    def kernel(x_ref,
               w1_ref, b1_ref,
               wt1_ref, b1t_ref,
               w2_ref, b2_ref,
               wt2_ref, b2t_ref,
               out_ref):

        def conv_1x3x3(v, w_ref, b_ref):
            # im2col over the 9 spatial taps -> one (THW, 9C) x (9C, C) matmul.
            zh = jnp.zeros((T, 1, W, C), v.dtype)   # shared H-shift zero slab
            zw = jnp.zeros((T, H, 1, C), v.dtype)   # shared W-shift zero slab
            cols = []
            for vh in shift3(v, 1, zh):             # kh = 0, 1, 2
                cols.extend(shift3(vh, 2, zw))      # kw = 0, 1, 2
            a = jnp.concatenate(cols, axis=-1).reshape(THW, 9 * C)
            acc = jnp.dot(a, w_ref[...], preferred_element_type=jnp.float32)
            return acc + b_ref[...]                 # f32 (THW, C)

        def conv_3x1x1(v, w_ref, b_ref):
            # 3 temporal taps -> one (THW, 3C) x (3C, C) matmul.
            zt = jnp.zeros((1, H, W, C), v.dtype)   # shared T-shift zero slab
            a = jnp.concatenate(shift3(v, 0, zt), axis=-1).reshape(THW, 3 * C)
            acc = jnp.dot(a, w_ref[...], preferred_element_type=jnp.float32)
            return acc + b_ref[...]

        def relu_bf16(v):                           # f32 (THW, C) -> bf16 volume
            return jnp.maximum(v, 0.0).astype(jnp.bfloat16).reshape(T, H, W, C)

        x_bf = x_ref[0].astype(jnp.bfloat16)                      # (T, H, W, C)
        o = relu_bf16(conv_1x3x3(x_bf, w1_ref, b1_ref))           # conv1 + bn1 + relu
        o = relu_bf16(conv_3x1x1(o, wt1_ref, b1t_ref))            # conv1_t + bn1_t + relu
        o = relu_bf16(conv_1x3x3(o, w2_ref, b2_ref))              # conv2 + bn2 + relu
        o = conv_3x1x1(o, wt2_ref, b2t_ref)                       # conv2_t + bn2_t (f32)
        o = o + x_ref[0].astype(jnp.float32).reshape(THW, C)      # identity residual
        out_ref[0] = jnp.maximum(o, 0.0).reshape(T, H, W, C).astype(out_ref.dtype)

    return kernel


def _fold_params(p, C):
    """Fold inference-mode BatchNorm scale/shift into conv weights / biases and
    cast the matmul operands to bf16 (accumulation stays f32 in the kernel)."""
    def flat(v):
        return jnp.asarray(v, jnp.float32).reshape(-1)

    s1, b1 = flat(p['s1']), flat(p['b1'])
    s1t, b1t = flat(p['s1t']), flat(p['b1t'])
    s2, b2 = flat(p['s2']), flat(p['b2'])
    s2t, b2t = flat(p['s2t']), flat(p['b2t'])

    w1 = (p['w1'] * s1[None, None, None, :]).reshape(9 * C, C).astype(jnp.bfloat16)
    w2 = (p['w2'] * s2[None, None, None, :]).reshape(9 * C, C).astype(jnp.bfloat16)
    wt1 = (p['wt1'] * s1t[None, None, :]).reshape(3 * C, C).astype(jnp.bfloat16)
    wt2 = (p['wt2'] * s2t[None, None, :]).reshape(3 * C, C).astype(jnp.bfloat16)

    return dict(
        w1=w1, b1=b1.reshape(1, C),
        wt1=wt1, b1t=(flat(p['bt1']) * s1t + b1t).reshape(1, C),
        w2=w2, b2=b2.reshape(1, C),
        wt2=wt2, b2t=(flat(p['bt2']) * s2t + b2t).reshape(1, C),
    )


def basic_block_forward(x_ncdhw, p):
    N, C, T, H, W = x_ncdhw.shape
    x = jnp.transpose(x_ncdhw, (0, 2, 3, 4, 1))           # NCDHW -> (N, T, H, W, C)
    fp = _fold_params(p, C)

    act_spec = pl.BlockSpec((1, T, H, W, C), lambda i: (i, 0, 0, 0, 0))
    wsp_spec = pl.BlockSpec((9 * C, C), lambda i: (0, 0))
    wt_spec = pl.BlockSpec((3 * C, C), lambda i: (0, 0))
    b_spec = pl.BlockSpec((1, C), lambda i: (0, 0))

    out = pl.pallas_call(
        _make_block_kernel(T, H, W, C),
        out_shape=jax.ShapeDtypeStruct((N, T, H, W, C), x.dtype),
        grid=(N,),
        in_specs=[act_spec,
                  wsp_spec, b_spec,     # conv1 (bn1 folded), bias
                  wt_spec, b_spec,      # conv1_t (bn1_t folded), bias
                  wsp_spec, b_spec,     # conv2 (bn2 folded), bias
                  wt_spec, b_spec],     # conv2_t (bn2_t folded), bias
        out_specs=act_spec,
        compiler_params=pltpu.CompilerParams(dimension_semantics=("parallel",)),
    )(x, fp['w1'], fp['b1'], fp['wt1'], fp['b1t'],
      fp['w2'], fp['b2'], fp['wt2'], fp['b2t'])

    return jnp.transpose(out, (0, 4, 1, 2, 3))            # back to NCDHW


def basic_block(inputs, params):
    """Mirrors BasicBlock.forward: input = (x, traj_src) -> (out, traj_src[1:])."""
    x, traj_src = inputs
    out = basic_block_forward(x, params)
    return out, traj_src[1:]


# ---------------- pure-JAX reference (for correctness check) ----------------
def ref_forward(x_ncdhw, p):
    x = jnp.transpose(x_ncdhw, (0, 2, 3, 4, 1)).astype(jnp.float32)
    dn = ('NDHWC', 'DHWIO', 'NDHWC')

    def conv_sp(v, w):  # w: (3,3,Cin,Cout) -> (1,3,3,Cin,Cout)
        return lax.conv_general_dilated(v, w[None], (1, 1, 1),
                                        [(0, 0), (1, 1), (1, 1)],
                                        dimension_numbers=dn)

    def conv_t(v, w, b):  # w: (3,Cin,Cout) -> (3,1,1,Cin,Cout)
        return lax.conv_general_dilated(v, w[:, None, None], (1, 1, 1),
                                        [(1, 1), (0, 0), (0, 0)],
                                        dimension_numbers=dn) + b.reshape(1, 1, 1, 1, -1)

    def affine(v, s, b):
        return v * s.reshape(1, 1, 1, 1, -1) + b.reshape(1, 1, 1, 1, -1)

    relu = lambda v: jnp.maximum(v, 0.0)
    out = relu(affine(conv_sp(x, p['w1']), p['s1'], p['b1']))
    out = relu(affine(conv_t(out, p['wt1'], p['bt1']), p['s1t'], p['b1t']))
    out = relu(affine(conv_sp(out, p['w2']), p['s2'], p['b2']))
    out = affine(conv_t(out, p['wt2'], p['bt2']), p['s2t'], p['b2t'])
    out = relu(out + x)
    return jnp.transpose(out, (0, 4, 1, 2, 3))


if __name__ == "__main__":
    key = jax.random.PRNGKey(0)
    # small shapes: batch=2, inplanes=planes=128 (lane-dense), T=4, H=W=8 (NCDHW)
    N, C, T, H, W = 2, 128, 4, 8, 8
    ks = jax.random.split(key, 20)

    def bn_params(kg, kb, km, kv, c, eps=1e-5):
        gamma = 1.0 + 0.1 * jax.random.normal(kg, (c,))
        beta = 0.1 * jax.random.normal(kb, (c,))
        mean = 0.1 * jax.random.normal(km, (c,))
        var = 0.5 + 0.5 * jax.random.uniform(kv, (c,))
        scale = gamma / jnp.sqrt(var + eps)
        shift = beta - mean * scale
        return (scale.reshape(1, c).astype(jnp.float32),
                shift.reshape(1, c).astype(jnp.float32))

    x = jax.random.normal(ks[0], (N, C, T, H, W), jnp.float32)
    traj_src = (None, None)   # with_trajectory=False; only carried through

    sp_std = 1.0 / (9 * C) ** 0.5
    t_std = 1.0 / (3 * C) ** 0.5

    params = {}
    # conv1: 1x3x3, no bias -> stored as (kh, kw, Cin, Cout)
    params['w1'] = sp_std * jax.random.normal(ks[1], (3, 3, C, C), jnp.float32)
    params['s1'], params['b1'] = bn_params(ks[2], ks[3], ks[4], ks[5], C)
    # conv1_t: 3x1x1 with bias -> stored as (kt, Cin, Cout)
    params['wt1'] = t_std * jax.random.normal(ks[6], (3, C, C), jnp.float32)
    params['bt1'] = 0.1 * jax.random.normal(ks[7], (1, C), jnp.float32)
    params['s1t'], params['b1t'] = bn_params(ks[8], ks[9], ks[10], ks[11], C)
    # conv2: 1x3x3, no bias
    params['w2'] = sp_std * jax.random.normal(ks[12], (3, 3, C, C), jnp.float32)
    params['s2'], params['b2'] = bn_params(ks[13], ks[14], ks[15], ks[16], C)
    # conv2_t: 3x1x1 with bias
    params['wt2'] = t_std * jax.random.normal(ks[17], (3, C, C), jnp.float32)
    params['bt2'] = 0.1 * jax.random.normal(ks[18], (1, C), jnp.float32)
    params['s2t'], params['b2t'] = bn_params(*jax.random.split(ks[19], 4), C)

    out, traj_rest = basic_block((x, traj_src), params)
    out = jax.block_until_ready(out)

    ref = ref_forward(x, params)
    rel_err = float(jnp.max(jnp.abs(out - ref)) / (jnp.max(jnp.abs(ref)) + 1e-6))
    assert out.shape == (N, C, T, H, W)
    assert traj_rest == (None,)
    # bf16 matmul operands -> compare with a relative tolerance
    assert rel_err < 5e-2, f"relative error vs reference: {rel_err}"
    print("KERNEL_OK")
</pallas_src>

<mosaic_0001>
module attributes {stable_mosaic.version = 11 : i64} {
  func.func @kernel(%arg0: i32, %arg1: memref<1x4x8x8x128xf32, #tpu.memory_space<vmem>>, %arg2: memref<1152x128xbf16, #tpu.memory_space<vmem>>, %arg3: memref<1x128xf32, #tpu.memory_space<vmem>>, %arg4: memref<384x128xbf16, #tpu.memory_space<vmem>>, %arg5: memref<1x128xf32, #tpu.memory_space<vmem>>, %arg6: memref<1152x128xbf16, #tpu.memory_space<vmem>>, %arg7: memref<1x128xf32, #tpu.memory_space<vmem>>, %arg8: memref<384x128xbf16, #tpu.memory_space<vmem>>, %arg9: memref<1x128xf32, #tpu.memory_space<vmem>>, %arg10: memref<1x4x8x8x128xf32, #tpu.memory_space<vmem>>) attributes {dimension_semantics = [#tpu.dimension_semantics<parallel>], iteration_bounds = array<i64: 2>, scalar_prefetch = 0 : i64, scratch_operands = 0 : i64, tpu.core_type = #tpu.core_type<tc>, window_params = [{transform_indices = @transform_0, window_bounds = array<i64: 1, 4, 8, 8, 128>}, {pipeline_mode = #tpu.pipeline_mode<synchronous>, transform_indices = @transform_1, window_bounds = array<i64: 1152, 128>}, {pipeline_mode = #tpu.pipeline_mode<synchronous>, transform_indices = @transform_2, window_bounds = array<i64: 1, 128>}, {pipeline_mode = #tpu.pipeline_mode<synchronous>, transform_indices = @transform_3, window_bounds = array<i64: 384, 128>}, {pipeline_mode = #tpu.pipeline_mode<synchronous>, transform_indices = @transform_4, window_bounds = array<i64: 1, 128>}, {pipeline_mode = #tpu.pipeline_mode<synchronous>, transform_indices = @transform_5, window_bounds = array<i64: 1152, 128>}, {pipeline_mode = #tpu.pipeline_mode<synchronous>, transform_indices = @transform_6, window_bounds = array<i64: 1, 128>}, {pipeline_mode = #tpu.pipeline_mode<synchronous>, transform_indices = @transform_7, window_bounds = array<i64: 384, 128>}, {pipeline_mode = #tpu.pipeline_mode<synchronous>, transform_indices = @transform_8, window_bounds = array<i64: 1, 128>}, {transform_indices = @transform_9, window_bounds = array<i64: 1, 4, 8, 8, 128>}]} {
    %c0 = arith.constant 0 : index
    %c0_0 = arith.constant 0 : index
    %c0_1 = arith.constant 0 : index
    %c0_2 = arith.constant 0 : index
    %c0_3 = arith.constant 0 : index
    %0 = vector.load %arg1[%c0, %c0_0, %c0_1, %c0_2, %c0_3] : memref<1x4x8x8x128xf32, #tpu.memory_space<vmem>>, vector<1x4x8x8x128xf32>
    %1 = vector.shape_cast %0 : vector<1x4x8x8x128xf32> to vector<4x8x8x128xf32>
    %2 = arith.truncf %1 : vector<4x8x8x128xf32> to vector<4x8x8x128xbf16>
    %cst = arith.constant 0.000000e+00 : bf16
    %3 = vector.broadcast %cst : bf16 to vector<4x1x8x128xbf16>
    %cst_4 = arith.constant 0.000000e+00 : bf16
    %4 = vector.broadcast %cst_4 : bf16 to vector<4x8x1x128xbf16>
    %5 = vector.extract_strided_slice %2 {offsets = [0, 0, 0, 0], sizes = [4, 7, 8, 128], strides = [1, 1, 1, 1]} : vector<4x8x8x128xbf16> to vector<4x7x8x128xbf16>
    %6 = vector.extract_strided_slice %2 {offsets = [0, 1, 0, 0], sizes = [4, 7, 8, 128], strides = [1, 1, 1, 1]} : vector<4x8x8x128xbf16> to vector<4x7x8x128xbf16>
    %7 = tpu.concatenate %3, %5 in 1 : vector<4x1x8x128xbf16>, vector<4x7x8x128xbf16> -> vector<4x8x8x128xbf16>
    %8 = tpu.concatenate %6, %3 in 1 : vector<4x7x8x128xbf16>, vector<4x1x8x128xbf16> -> vector<4x8x8x128xbf16>
    %9 = vector.extract_strided_slice %7 {offsets = [0, 0, 0, 0], sizes = [4, 8, 7, 128], strides = [1, 1, 1, 1]} : vector<4x8x8x128xbf16> to vector<4x8x7x128xbf16>
    %10 = vector.extract_strided_slice %7 {offsets = [0, 0, 1, 0], sizes = [4, 8, 7, 128], strides = [1, 1, 1, 1]} : vector<4x8x8x128xbf16> to vector<4x8x7x128xbf16>
    %11 = tpu.concatenate %4, %9 in 2 : vector<4x8x1x128xbf16>, vector<4x8x7x128xbf16> -> vector<4x8x8x128xbf16>
    %12 = tpu.concatenate %10, %4 in 2 : vector<4x8x7x128xbf16>, vector<4x8x1x128xbf16> -> vector<4x8x8x128xbf16>
    %13 = vector.extract_strided_slice %2 {offsets = [0, 0, 0, 0], sizes = [4, 8, 7, 128], strides = [1, 1, 1, 1]} : vector<4x8x8x128xbf16> to vector<4x8x7x128xbf16>
    %14 = vector.extract_strided_slice %2 {offsets = [0, 0, 1, 0], sizes = [4, 8, 7, 128], strides = [1, 1, 1, 1]} : vector<4x8x8x128xbf16> to vector<4x8x7x128xbf16>
    %15 = tpu.concatenate %4, %13 in 2 : vector<4x8x1x128xbf16>, vector<4x8x7x128xbf16> -> vector<4x8x8x128xbf16>
    %16 = tpu.concatenate %14, %4 in 2 : vector<4x8x7x128xbf16>, vector<4x8x1x128xbf16> -> vector<4x8x8x128xbf16>
    %17 = vector.extract_strided_slice %8 {offsets = [0, 0, 0, 0], sizes = [4, 8, 7, 128], strides = [1, 1, 1, 1]} : vector<4x8x8x128xbf16> to vector<4x8x7x128xbf16>
    %18 = vector.extract_strided_slice %8 {offsets = [0, 0, 1, 0], sizes = [4, 8, 7, 128], strides = [1, 1, 1, 1]} : vector<4x8x8x128xbf16> to vector<4x8x7x128xbf16>
    %19 = tpu.concatenate %4, %17 in 2 : vector<4x8x1x128xbf16>, vector<4x8x7x128xbf16> -> vector<4x8x8x128xbf16>
    %20 = tpu.concatenate %18, %4 in 2 : vector<4x8x7x128xbf16>, vector<4x8x1x128xbf16> -> vector<4x8x8x128xbf16>
    %21 = tpu.concatenate %11, %7, %12, %15, %2, %16, %19, %8, %20 in 3 : vector<4x8x8x128xbf16>, vector<4x8x8x128xbf16>, vector<4x8x8x128xbf16>, vector<4x8x8x128xbf16>, vector<4x8x8x128xbf16>, vector<4x8x8x128xbf16>, vector<4x8x8x128xbf16>, vector<4x8x8x128xbf16>, vector<4x8x8x128xbf16> -> vector<4x8x8x1152xbf16>
    %22 = vector.shape_cast %21 : vector<4x8x8x1152xbf16> to vector<256x1152xbf16>
    %c0_5 = arith.constant 0 : index
    %c0_6 = arith.constant 0 : index
    %23 = vector.load %arg2[%c0_5, %c0_6] : memref<1152x128xbf16, #tpu.memory_space<vmem>>, vector<1152x128xbf16>
    %cst_7 = arith.constant dense<0.000000e+00> : vector<256x128xf32>
    %24 = tpu.matmul %22, %23, %cst_7 {dimension_numbers = #tpu.dot_dimension_numbers<[1], [0], [0], [1], [0, 0, 1, 1], [], []>} : vector<256x1152xbf16>, vector<1152x128xbf16>, vector<256x128xf32> -> vector<256x128xf32>
    %c0_8 = arith.constant 0 : index
    %c0_9 = arith.constant 0 : index
    %25 = vector.load %arg3[%c0_8, %c0_9] : memref<1x128xf32, #tpu.memory_space<vmem>>, vector<1x128xf32>
    %26 = vector.broadcast %25 : vector<1x128xf32> to vector<256x128xf32>
    %27 = arith.addf %24, %26 : vector<256x128xf32>
    %cst_10 = arith.constant 0.000000e+00 : f32
    %28 = vector.broadcast %cst_10 : f32 to vector<256x128xf32>
    %29 = arith.maximumf %27, %28 : vector<256x128xf32>
    %30 = arith.truncf %29 : vector<256x128xf32> to vector<256x128xbf16>
    %31 = vector.shape_cast %30 : vector<256x128xbf16> to vector<4x8x8x128xbf16>
    %cst_11 = arith.constant 0.000000e+00 : bf16
    %32 = vector.broadcast %cst_11 : bf16 to vector<1x8x8x128xbf16>
    %33 = vector.extract_strided_slice %31 {offsets = [0, 0, 0, 0], sizes = [3, 8, 8, 128], strides = [1, 1, 1, 1]} : vector<4x8x8x128xbf16> to vector<3x8x8x128xbf16>
    %34 = vector.extract_strided_slice %31 {offsets = [1, 0, 0, 0], sizes = [3, 8, 8, 128], strides = [1, 1, 1, 1]} : vector<4x8x8x128xbf16> to vector<3x8x8x128xbf16>
    %35 = tpu.concatenate %32, %33 in 0 : vector<1x8x8x128xbf16>, vector<3x8x8x128xbf16> -> vector<4x8x8x128xbf16>
    %36 = tpu.concatenate %34, %32 in 0 : vector<3x8x8x128xbf16>, vector<1x8x8x128xbf16> -> vector<4x8x8x128xbf16>
    %37 = tpu.concatenate %35, %31, %36 in 3 : vector<4x8x8x128xbf16>, vector<4x8x8x128xbf16>, vector<4x8x8x128xbf16> -> vector<4x8x8x384xbf16>
    %38 = vector.shape_cast %37 : vector<4x8x8x384xbf16> to vector<256x384xbf16>
    %c0_12 = arith.constant 0 : index
    %c0_13 = arith.constant 0 : index
    %39 = vector.load %arg4[%c0_12, %c0_13] : memref<384x128xbf16, #tpu.memory_space<vmem>>, vector<384x128xbf16>
    %cst_14 = arith.constant dense<0.000000e+00> : vector<256x128xf32>
    %40 = tpu.matmul %38, %39, %cst_14 {dimension_numbers = #tpu.dot_dimension_numbers<[1], [0], [0], [1], [0, 0, 1, 1], [], []>} : vector<256x384xbf16>, vector<384x128xbf16>, vector<256x128xf32> -> vector<256x128xf32>
    %c0_15 = arith.constant 0 : index
    %c0_16 = arith.constant 0 : index
    %41 = vector.load %arg5[%c0_15, %c0_16] : memref<1x128xf32, #tpu.memory_space<vmem>>, vector<1x128xf32>
    %42 = vector.broadcast %41 : vector<1x128xf32> to vector<256x128xf32>
    %43 = arith.addf %40, %42 : vector<256x128xf32>
    %cst_17 = arith.constant 0.000000e+00 : f32
    %44 = vector.broadcast %cst_17 : f32 to vector<256x128xf32>
    %45 = arith.maximumf %43, %44 : vector<256x128xf32>
    %46 = arith.truncf %45 : vector<256x128xf32> to vector<256x128xbf16>
    %47 = vector.shape_cast %46 : vector<256x128xbf16> to vector<4x8x8x128xbf16>
    %cst_18 = arith.constant 0.000000e+00 : bf16
    %48 = vector.broadcast %cst_18 : bf16 to vector<4x1x8x128xbf16>
    %cst_19 = arith.constant 0.000000e+00 : bf16
    %49 = vector.broadcast %cst_19 : bf16 to vector<4x8x1x128xbf16>
    %50 = vector.extract_strided_slice %47 {offsets = [0, 0, 0, 0], sizes = [4, 7, 8, 128], strides = [1, 1, 1, 1]} : vector<4x8x8x128xbf16> to vector<4x7x8x128xbf16>
    %51 = vector.extract_strided_slice %47 {offsets = [0, 1, 0, 0], sizes = [4, 7, 8, 128], strides = [1, 1, 1, 1]} : vector<4x8x8x128xbf16> to vector<4x7x8x128xbf16>
    %52 = tpu.concatenate %48, %50 in 1 : vector<4x1x8x128xbf16>, vector<4x7x8x128xbf16> -> vector<4x8x8x128xbf16>
    %53 = tpu.concatenate %51, %48 in 1 : vector<4x7x8x128xbf16>, vector<4x1x8x128xbf16> -> vector<4x8x8x128xbf16>
    %54 = vector.extract_strided_slice %52 {offsets = [0, 0, 0, 0], sizes = [4, 8, 7, 128], strides = [1, 1, 1, 1]} : vector<4x8x8x128xbf16> to vector<4x8x7x128xbf16>
    %55 = vector.extract_strided_slice %52 {offsets = [0, 0, 1, 0], sizes = [4, 8, 7, 128], strides = [1, 1, 1, 1]} : vector<4x8x8x128xbf16> to vector<4x8x7x128xbf16>
    %56 = tpu.concatenate %49, %54 in 2 : vector<4x8x1x128xbf16>, vector<4x8x7x128xbf16> -> vector<4x8x8x128xbf16>
    %57 = tpu.concatenate %55, %49 in 2 : vector<4x8x7x128xbf16>, vector<4x8x1x128xbf16> -> vector<4x8x8x128xbf16>
    %58 = vector.extract_strided_slice %47 {offsets = [0, 0, 0, 0], sizes = [4, 8, 7, 128], strides = [1, 1, 1, 1]} : vector<4x8x8x128xbf16> to vector<4x8x7x128xbf16>
    %59 = vector.extract_strided_slice %47 {offsets = [0, 0, 1, 0], sizes = [4, 8, 7, 128], strides = [1, 1, 1, 1]} : vector<4x8x8x128xbf16> to vector<4x8x7x128xbf16>
    %60 = tpu.concatenate %49, %58 in 2 : vector<4x8x1x128xbf16>, vector<4x8x7x128xbf16> -> vector<4x8x8x128xbf16>
    %61 = tpu.concatenate %59, %49 in 2 : vector<4x8x7x128xbf16>, vector<4x8x1x128xbf16> -> vector<4x8x8x128xbf16>
    %62 = vector.extract_strided_slice %53 {offsets = [0, 0, 0, 0], sizes = [4, 8, 7, 128], strides = [1, 1, 1, 1]} : vector<4x8x8x128xbf16> to vector<4x8x7x128xbf16>
    %63 = vector.extract_strided_slice %53 {offsets = [0, 0, 1, 0], sizes = [4, 8, 7, 128], strides = [1, 1, 1, 1]} : vector<4x8x8x128xbf16> to vector<4x8x7x128xbf16>
    %64 = tpu.concatenate %49, %62 in 2 : vector<4x8x1x128xbf16>, vector<4x8x7x128xbf16> -> vector<4x8x8x128xbf16>
    %65 = tpu.concatenate %63, %49 in 2 : vector<4x8x7x128xbf16>, vector<4x8x1x128xbf16> -> vector<4x8x8x128xbf16>
    %66 = tpu.concatenate %56, %52, %57, %60, %47, %61, %64, %53, %65 in 3 : vector<4x8x8x128xbf16>, vector<4x8x8x128xbf16>, vector<4x8x8x128xbf16>, vector<4x8x8x128xbf16>, vector<4x8x8x128xbf16>, vector<4x8x8x128xbf16>, vector<4x8x8x128xbf16>, vector<4x8x8x128xbf16>, vector<4x8x8x128xbf16> -> vector<4x8x8x1152xbf16>
    %67 = vector.shape_cast %66 : vector<4x8x8x1152xbf16> to vector<256x1152xbf16>
    %c0_20 = arith.constant 0 : index
    %c0_21 = arith.constant 0 : index
    %68 = vector.load %arg6[%c0_20, %c0_21] : memref<1152x128xbf16, #tpu.memory_space<vmem>>, vector<1152x128xbf16>
    %cst_22 = arith.constant dense<0.000000e+00> : vector<256x128xf32>
    %69 = tpu.matmul %67, %68, %cst_22 {dimension_numbers = #tpu.dot_dimension_numbers<[1], [0], [0], [1], [0, 0, 1, 1], [], []>} : vector<256x1152xbf16>, vector<1152x128xbf16>, vector<256x128xf32> -> vector<256x128xf32>
    %c0_23 = arith.constant 0 : index
    %c0_24 = arith.constant 0 : index
    %70 = vector.load %arg7[%c0_23, %c0_24] : memref<1x128xf32, #tpu.memory_space<vmem>>, vector<1x128xf32>
    %71 = vector.broadcast %70 : vector<1x128xf32> to vector<256x128xf32>
    %72 = arith.addf %69, %71 : vector<256x128xf32>
    %cst_25 = arith.constant 0.000000e+00 : f32
    %73 = vector.broadcast %cst_25 : f32 to vector<256x128xf32>
    %74 = arith.maximumf %72, %73 : vector<256x128xf32>
    %75 = arith.truncf %74 : vector<256x128xf32> to vector<256x128xbf16>
    %76 = vector.shape_cast %75 : vector<256x128xbf16> to vector<4x8x8x128xbf16>
    %cst_26 = arith.constant 0.000000e+00 : bf16
    %77 = vector.broadcast %cst_26 : bf16 to vector<1x8x8x128xbf16>
    %78 = vector.extract_strided_slice %76 {offsets = [0, 0, 0, 0], sizes = [3, 8, 8, 128], strides = [1, 1, 1, 1]} : vector<4x8x8x128xbf16> to vector<3x8x8x128xbf16>
    %79 = vector.extract_strided_slice %76 {offsets = [1, 0, 0, 0], sizes = [3, 8, 8, 128], strides = [1, 1, 1, 1]} : vector<4x8x8x128xbf16> to vector<3x8x8x128xbf16>
    %80 = tpu.concatenate %77, %78 in 0 : vector<1x8x8x128xbf16>, vector<3x8x8x128xbf16> -> vector<4x8x8x128xbf16>
    %81 = tpu.concatenate %79, %77 in 0 : vector<3x8x8x128xbf16>, vector<1x8x8x128xbf16> -> vector<4x8x8x128xbf16>
    %82 = tpu.concatenate %80, %76, %81 in 3 : vector<4x8x8x128xbf16>, vector<4x8x8x128xbf16>, vector<4x8x8x128xbf16> -> vector<4x8x8x384xbf16>
    %83 = vector.shape_cast %82 : vector<4x8x8x384xbf16> to vector<256x384xbf16>
    %c0_27 = arith.constant 0 : index
    %c0_28 = arith.constant 0 : index
    %84 = vector.load %arg8[%c0_27, %c0_28] : memref<384x128xbf16, #tpu.memory_space<vmem>>, vector<384x128xbf16>
    %cst_29 = arith.constant dense<0.000000e+00> : vector<256x128xf32>
    %85 = tpu.matmul %83, %84, %cst_29 {dimension_numbers = #tpu.dot_dimension_numbers<[1], [0], [0], [1], [0, 0, 1, 1], [], []>} : vector<256x384xbf16>, vector<384x128xbf16>, vector<256x128xf32> -> vector<256x128xf32>
    %c0_30 = arith.constant 0 : index
    %c0_31 = arith.constant 0 : index
    %86 = vector.load %arg9[%c0_30, %c0_31] : memref<1x128xf32, #tpu.memory_space<vmem>>, vector<1x128xf32>
    %87 = vector.broadcast %86 : vector<1x128xf32> to vector<256x128xf32>
    %88 = arith.addf %85, %87 : vector<256x128xf32>
    %c0_32 = arith.constant 0 : index
    %c0_33 = arith.constant 0 : index
    %c0_34 = arith.constant 0 : index
    %c0_35 = arith.constant 0 : index
    %c0_36 = arith.constant 0 : index
    %89 = vector.load %arg1[%c0_32, %c0_33, %c0_34, %c0_35, %c0_36] : memref<1x4x8x8x128xf32, #tpu.memory_space<vmem>>, vector<1x4x8x8x128xf32>
    %90 = vector.shape_cast %89 : vector<1x4x8x8x128xf32> to vector<4x8x8x128xf32>
    %91 = vector.shape_cast %90 : vector<4x8x8x128xf32> to vector<256x128xf32>
    %92 = arith.addf %88, %91 : vector<256x128xf32>
    %cst_37 = arith.constant 0.000000e+00 : f32
    %93 = vector.broadcast %cst_37 : f32 to vector<256x128xf32>
    %94 = arith.maximumf %92, %93 : vector<256x128xf32>
    %95 = vector.shape_cast %94 : vector<256x128xf32> to vector<4x8x8x128xf32>
    %c0_38 = arith.constant 0 : index
    %c0_39 = arith.constant 0 : index
    %c0_40 = arith.constant 0 : index
    %c0_41 = arith.constant 0 : index
    %c0_42 = arith.constant 0 : index
    %96 = vector.load %arg10[%c0_38, %c0_39, %c0_40, %c0_41, %c0_42] : memref<1x4x8x8x128xf32, #tpu.memory_space<vmem>>, vector<1x4x8x8x128xf32>
    %97 = vector.shape_cast %96 : vector<1x4x8x8x128xf32> to vector<4x8x8x128xf32>
    %98 = vector.shape_cast %95 : vector<4x8x8x128xf32> to vector<1x4x8x8x128xf32>
    tpu.vector_store %arg10[%c0_38, %c0_39, %c0_40, %c0_41, %c0_42], %98 {strides = array<i32>} : memref<1x4x8x8x128xf32, #tpu.memory_space<vmem>>, vector<1x4x8x8x128xf32>,
    return
  }
  func.func @transform_0(%arg0: i32) -> (i32, i32, i32, i32, i32) {
    %c0_i32 = arith.constant 0 : i32
    %c0_i32_0 = arith.constant 0 : i32
    %c0_i32_1 = arith.constant 0 : i32
    %c0_i32_2 = arith.constant 0 : i32
    %c0_i32_3 = arith.constant 0 : i32
    return %arg0, %c0_i32, %c0_i32_0, %c0_i32_1, %c0_i32_2 : i32, i32, i32, i32, i32
  }
  func.func @transform_1(%arg0: i32) -> (i32, i32) {
    %c0_i32 = arith.constant 0 : i32
    %c0_i32_0 = arith.constant 0 : i32
    %c0_i32_1 = arith.constant 0 : i32
    return %c0_i32, %c0_i32_0 : i32, i32
  }
  func.func @transform_2(%arg0: i32) -> (i32, i32) {
    %c0_i32 = arith.constant 0 : i32
    %c0_i32_0 = arith.constant 0 : i32
    %c0_i32_1 = arith.constant 0 : i32
    return %c0_i32, %c0_i32_0 : i32, i32
  }
  func.func @transform_3(%arg0: i32) -> (i32, i32) {
    %c0_i32 = arith.constant 0 : i32
    %c0_i32_0 = arith.constant 0 : i32
    %c0_i32_1 = arith.constant 0 : i32
    return %c0_i32, %c0_i32_0 : i32, i32
  }
  func.func @transform_4(%arg0: i32) -> (i32, i32) {
    %c0_i32 = arith.constant 0 : i32
    %c0_i32_0 = arith.constant 0 : i32
    %c0_i32_1 = arith.constant 0 : i32
    return %c0_i32, %c0_i32_0 : i32, i32
  }
  func.func @transform_5(%arg0: i32) -> (i32, i32) {
    %c0_i32 = arith.constant 0 : i32
    %c0_i32_0 = arith.constant 0 : i32
    %c0_i32_1 = arith.constant 0 : i32
    return %c0_i32, %c0_i32_0 : i32, i32
  }
  func.func @transform_6(%arg0: i32) -> (i32, i32) {
    %c0_i32 = arith.constant 0 : i32
    %c0_i32_0 = arith.constant 0 : i32
    %c0_i32_1 = arith.constant 0 : i32
    return %c0_i32, %c0_i32_0 : i32, i32
  }
  func.func @transform_7(%arg0: i32) -> (i32, i32) {
    %c0_i32 = arith.constant 0 : i32
    %c0_i32_0 = arith.constant 0 : i32
    %c0_i32_1 = arith.constant 0 : i32
    return %c0_i32, %c0_i32_0 : i32, i32
  }
  func.func @transform_8(%arg0: i32) -> (i32, i32) {
    %c0_i32 = arith.constant 0 : i32
    %c0_i32_0 = arith.constant 0 : i32
    %c0_i32_1 = arith.constant 0 : i32
    return %c0_i32, %c0_i32_0 : i32, i32
  }
  func.func @transform_9(%arg0: i32) -> (i32, i32, i32, i32, i32) {
    %c0_i32 = arith.constant 0 : i32
    %c0_i32_0 = arith.constant 0 : i32
    %c0_i32_1 = arith.constant 0 : i32
    %c0_i32_2 = arith.constant 0 : i32
    %c0_i32_3 = arith.constant 0 : i32
    return %arg0, %c0_i32, %c0_i32_0, %c0_i32_1, %c0_i32_2 : i32, i32, i32, i32, i32
  }
}

</mosaic_0001>

<llo_original>
// kernel: tpu_custom_call.1
$region0: #{tpu_custom_call.1}
  #allocation0 [shape = 'u32[]', space=smem, size = 0x4, offset = 0x4, fixed_abs, tag = 'smem constant byte address 0x4 - core index']
  #allocation1 [shape = 'u32[144,128]{1,0:T(1,128)}', space=vmem, size = 0x12000, scoped, tag = 'internal scratch']
  %s0 = inlined_call_operand.hbm [shape: f32[2,4,8,8,128], index: 0, kind: input, shape index: {}]
  %s1 = inlined_call_operand.hbm [shape: bf16[1152,128], index: 1, kind: input, shape index: {}]
  %s2 = inlined_call_operand.vmem [shape: f32[1,128], index: 2, kind: input, shape index: {}]
  %s3 = inlined_call_operand.hbm [shape: bf16[384,128], index: 3, kind: input, shape index: {}]
  %s4 = inlined_call_operand.vmem [shape: f32[1,128], index: 4, kind: input, shape index: {}]
  %s5 = inlined_call_operand.hbm [shape: bf16[1152,128], index: 5, kind: input, shape index: {}]
  %s6 = inlined_call_operand.vmem [shape: f32[1,128], index: 6, kind: input, shape index: {}]
  %s7 = inlined_call_operand.hbm [shape: bf16[384,128], index: 7, kind: input, shape index: {}]
  %s8 = inlined_call_operand.vmem [shape: f32[1,128], index: 8, kind: input, shape index: {}]
  %s9 = inlined_call_operand.hbm [shape: f32[2,4,8,8,128], index: 9, kind: output, shape index: {}]
  %s10 = sld [smem:[#allocation0]]
  $region89: #{tpu_custom_call.1} parent=0
    _
  %s12 = ssub.s32 1, %s10
  %s13 = scalar_select 0, %s12, %s10
  $region1: #{tpu_custom_call.1} parent=0
    #allocation2 [shape = 'u8[262144]{0}', space=vmem, size = 0x40000, scoped, tag = 'input window, operand 0']
    #allocation3 [shape = 's32[2]{0}', space=sflag, size = 0x8, scoped, tag = 'scoped memory for tpu_custom_call.1']
    #allocation4 [shape = 's32[2]{0}', space=sflag, size = 0x8, scoped, tag = 'scoped memory for tpu_custom_call.1']
    #allocation5 [shape = 'u8[294912]{0}', space=vmem, size = 0x48000, scoped, tag = 'input window, operand 1, single buffered']
    #allocation6 [shape = 's32[1]{0}', space=sflag, size = 0x4, scoped, tag = 'scoped memory for tpu_custom_call.1']
    #allocation7 [shape = 'u8[98304]{0}', space=vmem, size = 0x18000, scoped, tag = 'input window, operand 3, single buffered']
    #allocation8 [shape = 'u8[294912]{0}', space=vmem, size = 0x48000, scoped, tag = 'input window, operand 5, single buffered']
    #allocation9 [shape = 's32[1]{0}', space=sflag, size = 0x4, scoped, tag = 'scoped memory for tpu_custom_call.1']
    #allocation10 [shape = 'u8[98304]{0}', space=vmem, size = 0x18000, scoped, tag = 'input window, operand 7, single buffered']
    #allocation11 [shape = 'u8[262144]{0}', space=vmem, size = 0x40000, scoped, tag = 'output window, operand 0']
    %14 = vsyncpa [#allocation3], 0
    %s15 = scalar_lea.sflag [#allocation3], 1
    %16 = vsyncpa %s15, 0
    %17 = vsyncpa [#allocation6], 0
    %18 = vsyncpa [#allocation9], 0
    %19 = vsyncpa [#allocation4], 0
    %s20 = scalar_lea.sflag [#allocation4], 1
    %21 = vsyncpa %s20, 0
    loop: start=0, step=1, limit=4
    $region2: #{tpu_custom_call.1} parent=1 // loop_pre_header
      _
    $region3: #{tpu_custom_call.1} parent=1 // loop_header
      %s23 = sphi 0, %s27
      %p24 = scmp.ge.s32.totalorder %s23, 4
      %s33 = sphi 0, %s35
      %s36 = sphi 0, %s33
      %s37 = sphi 0, %s36
      %s53 = sphi 0, %s37
      %s57 = sphi 0, %s57
      %s59 = sphi 0, %s57
      %s60 = sphi 0, %s59
      %s74 = sphi 0, %s60
      %s78 = sphi 0, %s78
      %s80 = sphi 0, %s78
      %s81 = sphi 0, %s80
      %s95 = sphi 0, %s81
      %s99 = sphi 0, %s99
      %s101 = sphi 0, %s99
      %s102 = sphi 0, %s101
      %s116 = sphi 0, %s102
      %s120 = sphi 0, %s120
      %s122 = sphi 0, %s120
      %s123 = sphi 0, %s122
      %s137 = sphi 0, %s123
      %s141 = sphi 0, %s141
      %s143 = sphi 0, %s141
      %s144 = sphi 0, %s143
      %s158 = sphi 0, %s144
      %s162 = sphi 0, %s162
      %s164 = sphi 0, %s162
      %s165 = sphi 0, %s164
      %s179 = sphi 0, %s165
      %s183 = sphi 0, %s183
      %s185 = sphi 0, %s183
      %s186 = sphi 0, %s185
      %s200 = sphi 0, %s186
      %s204 = sphi 0, %s204
      %s206 = sphi 0, %s204
      %s207 = sphi 0, %s206
      %s221 = sphi 0, %s207
      %s227 = sphi 0, %s229
      %s230 = sphi 0, %s227
      %s231 = sphi 0, %s230
      %s247 = sphi 0, %s231
    $region4: #{tpu_custom_call.1} parent=1 // loop_header_branch
      %26 = sbr.rel (%p24) target = $region8
    $region5: #{tpu_custom_call.1} parent=1 // loop_body
      %s28 = ssub.s32 %s23, 1
      %s29 = ssub.s32 %s23, 2
      %s30 = sadd.s32 %s23, 1
      %s31 = ssub.s32 %s23, %s30
      %p32 = scmp.eq.s32.totalorder %s31, 0
      %s34 = sadd.s32 %s33, 1
      %s35 = scalar_select %p32, %s33, %s34
      %p38 = pneg %p32
      %p39 = scmp.eq.s32.totalorder %s23, 1
      %p40 = por %p38, %p39
      %p41 = scmp.ne.s32.totalorder %s33, %s36
      %p42 = scmp.eq.s32.totalorder %s23, 0
      %p43 = por %p41, %p42
      %p44 = scmp.ne.s32.totalorder %s33, %s36
      %p45 = scmp.eq.s32.totalorder %s28, 1
      %p46 = por %p44, %p45
      %p47 = scmp.ne.s32.totalorder %s36, %s37
      %p48 = scmp.eq.s32.totalorder %s28, 0
      %p49 = por %p47, %p48
      %p50 = scmp.ne.s32.totalorder %s36, %s37
      %p51 = scmp.eq.s32.totalorder %s29, 1
      %p52 = por %p50, %p51
      %p54 = scmp.ne.s32.totalorder %s37, %s53
      %p55 = scmp.eq.s32.totalorder %s29, 0
      %p56 = por %p54, %p55
      %s58 = sadd.s32 %s57, 1
      %p61 = scmp.eq.s32.totalorder %s23, 1
      %p62 = scmp.ne.s32.totalorder %s57, %s59
      %p63 = scmp.eq.s32.totalorder %s23, 0
      %p64 = por %p62, %p63
      %p65 = scmp.ne.s32.totalorder %s57, %s59
      %p66 = scmp.eq.s32.totalorder %s28, 1
      %p67 = por %p65, %p66
      %p68 = scmp.ne.s32.totalorder %s59, %s60
      %p69 = scmp.eq.s32.totalorder %s28, 0
      %p70 = por %p68, %p69
      %p71 = scmp.ne.s32.totalorder %s59, %s60
      %p72 = scmp.eq.s32.totalorder %s29, 1
      %p73 = por %p71, %p72
      %p75 = scmp.ne.s32.totalorder %s60, %s74
      %p76 = scmp.eq.s32.totalorder %s29, 0
      %p77 = por %p75, %p76
      %s79 = sadd.s32 %s78, 1
      %p82 = scmp.eq.s32.totalorder %s23, 1
      %p83 = scmp.ne.s32.totalorder %s78, %s80
      %p84 = scmp.eq.s32.totalorder %s23, 0
      %p85 = por %p83, %p84
      %p86 = scmp.ne.s32.totalorder %s78, %s80
      %p87 = scmp.eq.s32.totalorder %s28, 1
      %p88 = por %p86, %p87
      %p89 = scmp.ne.s32.totalorder %s80, %s81
      %p90 = scmp.eq.s32.totalorder %s28, 0
      %p91 = por %p89, %p90
      %p92 = scmp.ne.s32.totalorder %s80, %s81
      %p93 = scmp.eq.s32.totalorder %s29, 1
      %p94 = por %p92, %p93
      %p96 = scmp.ne.s32.totalorder %s81, %s95
      %p97 = scmp.eq.s32.totalorder %s29, 0
      %p98 = por %p96, %p97
      %s100 = sadd.s32 %s99, 1
      %p103 = scmp.eq.s32.totalorder %s23, 1
      %p104 = scmp.ne.s32.totalorder %s99, %s101
      %p105 = scmp.eq.s32.totalorder %s23, 0
      %p106 = por %p104, %p105
      %p107 = scmp.ne.s32.totalorder %s99, %s101
      %p108 = scmp.eq.s32.totalorder %s28, 1
      %p109 = por %p107, %p108
      %p110 = scmp.ne.s32.totalorder %s101, %s102
      %p111 = scmp.eq.s32.totalorder %s28, 0
      %p112 = por %p110, %p111
      %p113 = scmp.ne.s32.totalorder %s101, %s102
      %p114 = scmp.eq.s32.totalorder %s29, 1
      %p115 = por %p113, %p114
      %p117 = scmp.ne.s32.totalorder %s102, %s116
      %p118 = scmp.eq.s32.totalorder %s29, 0
      %p119 = por %p117, %p118
      %s121 = sadd.s32 %s120, 1
      %p124 = scmp.eq.s32.totalorder %s23, 1
      %p125 = scmp.ne.s32.totalorder %s120, %s122
      %p126 = scmp.eq.s32.totalorder %s23, 0
      %p127 = por %p125, %p126
      %p128 = scmp.ne.s32.totalorder %s120, %s122
      %p129 = scmp.eq.s32.totalorder %s28, 1
      %p130 = por %p128, %p129
      %p131 = scmp.ne.s32.totalorder %s122, %s123
      %p132 = scmp.eq.s32.totalorder %s28, 0
      %p133 = por %p131, %p132
      %p134 = scmp.ne.s32.totalorder %s122, %s123
      %p135 = scmp.eq.s32.totalorder %s29, 1
      %p136 = por %p134, %p135
      %p138 = scmp.ne.s32.totalorder %s123, %s137
      %p139 = scmp.eq.s32.totalorder %s29, 0
      %p140 = por %p138, %p139
      %s142 = sadd.s32 %s141, 1
      %p145 = scmp.eq.s32.totalorder %s23, 1
      %p146 = scmp.ne.s32.totalorder %s141, %s143
      %p147 = scmp.eq.s32.totalorder %s23, 0
      %p148 = por %p146, %p147
      %p149 = scmp.ne.s32.totalorder %s141, %s143
      %p150 = scmp.eq.s32.totalorder %s28, 1
      %p151 = por %p149, %p150
      %p152 = scmp.ne.s32.totalorder %s143, %s144
      %p153 = scmp.eq.s32.totalorder %s28, 0
      %p154 = por %p152, %p153
      %p155 = scmp.ne.s32.totalorder %s143, %s144
      %p156 = scmp.eq.s32.totalorder %s29, 1
      %p157 = por %p155, %p156
      %p159 = scmp.ne.s32.totalorder %s144, %s158
      %p160 = scmp.eq.s32.totalorder %s29, 0
      %p161 = por %p159, %p160
      %s163 = sadd.s32 %s162, 1
      %p166 = scmp.eq.s32.totalorder %s23, 1
      %p167 = scmp.ne.s32.totalorder %s162, %s164
      %p168 = scmp.eq.s32.totalorder %s23, 0
      %p169 = por %p167, %p168
      %p170 = scmp.ne.s32.totalorder %s162, %s164
      %p171 = scmp.eq.s32.totalorder %s28, 1
      %p172 = por %p170, %p171
      %p173 = scmp.ne.s32.totalorder %s164, %s165
      %p174 = scmp.eq.s32.totalorder %s28, 0
      %p175 = por %p173, %p174
      %p176 = scmp.ne.s32.totalorder %s164, %s165
      %p177 = scmp.eq.s32.totalorder %s29, 1
      %p178 = por %p176, %p177
      %p180 = scmp.ne.s32.totalorder %s165, %s179
      %p181 = scmp.eq.s32.totalorder %s29, 0
      %p182 = por %p180, %p181
      %s184 = sadd.s32 %s183, 1
      %p187 = scmp.eq.s32.totalorder %s23, 1
      %p188 = scmp.ne.s32.totalorder %s183, %s185
      %p189 = scmp.eq.s32.totalorder %s23, 0
      %p190 = por %p188, %p189
      %p191 = scmp.ne.s32.totalorder %s183, %s185
      %p192 = scmp.eq.s32.totalorder %s28, 1
      %p193 = por %p191, %p192
      %p194 = scmp.ne.s32.totalorder %s185, %s186
      %p195 = scmp.eq.s32.totalorder %s28, 0
      %p196 = por %p194, %p195
      %p197 = scmp.ne.s32.totalorder %s185, %s186
      %p198 = scmp.eq.s32.totalorder %s29, 1
      %p199 = por %p197, %p198
      %p201 = scmp.ne.s32.totalorder %s186, %s200
      %p202 = scmp.eq.s32.totalorder %s29, 0
      %p203 = por %p201, %p202
      %s205 = sadd.s32 %s204, 1
      %p208 = scmp.eq.s32.totalorder %s23, 1
      %p209 = scmp.ne.s32.totalorder %s204, %s206
      %p210 = scmp.eq.s32.totalorder %s23, 0
      %p211 = por %p209, %p210
      %p212 = scmp.ne.s32.totalorder %s204, %s206
      %p213 = scmp.eq.s32.totalorder %s28, 1
      %p214 = por %p212, %p213
      %p215 = scmp.ne.s32.totalorder %s206, %s207
      %p216 = scmp.eq.s32.totalorder %s28, 0
      %p217 = por %p215, %p216
      %p218 = scmp.ne.s32.totalorder %s206, %s207
      %p219 = scmp.eq.s32.totalorder %s29, 1
      %p220 = por %p218, %p219
      %p222 = scmp.ne.s32.totalorder %s207, %s221
      %p223 = scmp.eq.s32.totalorder %s29, 0
      %p224 = por %p222, %p223
      %s225 = ssub.s32 %s23, %s30
      %p226 = scmp.eq.s32.totalorder %s225, 0
      %s228 = sadd.s32 %s227, 1
      %s229 = scalar_select %p226, %s227, %s228
      %p232 = pneg %p226
      %p233 = scmp.eq.s32.totalorder %s23, 1
      %p234 = por %p232, %p233
      %p235 = scmp.ne.s32.totalorder %s227, %s230
      %p236 = scmp.eq.s32.totalorder %s23, 0
      %p237 = por %p235, %p236
      %p238 = scmp.ne.s32.totalorder %s227, %s230
      %p239 = scmp.eq.s32.totalorder %s28, 1
      %p240 = por %p238, %p239
      %p241 = scmp.ne.s32.totalorder %s230, %s231
      %p242 = scmp.eq.s32.totalorder %s28, 0
      %p243 = por %p241, %p242
      %p244 = scmp.ne.s32.totalorder %s230, %s231
      %p245 = scmp.eq.s32.totalorder %s29, 1
      %p246 = por %p244, %p245
      %p248 = scmp.ne.s32.totalorder %s231, %s247
      %p249 = scmp.eq.s32.totalorder %s29, 0
      %p250 = por %p248, %p249
      %p251 = scmp.le.s32.totalorder 1, %s23
      %p252 = scmp.lt.s32.totalorder %s23, 3
      %p253 = pnand %p251, %p252
      %p254 = pneg %p253
      // Predicated region
      $region9: #{tpu_custom_call.1} parent=5 // pred_check
        _
      $region10: #{tpu_custom_call.1} parent=5 // pred_check_branch
        %256 = sbr.rel (%p253) target = $region12
      $region11: #{tpu_custom_call.1} parent=5 // pred_region
        %s257 = ssub.s32 %s23, 1
        // Predicated region
        $region13: #{tpu_custom_call.1} parent=11 // pred_check
          %p258 = pneg %p70
        $region14: #{tpu_custom_call.1} parent=11 // pred_check_branch
          %260 = sbr.rel (%p258) target = $region16
        $region15: #{tpu_custom_call.1} parent=11 // pred_region
          %s262 = ssub.s32 9216, 9216
          %263 = vsyncadd [#allocation6], %s262
          %s264 = sshll.u32 [#allocation5], 4
          %s265 = int_to_ptr.vmem [resolvable:$true] %s264
          %270 = dma.hbm_to_vmem [thread:$0]  %s1, 9216, %s265, [#allocation6], 64, 64, 4
        $region16: #{tpu_custom_call.1} parent=11 // pred_fallthru
          _
        // Predicated region
        $region17: #{tpu_custom_call.1} parent=11 // pred_check
          %p271 = pneg %p91
        $region18: #{tpu_custom_call.1} parent=11 // pred_check_branch
          %273 = sbr.rel (%p271) target = $region20
        $region19: #{tpu_custom_call.1} parent=11 // pred_region
          _
        $region20: #{tpu_custom_call.1} parent=11 // pred_fallthru
          _
        // Predicated region
        $region21: #{tpu_custom_call.1} parent=11 // pred_check
          %p274 = pneg %p112
        $region22: #{tpu_custom_call.1} parent=11 // pred_check_branch
          %276 = sbr.rel (%p274) target = $region24
        $region23: #{tpu_custom_call.1} parent=11 // pred_region
          %s278 = ssub.s32 3072, 3072
          %279 = vsyncadd [#allocation6], %s278
          %s280 = sshll.u32 [#allocation7], 4
          %s281 = int_to_ptr.vmem [resolvable:$true] %s280
          %286 = dma.hbm_to_vmem [thread:$0]  %s3, 3072, %s281, [#allocation6], 64, 64, 4
        $region24: #{tpu_custom_call.1} parent=11 // pred_fallthru
          _
        // Predicated region
        $region25: #{tpu_custom_call.1} parent=11 // pred_check
          %p287 = pneg %p133
        $region26: #{tpu_custom_call.1} parent=11 // pred_check_branch
          %289 = sbr.rel (%p287) target = $region28
        $region27: #{tpu_custom_call.1} parent=11 // pred_region
          _
        $region28: #{tpu_custom_call.1} parent=11 // pred_fallthru
          _
        // Predicated region
        $region29: #{tpu_custom_call.1} parent=11 // pred_check
          %p290 = pneg %p154
        $region30: #{tpu_custom_call.1} parent=11 // pred_check_branch
          %292 = sbr.rel (%p290) target = $region32
        $region31: #{tpu_custom_call.1} parent=11 // pred_region
          %s294 = ssub.s32 9216, 9216
          %295 = vsyncadd [#allocation9], %s294
          %s296 = sshll.u32 [#allocation8], 4
          %s297 = int_to_ptr.vmem [resolvable:$true] %s296
          %302 = dma.hbm_to_vmem [thread:$0]  %s5, 9216, %s297, [#allocation9], 64, 64, 4
        $region32: #{tpu_custom_call.1} parent=11 // pred_fallthru
          _
        // Predicated region
        $region33: #{tpu_custom_call.1} parent=11 // pred_check
          %p303 = pneg %p175
        $region34: #{tpu_custom_call.1} parent=11 // pred_check_branch
          %305 = sbr.rel (%p303) target = $region36
        $region35: #{tpu_custom_call.1} parent=11 // pred_region
          _
        $region36: #{tpu_custom_call.1} parent=11 // pred_fallthru
          _
        // Predicated region
        $region37: #{tpu_custom_call.1} parent=11 // pred_check
          %p306 = pneg %p196
        $region38: #{tpu_custom_call.1} parent=11 // pred_check_branch
          %308 = sbr.rel (%p306) target = $region40
        $region39: #{tpu_custom_call.1} parent=11 // pred_region
          %s310 = ssub.s32 3072, 3072
          %311 = vsyncadd [#allocation9], %s310
          %s312 = sshll.u32 [#allocation10], 4
          %s313 = int_to_ptr.vmem [resolvable:$true] %s312
          %318 = dma.hbm_to_vmem [thread:$0]  %s7, 3072, %s313, [#allocation9], 64, 64, 4
        $region40: #{tpu_custom_call.1} parent=11 // pred_fallthru
          _
        // Predicated region
        $region41: #{tpu_custom_call.1} parent=11 // pred_check
          %p319 = pneg %p217
        $region42: #{tpu_custom_call.1} parent=11 // pred_check_branch
          %321 = sbr.rel (%p319) target = $region44
        $region43: #{tpu_custom_call.1} parent=11 // pred_region
          _
        $region44: #{tpu_custom_call.1} parent=11 // pred_fallthru
          _
      $region12: #{tpu_custom_call.1} parent=5 // pred_fallthru
        _
      %p322 = scmp.lt.s32.totalorder %s23, 2
      // Predicated region
      $region45: #{tpu_custom_call.1} parent=5 // pred_check
        %p323 = pneg %p322
      $region46: #{tpu_custom_call.1} parent=5 // pred_check_branch
        %325 = sbr.rel (%p323) target = $region48
      $region47: #{tpu_custom_call.1} parent=5 // pred_region
        // Predicated region
        $region49: #{tpu_custom_call.1} parent=47 // pred_check
          %p326 = pneg %p43
        $region50: #{tpu_custom_call.1} parent=47 // pred_check_branch
          %328 = sbr.rel (%p326) target = $region52
        $region51: #{tpu_custom_call.1} parent=47 // pred_region
          %s329 = sand.u32 %s33, 1
          %s330 = scalar_lea.sflag [#allocation3], %s329
          %s331 = sand.u32 %s33, 1
          %s332 = smul.addr %s331, 256
          %s333 = scalar_lea.vmem [#allocation2], %s332
          %s335 = ssub.s32 4096, 4096
          %336 = vsyncadd %s330, %s335
          %s337 = smul.addr %s23, 32
          %s338 = smul.addr %s337, 128
          %s339 = scalar_lea.hbm %s0, %s338
          %s340 = sshll.u32 %s333, 4
          %s341 = int_to_ptr.vmem [resolvable:$true] %s340
          %346 = dma.hbm_to_vmem [thread:$0]  %s339, 4096, %s341, %s330, 128, 128, 8
        $region52: #{tpu_custom_call.1} parent=47 // pred_fallthru
          _
      $region48: #{tpu_custom_call.1} parent=5 // pred_fallthru
        _
      %p347 = scmp.le.s32.totalorder 1, %s23
      %p348 = scmp.lt.s32.totalorder %s23, 3
      %p349 = pnand %p347, %p348
      %p350 = pneg %p349
      // Predicated region
      $region53: #{tpu_custom_call.1} parent=5 // pred_check
        _
      $region54: #{tpu_custom_call.1} parent=5 // pred_check_branch
        %352 = sbr.rel (%p349) target = $region56
      $region55: #{tpu_custom_call.1} parent=5 // pred_region
        %s353 = ssub.s32 %s23, 1
        %s354 = sand.u32 %s36, 1
        %s355 = scalar_lea.sflag [#allocation3], %s354
        %s356 = sand.u32 %s36, 1
        %s357 = smul.addr %s356, 256
        %s358 = scalar_lea.vmem [#allocation2], %s357
        // Predicated region
        $region57: #{tpu_custom_call.1} parent=55 // pred_check
          %p359 = pneg %p49
        $region58: #{tpu_custom_call.1} parent=55 // pred_check_branch
          %361 = sbr.rel (%p359) target = $region60
        $region59: #{tpu_custom_call.1} parent=55 // pred_region
          %362 = dma.done %s355, 4096
        $region60: #{tpu_custom_call.1} parent=55 // pred_fallthru
          _
        // Predicated region
        $region61: #{tpu_custom_call.1} parent=55 // pred_check
          %p363 = pneg %p70
        $region62: #{tpu_custom_call.1} parent=55 // pred_check_branch
          %365 = sbr.rel (%p363) target = $region64
        $region63: #{tpu_custom_call.1} parent=55 // pred_region
          %366 = dma.done [#allocation6], 9216
        $region64: #{tpu_custom_call.1} parent=55 // pred_fallthru
          _
        // Predicated region
        $region65: #{tpu_custom_call.1} parent=55 // pred_check
          %p367 = pneg %p112
        $region66: #{tpu_custom_call.1} parent=55 // pred_check_branch
          %369 = sbr.rel (%p367) target = $region68
        $region67: #{tpu_custom_call.1} parent=55 // pred_region
          %370 = dma.done [#allocation6], 3072
        $region68: #{tpu_custom_call.1} parent=55 // pred_fallthru
          _
        // Predicated region
        $region69: #{tpu_custom_call.1} parent=55 // pred_check
          %p371 = pneg %p154
        $region70: #{tpu_custom_call.1} parent=55 // pred_check_branch
          %373 = sbr.rel (%p371) target = $region72
        $region71: #{tpu_custom_call.1} parent=55 // pred_region
          %374 = dma.done [#allocation9], 9216
        $region72: #{tpu_custom_call.1} parent=55 // pred_fallthru
          _
        // Predicated region
        $region73: #{tpu_custom_call.1} parent=55 // pred_check
          %p375 = pneg %p196
        $region74: #{tpu_custom_call.1} parent=55 // pred_check_branch
          %377 = sbr.rel (%p375) target = $region76
        $region75: #{tpu_custom_call.1} parent=55 // pred_region
          %378 = dma.done [#allocation9], 3072
        $region76: #{tpu_custom_call.1} parent=55 // pred_fallthru
          _
        %s379 = sand.u32 %s36, 1
        %s380 = scalar_lea.sflag [#allocation3], %s379
        %s381 = sand.u32 %s36, 1
        %s382 = smul.addr %s381, 256
        %s383 = scalar_lea.vmem [#allocation2], %s382
        %p384 = pneg %p49
        %p385 = pneg %p46
        %p386 = pneg %p70
        %p387 = pneg %p67
        %p388 = pneg %p91
        %p389 = pneg %p88
        %p390 = pneg %p112
        %p391 = pneg %p109
        %p392 = pneg %p133
        %p393 = pneg %p130
        %p394 = pneg %p154
        %p395 = pneg %p151
        %p396 = pneg %p175
        %p397 = pneg %p172
        %p398 = pneg %p196
        %p399 = pneg %p193
        %p400 = pneg %p217
        %p401 = pneg %p214
        %p402 = pneg %p243
        %p403 = pneg %p240
        %s404 = sand.u32 %s230, 1
        %s405 = scalar_lea.sflag [#allocation4], %s404
        %s406 = sand.u32 %s230, 1
        %s407 = smul.addr %s406, 256
        %s408 = scalar_lea.vmem [#allocation11], %s407
        %v410 = vld [vmem:[%s358] sm:$0xff]
        %v411 = vld [vmem:[%s358 + $0x8] sm:$0xff]
        %v412 = vld [vmem:[%s358 + $0x10] sm:$0xff]
        %v413 = vld [vmem:[%s358 + $0x18] sm:$0xff]
        %v414 = vld [vmem:[%s358 + $0x20] sm:$0xff]
        %v415 = vld [vmem:[%s358 + $0x28] sm:$0xff]
        %v416 = vld [vmem:[%s358 + $0x30] sm:$0xff]
        %v417 = vld [vmem:[%s358 + $0x38] sm:$0xff]
        %v418 = vld [vmem:[%s358 + $0x40] sm:$0xff]
        %v419 = vld [vmem:[%s358 + $0x48] sm:$0xff]
        %v420 = vld [vmem:[%s358 + $0x50] sm:$0xff]
        %v421 = vld [vmem:[%s358 + $0x58] sm:$0xff]
        %v422 = vld [vmem:[%s358 + $0x60] sm:$0xff]
        %v423 = vld [vmem:[%s358 + $0x68] sm:$0xff]
        %v424 = vld [vmem:[%s358 + $0x70] sm:$0xff]
        %v425 = vld [vmem:[%s358 + $0x78] sm:$0xff]
        %v426 = vld [vmem:[%s358 + $0x80] sm:$0xff]
        %v427 = vld [vmem:[%s358 + $0x88] sm:$0xff]
        %v428 = vld [vmem:[%s358 + $0x90] sm:$0xff]
        %v429 = vld [vmem:[%s358 + $0x98] sm:$0xff]
        %v430 = vld [vmem:[%s358 + $0xa0] sm:$0xff]
        %v431 = vld [vmem:[%s358 + $0xa8] sm:$0xff]
        %v432 = vld [vmem:[%s358 + $0xb0] sm:$0xff]
        %v433 = vld [vmem:[%s358 + $0xb8] sm:$0xff]
        %v434 = vld [vmem:[%s358 + $0xc0] sm:$0xff]
        %v435 = vld [vmem:[%s358 + $0xc8] sm:$0xff]
        %v436 = vld [vmem:[%s358 + $0xd0] sm:$0xff]
        %v437 = vld [vmem:[%s358 + $0xd8] sm:$0xff]
        %v438 = vld [vmem:[%s358 + $0xe0] sm:$0xff]
        %v439 = vld [vmem:[%s358 + $0xe8] sm:$0xff]
        %v440 = vld [vmem:[%s358 + $0xf0] sm:$0xff]
        %v441 = vld [vmem:[%s358 + $0xf8] sm:$0xff]
        %v442 = vpack.c.bf16 %v410, %v410
        %v443 = vpack.c.bf16 %v411, %v411
        %v444 = vpack.c.bf16 %v412, %v412
        %v445 = vpack.c.bf16 %v413, %v413
        %v446 = vpack.c.bf16 %v414, %v414
        %v447 = vpack.c.bf16 %v415, %v415
        %v448 = vpack.c.bf16 %v416, %v416
        %v449 = vpack.c.bf16 %v417, %v417
        %v450 = vpack.c.bf16 %v418, %v418
        %v451 = vpack.c.bf16 %v419, %v419
        %v452 = vpack.c.bf16 %v420, %v420
        %v453 = vpack.c.bf16 %v421, %v421
        %v454 = vpack.c.bf16 %v422, %v422
        %v455 = vpack.c.bf16 %v423, %v423
        %v456 = vpack.c.bf16 %v424, %v424
        %v457 = vpack.c.bf16 %v425, %v425
        %v458 = vpack.c.bf16 %v426, %v426
        %v459 = vpack.c.bf16 %v427, %v427
        %v460 = vpack.c.bf16 %v428, %v428
        %v461 = vpack.c.bf16 %v429, %v429
        %v462 = vpack.c.bf16 %v430, %v430
        %v463 = vpack.c.bf16 %v431, %v431
        %v464 = vpack.c.bf16 %v432, %v432
        %v465 = vpack.c.bf16 %v433, %v433
        %v466 = vpack.c.bf16 %v434, %v434
        %v467 = vpack.c.bf16 %v435, %v435
        %v468 = vpack.c.bf16 %v436, %v436
        %v469 = vpack.c.bf16 %v437, %v437
        %v470 = vpack.c.bf16 %v438, %v438
        %v471 = vpack.c.bf16 %v439, %v439
        %v472 = vpack.c.bf16 %v440, %v440
        %v473 = vpack.c.bf16 %v441, %v441
        %v475 = vshrl.u32 0, 16
        %v477 = vrot.slane %v475, 7
        %v478 = vshll.u32 0, 16
        %v480 = vor.u32 %v477, %v478
        %v482 = vshrl.u32 %v442, 16
        %v484 = vrot.slane %v482, 7
        %v485 = vshll.u32 %v442, 16
        %v487 = vor.u32 %v484, %v485
        %v489 = vshrl.u32 %v443, 16
        %v491 = vrot.slane %v489, 7
        %v492 = vshll.u32 %v443, 16
        %v494 = vor.u32 %v491, %v492
        %v496 = vshrl.u32 %v444, 16
        %v498 = vrot.slane %v496, 7
        %v499 = vshll.u32 %v444, 16
        %v501 = vor.u32 %v498, %v499
        %v503 = vshrl.u32 %v445, 16
        %v505 = vrot.slane %v503, 7
        %v506 = vshll.u32 %v445, 16
        %v508 = vor.u32 %v505, %v506
        %v510 = vshrl.u32 %v446, 16
        %v512 = vrot.slane %v510, 7
        %v513 = vshll.u32 %v446, 16
        %v515 = vor.u32 %v512, %v513
        %v517 = vshrl.u32 %v447, 16
        %v519 = vrot.slane %v517, 7
        %v520 = vshll.u32 %v447, 16
        %v522 = vor.u32 %v519, %v520
        %v524 = vshrl.u32 %v448, 16
        %v526 = vrot.slane %v524, 7
        %v527 = vshll.u32 %v448, 16
        %v529 = vor.u32 %v526, %v527
        %v531 = vshrl.u32 %v450, 16
        %v533 = vrot.slane %v531, 7
        %v534 = vshll.u32 %v450, 16
        %v536 = vor.u32 %v533, %v534
        %v538 = vshrl.u32 %v451, 16
        %v540 = vrot.slane %v538, 7
        %v541 = vshll.u32 %v451, 16
        %v543 = vor.u32 %v540, %v541
        %v545 = vshrl.u32 %v452, 16
        %v547 = vrot.slane %v545, 7
        %v548 = vshll.u32 %v452, 16
        %v550 = vor.u32 %v547, %v548
        %v552 = vshrl.u32 %v453, 16
        %v554 = vrot.slane %v552, 7
        %v555 = vshll.u32 %v453, 16
        %v557 = vor.u32 %v554, %v555
        %v559 = vshrl.u32 %v454, 16
        %v561 = vrot.slane %v559, 7
        %v562 = vshll.u32 %v454, 16
        %v564 = vor.u32 %v561, %v562
        %v566 = vshrl.u32 %v455, 16
        %v568 = vrot.slane %v566, 7
        %v569 = vshll.u32 %v455, 16
        %v571 = vor.u32 %v568, %v569
        %v573 = vshrl.u32 %v456, 16
        %v575 = vrot.slane %v573, 7
        %v576 = vshll.u32 %v456, 16
        %v578 = vor.u32 %v575, %v576
        %v580 = vshrl.u32 %v458, 16
        %v582 = vrot.slane %v580, 7
        %v583 = vshll.u32 %v458, 16
        %v585 = vor.u32 %v582, %v583
        %v587 = vshrl.u32 %v459, 16
        %v589 = vrot.slane %v587, 7
        %v590 = vshll.u32 %v459, 16
        %v592 = vor.u32 %v589, %v590
        %v594 = vshrl.u32 %v460, 16
        %v596 = vrot.slane %v594, 7
        %v597 = vshll.u32 %v460, 16
        %v599 = vor.u32 %v596, %v597
        %v601 = vshrl.u32 %v461, 16
        %v603 = vrot.slane %v601, 7
        %v604 = vshll.u32 %v461, 16
        %v606 = vor.u32 %v603, %v604
        %v608 = vshrl.u32 %v462, 16
        %v610 = vrot.slane %v608, 7
        %v611 = vshll.u32 %v462, 16
        %v613 = vor.u32 %v610, %v611
        %v615 = vshrl.u32 %v463, 16
        %v617 = vrot.slane %v615, 7
        %v618 = vshll.u32 %v463, 16
        %v620 = vor.u32 %v617, %v618
        %v622 = vshrl.u32 %v464, 16
        %v624 = vrot.slane %v622, 7
        %v625 = vshll.u32 %v464, 16
        %v627 = vor.u32 %v624, %v625
        %v629 = vshrl.u32 %v466, 16
        %v631 = vrot.slane %v629, 7
        %v632 = vshll.u32 %v466, 16
        %v634 = vor.u32 %v631, %v632
        %v636 = vshrl.u32 %v467, 16
        %v638 = vrot.slane %v636, 7
        %v639 = vshll.u32 %v467, 16
        %v641 = vor.u32 %v638, %v639
        %v643 = vshrl.u32 %v468, 16
        %v645 = vrot.slane %v643, 7
        %v646 = vshll.u32 %v468, 16
        %v648 = vor.u32 %v645, %v646
        %v650 = vshrl.u32 %v469, 16
        %v652 = vrot.slane %v650, 7
        %v653 = vshll.u32 %v469, 16
        %v655 = vor.u32 %v652, %v653
        %v657 = vshrl.u32 %v470, 16
        %v659 = vrot.slane %v657, 7
        %v660 = vshll.u32 %v470, 16
        %v662 = vor.u32 %v659, %v660
        %v664 = vshrl.u32 %v471, 16
        %v666 = vrot.slane %v664, 7
        %v667 = vshll.u32 %v471, 16
        %v669 = vor.u32 %v666, %v667
        %v671 = vshrl.u32 %v472, 16
        %v673 = vrot.slane %v671, 7
        %v674 = vshll.u32 %v472, 16
        %v676 = vor.u32 %v673, %v674
        %vm706 = vcmask 1040384
        %vm707 = vsmask.f32 256
        %vm708 = vmand %vm706, %vm707
        %v709 = vsel %vm708, 0, %v480
        %v710 = vsel %vm708, 0, %v487
        %v711 = vsel %vm708, 0, %v494
        %v712 = vsel %vm708, 0, %v501
        %v713 = vsel %vm708, 0, %v508
        %v714 = vsel %vm708, 0, %v515
        %v715 = vsel %vm708, 0, %v522
        %v716 = vsel %vm708, 0, %v529
        %v717 = vsel %vm708, 0, %v536
        %v718 = vsel %vm708, 0, %v543
        %v719 = vsel %vm708, 0, %v550
        %v720 = vsel %vm708, 0, %v557
        %v721 = vsel %vm708, 0, %v564
        %v722 = vsel %vm708, 0, %v571
        %v723 = vsel %vm708, 0, %v578
        %v724 = vsel %vm708, 0, %v585
        %v725 = vsel %vm708, 0, %v592
        %v726 = vsel %vm708, 0, %v599
        %v727 = vsel %vm708, 0, %v606
        %v728 = vsel %vm708, 0, %v613
        %v729 = vsel %vm708, 0, %v620
        %v730 = vsel %vm708, 0, %v627
        %v731 = vsel %vm708, 0, %v634
        %v732 = vsel %vm708, 0, %v641
        %v733 = vsel %vm708, 0, %v648
        %v734 = vsel %vm708, 0, %v655
        %v735 = vsel %vm708, 0, %v662
        %v736 = vsel %vm708, 0, %v669
        %v737 = vsel %vm708, 0, %v676
        %v738 = vrot.slane %v478, 1
        %v739 = vor.u32 %v475, %v738
        %v740 = vrot.slane %v485, 1
        %v741 = vor.u32 %v482, %v740
        %v742 = vrot.slane %v492, 1
        %v743 = vor.u32 %v489, %v742
        %v744 = vrot.slane %v499, 1
        %v745 = vor.u32 %v496, %v744
        %v746 = vrot.slane %v506, 1
        %v747 = vor.u32 %v503, %v746
        %v748 = vrot.slane %v513, 1
        %v749 = vor.u32 %v510, %v748
        %v750 = vrot.slane %v520, 1
        %v751 = vor.u32 %v517, %v750
        %v752 = vrot.slane %v527, 1
        %v753 = vor.u32 %v524, %v752
        %v754 = vrot.slane %v534, 1
        %v755 = vor.u32 %v531, %v754
        %v756 = vrot.slane %v541, 1
        %v757 = vor.u32 %v538, %v756
        %v758 = vrot.slane %v548, 1
        %v759 = vor.u32 %v545, %v758
        %v760 = vrot.slane %v555, 1
        %v761 = vor.u32 %v552, %v760
        %v762 = vrot.slane %v562, 1
        %v763 = vor.u32 %v559, %v762
        %v764 = vrot.slane %v569, 1
        %v765 = vor.u32 %v566, %v764
        %v766 = vrot.slane %v576, 1
        %v767 = vor.u32 %v573, %v766
        %v768 = vrot.slane %v583, 1
        %v769 = vor.u32 %v580, %v768
        %v770 = vrot.slane %v590, 1
        %v771 = vor.u32 %v587, %v770
        %v772 = vrot.slane %v597, 1
        %v773 = vor.u32 %v594, %v772
        %v774 = vrot.slane %v604, 1
        %v775 = vor.u32 %v601, %v774
        %v776 = vrot.slane %v611, 1
        %v777 = vor.u32 %v608, %v776
        %v778 = vrot.slane %v618, 1
        %v779 = vor.u32 %v615, %v778
        %v780 = vrot.slane %v625, 1
        %v781 = vor.u32 %v622, %v780
        %v782 = vrot.slane %v632, 1
        %v783 = vor.u32 %v629, %v782
        %v784 = vrot.slane %v639, 1
        %v785 = vor.u32 %v636, %v784
        %v786 = vrot.slane %v646, 1
        %v787 = vor.u32 %v643, %v786
        %v788 = vrot.slane %v653, 1
        %v789 = vor.u32 %v650, %v788
        %v790 = vrot.slane %v660, 1
        %v791 = vor.u32 %v657, %v790
        %v792 = vrot.slane %v667, 1
        %v793 = vor.u32 %v664, %v792
        %v794 = vrot.slane %v674, 1
        %v795 = vor.u32 %v671, %v794
        %vm825 = vcmask 1043456
        %vm826 = vsmask.f32 3328
        %vm827 = vmand %vm825, %vm826
        %v828 = vsel %vm827, %v739, 0
        %v829 = vsel %vm827, %v741, 0
        %v830 = vsel %vm827, %v743, 0
        %v831 = vsel %vm827, %v745, 0
        %v832 = vsel %vm827, %v747, 0
        %v833 = vsel %vm827, %v749, 0
        %v834 = vsel %vm827, %v751, 0
        %v835 = vsel %vm827, %v753, 0
        %v836 = vsel %vm827, %v755, 0
        %v837 = vsel %vm827, %v757, 0
        %v838 = vsel %vm827, %v759, 0
        %v839 = vsel %vm827, %v761, 0
        %v840 = vsel %vm827, %v763, 0
        %v841 = vsel %vm827, %v765, 0
        %v842 = vsel %vm827, %v767, 0
        %v843 = vsel %vm827, %v769, 0
        %v844 = vsel %vm827, %v771, 0
        %v845 = vsel %vm827, %v773, 0
        %v846 = vsel %vm827, %v775, 0
        %v847 = vsel %vm827, %v777, 0
        %v848 = vsel %vm827, %v779, 0
        %v849 = vsel %vm827, %v781, 0
        %v850 = vsel %vm827, %v783, 0
        %v851 = vsel %vm827, %v785, 0
        %v852 = vsel %vm827, %v787, 0
        %v853 = vsel %vm827, %v789, 0
        %v854 = vsel %vm827, %v791, 0
        %v855 = vsel %vm827, %v793, 0
        %v856 = vsel %vm827, %v795, 0
        %v858 = vshrl.u32 %v449, 16
        %v860 = vrot.slane %v858, 7
        %v861 = vshll.u32 %v449, 16
        %v863 = vor.u32 %v860, %v861
        %v865 = vshrl.u32 %v457, 16
        %v867 = vrot.slane %v865, 7
        %v868 = vshll.u32 %v457, 16
        %v870 = vor.u32 %v867, %v868
        %v872 = vshrl.u32 %v465, 16
        %v874 = vrot.slane %v872, 7
        %v875 = vshll.u32 %v465, 16
        %v877 = vor.u32 %v874, %v875
        %v879 = vshrl.u32 %v473, 16
        %v881 = vrot.slane %v879, 7
        %v882 = vshll.u32 %v473, 16
        %v884 = vor.u32 %v881, %v882
        %v889 = vsel %vm708, 0, %v863
        %v890 = vsel %vm708, 0, %v870
        %v891 = vsel %vm708, 0, %v877
        %v892 = vsel %vm708, 0, %v884
        %v893 = vrot.slane %v861, 1
        %v894 = vor.u32 %v858, %v893
        %v895 = vrot.slane %v868, 1
        %v896 = vor.u32 %v865, %v895
        %v897 = vrot.slane %v875, 1
        %v898 = vor.u32 %v872, %v897
        %v899 = vrot.slane %v882, 1
        %v900 = vor.u32 %v879, %v899
        %v905 = vsel %vm827, %v894, 0
        %v906 = vsel %vm827, %v896, 0
        %v907 = vsel %vm827, %v898, 0
        %v908 = vsel %vm827, %v900, 0
        %v1008 = vunpack.c.l.b16 %v709
        %v1009 = vunpack.c.l.b16 0
        %v1010 = vunpack.c.l.b16 %v828
        %v1011 = vunpack.c.l.b16 %v710
        %v1012 = vunpack.c.l.b16 %v442
        %v1013 = vunpack.c.l.b16 %v829
        %v1014 = vunpack.c.l.b16 %v711
        %v1015 = vunpack.c.l.b16 %v443
        %v1016 = vunpack.c.l.b16 %v830
        %v1017 = vunpack.c.l.b16 %v712
        %v1018 = vunpack.c.l.b16 %v444
        %v1019 = vunpack.c.l.b16 %v831
        %v1020 = vunpack.c.l.b16 %v713
        %v1021 = vunpack.c.l.b16 %v445
        %v1022 = vunpack.c.l.b16 %v832
        %v1023 = vunpack.c.l.b16 %v714
        %v1024 = vunpack.c.l.b16 %v446
        %v1025 = vunpack.c.l.b16 %v833
        %v1026 = vunpack.c.l.b16 %v715
        %v1027 = vunpack.c.l.b16 %v447
        %v1028 = vunpack.c.l.b16 %v834
        %v1029 = vunpack.c.l.b16 %v716
        %v1030 = vunpack.c.l.b16 %v448
        %v1031 = vunpack.c.l.b16 %v835
        %v1032 = vunpack.c.l.b16 %v889
        %v1033 = vunpack.c.l.b16 %v449
        %v1034 = vunpack.c.l.b16 %v905
        %v1035 = vunpack.c.l.b16 %v717
        %v1036 = vunpack.c.l.b16 %v450
        %v1037 = vunpack.c.l.b16 %v836
        %v1038 = vunpack.c.l.b16 %v718
        %v1039 = vunpack.c.l.b16 %v451
        %v1040 = vunpack.c.l.b16 %v837
        %v1041 = vunpack.c.l.b16 %v719
        %v1042 = vunpack.c.l.b16 %v452
        %v1043 = vunpack.c.l.b16 %v838
        %v1044 = vunpack.c.l.b16 %v720
        %v1045 = vunpack.c.l.b16 %v453
        %v1046 = vunpack.c.l.b16 %v839
        %v1047 = vunpack.c.l.b16 %v721
        %v1048 = vunpack.c.l.b16 %v454
        %v1049 = vunpack.c.l.b16 %v840
        %v1050 = vunpack.c.l.b16 %v722
        %v1051 = vunpack.c.l.b16 %v455
        %v1052 = vunpack.c.l.b16 %v841
        %v1053 = vunpack.c.l.b16 %v723
        %v1054 = vunpack.c.l.b16 %v456
        %v1055 = vunpack.c.l.b16 %v842
        %v1056 = vunpack.c.l.b16 %v890
        %v1057 = vunpack.c.l.b16 %v457
        %v1058 = vunpack.c.l.b16 %v906
        %v1059 = vunpack.c.l.b16 %v724
        %v1060 = vunpack.c.l.b16 %v458
        %v1061 = vunpack.c.l.b16 %v843
        %v1062 = vunpack.c.l.b16 %v725
        %v1063 = vunpack.c.l.b16 %v459
        %v1064 = vunpack.c.l.b16 %v844
        %v1065 = vunpack.c.l.b16 %v726
        %v1066 = vunpack.c.l.b16 %v460
        %v1067 = vunpack.c.l.b16 %v845
        %v1068 = vunpack.c.l.b16 %v727
        %v1069 = vunpack.c.l.b16 %v461
        %v1070 = vunpack.c.l.b16 %v846
        %v1071 = vunpack.c.l.b16 %v728
        %v1072 = vunpack.c.l.b16 %v462
        %v1073 = vunpack.c.l.b16 %v847
        %v1074 = vunpack.c.l.b16 %v729
        %v1075 = vunpack.c.l.b16 %v463
        %v1076 = vunpack.c.l.b16 %v848
        %v1077 = vunpack.c.l.b16 %v730
        %v1078 = vunpack.c.l.b16 %v464
        %v1079 = vunpack.c.l.b16 %v849
        %v1080 = vunpack.c.l.b16 %v891
        %v1081 = vunpack.c.l.b16 %v465
        %v1082 = vunpack.c.l.b16 %v907
        %v1083 = vunpack.c.l.b16 %v731
        %v1084 = vunpack.c.l.b16 %v466
        %v1085 = vunpack.c.l.b16 %v850
        %v1086 = vunpack.c.l.b16 %v732
        %v1087 = vunpack.c.l.b16 %v467
        %v1088 = vunpack.c.l.b16 %v851
        %v1089 = vunpack.c.l.b16 %v733
        %v1090 = vunpack.c.l.b16 %v468
        %v1091 = vunpack.c.l.b16 %v852
        %v1092 = vunpack.c.l.b16 %v734
        %v1093 = vunpack.c.l.b16 %v469
        %v1094 = vunpack.c.l.b16 %v853
        %v1095 = vunpack.c.l.b16 %v735
        %v1096 = vunpack.c.l.b16 %v470
        %v1097 = vunpack.c.l.b16 %v854
        %v1098 = vunpack.c.l.b16 %v736
        %v1099 = vunpack.c.l.b16 %v471
        %v1100 = vunpack.c.l.b16 %v855
        %v1101 = vunpack.c.l.b16 %v737
        %v1102 = vunpack.c.l.b16 %v472
        %v1103 = vunpack.c.l.b16 %v856
        %v1104 = vunpack.c.l.b16 %v892
        %v1105 = vunpack.c.l.b16 %v473
        %v1106 = vunpack.c.l.b16 %v908
        %v1107 = vld [vmem:[#allocation5] sm:$0xf]
        %v1108 = vld [vmem:[#allocation5 + $0x4] sm:$0xf]
        %v1109 = vld [vmem:[#allocation5 + $0x8] sm:$0xf]
        %v1110 = vld [vmem:[#allocation5 + $0xc] sm:$0xf]
        %v1111 = vld [vmem:[#allocation5 + $0x10] sm:$0xf]
        %v1112 = vld [vmem:[#allocation5 + $0x14] sm:$0xf]
        %v1113 = vld [vmem:[#allocation5 + $0x18] sm:$0xf]
        %v1114 = vld [vmem:[#allocation5 + $0x1c] sm:$0xf]
        %v1115 = vld [vmem:[#allocation5 + $0x20] sm:$0xf]
        %v1116 = vld [vmem:[#allocation5 + $0x24] sm:$0xf]
        %v1117 = vld [vmem:[#allocation5 + $0x28] sm:$0xf]
        %v1118 = vld [vmem:[#allocation5 + $0x2c] sm:$0xf]
        %v1119 = vld [vmem:[#allocation5 + $0x30] sm:$0xf]
        %v1120 = vld [vmem:[#allocation5 + $0x34] sm:$0xf]
        %v1121 = vld [vmem:[#allocation5 + $0x38] sm:$0xf]
        %v1122 = vld [vmem:[#allocation5 + $0x3c] sm:$0xf]
        %v1123 = vld [vmem:[#allocation5 + $0x40] sm:$0xf]
        %v1124 = vld [vmem:[#allocation5 + $0x44] sm:$0xf]
        %v1125 = vld [vmem:[#allocation5 + $0x48] sm:$0xf]
        %v1126 = vld [vmem:[#allocation5 + $0x4c] sm:$0xf]
        %v1127 = vld [vmem:[#allocation5 + $0x50] sm:$0xf]
        %v1128 = vld [vmem:[#allocation5 + $0x54] sm:$0xf]
        %v1129 = vld [vmem:[#allocation5 + $0x58] sm:$0xf]
        %v1130 = vld [vmem:[#allocation5 + $0x5c] sm:$0xf]
        %v1131 = vld [vmem:[#allocation5 + $0x60] sm:$0xf]
        %v1132 = vld [vmem:[#allocation5 + $0x64] sm:$0xf]
        %v1133 = vld [vmem:[#allocation5 + $0x68] sm:$0xf]
        %v1134 = vld [vmem:[#allocation5 + $0x6c] sm:$0xf]
        %v1135 = vld [vmem:[#allocation5 + $0x70] sm:$0xf]
        %v1136 = vld [vmem:[#allocation5 + $0x74] sm:$0xf]
        %v1137 = vld [vmem:[#allocation5 + $0x78] sm:$0xf]
        %v1138 = vld [vmem:[#allocation5 + $0x7c] sm:$0xf]
        %v1139 = vld [vmem:[#allocation5 + $0x80] sm:$0xf]
        %v1140 = vld [vmem:[#allocation5 + $0x84] sm:$0xf]
        %v1141 = vld [vmem:[#allocation5 + $0x88] sm:$0xf]
        %v1142 = vld [vmem:[#allocation5 + $0x8c] sm:$0xf]
        %v1143 = vld [vmem:[#allocation5 + $0x90] sm:$0xf]
        %v1144 = vld [vmem:[#allocation5 + $0x94] sm:$0xf]
        %v1145 = vld [vmem:[#allocation5 + $0x98] sm:$0xf]
        %v1146 = vld [vmem:[#allocation5 + $0x9c] sm:$0xf]
        %v1147 = vld [vmem:[#allocation5 + $0xa0] sm:$0xf]
        %v1148 = vld [vmem:[#allocation5 + $0xa4] sm:$0xf]
        %v1149 = vld [vmem:[#allocation5 + $0xa8] sm:$0xf]
        %v1150 = vld [vmem:[#allocation5 + $0xac] sm:$0xf]
        %v1151 = vld [vmem:[#allocation5 + $0xb0] sm:$0xf]
        %v1152 = vld [vmem:[#allocation5 + $0xb4] sm:$0xf]
        %v1153 = vld [vmem:[#allocation5 + $0xb8] sm:$0xf]
        %v1154 = vld [vmem:[#allocation5 + $0xbc] sm:$0xf]
        %v1155 = vld [vmem:[#allocation5 + $0xc0] sm:$0xf]
        %v1156 = vld [vmem:[#allocation5 + $0xc4] sm:$0xf]
        %v1157 = vld [vmem:[#allocation5 + $0xc8] sm:$0xf]
        %v1158 = vld [vmem:[#allocation5 + $0xcc] sm:$0xf]
        %v1159 = vld [vmem:[#allocation5 + $0xd0] sm:$0xf]
        %v1160 = vld [vmem:[#allocation5 + $0xd4] sm:$0xf]
        %v1161 = vld [vmem:[#allocation5 + $0xd8] sm:$0xf]
        %v1162 = vld [vmem:[#allocation5 + $0xdc] sm:$0xf]
        %v1163 = vld [vmem:[#allocation5 + $0xe0] sm:$0xf]
        %v1164 = vld [vmem:[#allocation5 + $0xe4] sm:$0xf]
        %v1165 = vld [vmem:[#allocation5 + $0xe8] sm:$0xf]
        %v1166 = vld [vmem:[#allocation5 + $0xec] sm:$0xf]
        %v1167 = vld [vmem:[#allocation5 + $0xf0] sm:$0xf]
        %v1168 = vld [vmem:[#allocation5 + $0xf4] sm:$0xf]
        %v1169 = vld [vmem:[#allocation5 + $0xf8] sm:$0xf]
        %v1170 = vld [vmem:[#allocation5 + $0xfc] sm:$0xf]
        %v1171 = vld [vmem:[#allocation5 + $0x100] sm:$0xf]
        %v1172 = vld [vmem:[#allocation5 + $0x104] sm:$0xf]
        %v1173 = vld [vmem:[#allocation5 + $0x108] sm:$0xf]
        %v1174 = vld [vmem:[#allocation5 + $0x10c] sm:$0xf]
        %v1175 = vld [vmem:[#allocation5 + $0x110] sm:$0xf]
        %v1176 = vld [vmem:[#allocation5 + $0x114] sm:$0xf]
        %v1177 = vld [vmem:[#allocation5 + $0x118] sm:$0xf]
        %v1178 = vld [vmem:[#allocation5 + $0x11c] sm:$0xf]
        %v1179 = vld [vmem:[#allocation5 + $0x120] sm:$0xf]
        %v1180 = vld [vmem:[#allocation5 + $0x124] sm:$0xf]
        %v1181 = vld [vmem:[#allocation5 + $0x128] sm:$0xf]
        %v1182 = vld [vmem:[#allocation5 + $0x12c] sm:$0xf]
        %v1183 = vld [vmem:[#allocation5 + $0x130] sm:$0xf]
        %v1184 = vld [vmem:[#allocation5 + $0x134] sm:$0xf]
        %v1185 = vld [vmem:[#allocation5 + $0x138] sm:$0xf]
        %v1186 = vld [vmem:[#allocation5 + $0x13c] sm:$0xf]
        %v1187 = vld [vmem:[#allocation5 + $0x140] sm:$0xf]
        %v1188 = vld [vmem:[#allocation5 + $0x144] sm:$0xf]
        %v1189 = vld [vmem:[#allocation5 + $0x148] sm:$0xf]
        %v1190 = vld [vmem:[#allocation5 + $0x14c] sm:$0xf]
        %v1191 = vld [vmem:[#allocation5 + $0x150] sm:$0xf]
        %v1192 = vld [vmem:[#allocation5 + $0x154] sm:$0xf]
        %v1193 = vld [vmem:[#allocation5 + $0x158] sm:$0xf]
        %v1194 = vld [vmem:[#allocation5 + $0x15c] sm:$0xf]
        %v1195 = vld [vmem:[#allocation5 + $0x160] sm:$0xf]
        %v1196 = vld [vmem:[#allocation5 + $0x164] sm:$0xf]
        %v1197 = vld [vmem:[#allocation5 + $0x168] sm:$0xf]
        %v1198 = vld [vmem:[#allocation5 + $0x16c] sm:$0xf]
        %v1199 = vld [vmem:[#allocation5 + $0x170] sm:$0xf]
        %v1200 = vld [vmem:[#allocation5 + $0x174] sm:$0xf]
        %v1201 = vld [vmem:[#allocation5 + $0x178] sm:$0xf]
        %v1202 = vld [vmem:[#allocation5 + $0x17c] sm:$0xf]
        %v1203 = vld [vmem:[#allocation5 + $0x180] sm:$0xf]
        %v1204 = vld [vmem:[#allocation5 + $0x184] sm:$0xf]
        %v1205 = vld [vmem:[#allocation5 + $0x188] sm:$0xf]
        %v1206 = vld [vmem:[#allocation5 + $0x18c] sm:$0xf]
        %v1207 = vld [vmem:[#allocation5 + $0x190] sm:$0xf]
        %v1208 = vld [vmem:[#allocation5 + $0x194] sm:$0xf]
        %v1209 = vld [vmem:[#allocation5 + $0x198] sm:$0xf]
        %v1210 = vld [vmem:[#allocation5 + $0x19c] sm:$0xf]
        %v1211 = vld [vmem:[#allocation5 + $0x1a0] sm:$0xf]
        %v1212 = vld [vmem:[#allocation5 + $0x1a4] sm:$0xf]
        %v1213 = vld [vmem:[#allocation5 + $0x1a8] sm:$0xf]
        %v1214 = vld [vmem:[#allocation5 + $0x1ac] sm:$0xf]
        %v1215 = vld [vmem:[#allocation5 + $0x1b0] sm:$0xf]
        %v1216 = vld [vmem:[#allocation5 + $0x1b4] sm:$0xf]
        %v1217 = vld [vmem:[#allocation5 + $0x1b8] sm:$0xf]
        %v1218 = vld [vmem:[#allocation5 + $0x1bc] sm:$0xf]
        %v1219 = vld [vmem:[#allocation5 + $0x1c0] sm:$0xf]
        %v1220 = vld [vmem:[#allocation5 + $0x1c4] sm:$0xf]
        %v1221 = vld [vmem:[#allocation5 + $0x1c8] sm:$0xf]
        %v1222 = vld [vmem:[#allocation5 + $0x1cc] sm:$0xf]
        %v1223 = vld [vmem:[#allocation5 + $0x1d0] sm:$0xf]
        %v1224 = vld [vmem:[#allocation5 + $0x1d4] sm:$0xf]
        %v1225 = vld [vmem:[#allocation5 + $0x1d8] sm:$0xf]
        %v1226 = vld [vmem:[#allocation5 + $0x1dc] sm:$0xf]
        %v1227 = vld [vmem:[#allocation5 + $0x1e0] sm:$0xf]
        %v1228 = vld [vmem:[#allocation5 + $0x1e4] sm:$0xf]
        %v1229 = vld [vmem:[#allocation5 + $0x1e8] sm:$0xf]
        %v1230 = vld [vmem:[#allocation5 + $0x1ec] sm:$0xf]
        %v1231 = vld [vmem:[#allocation5 + $0x1f0] sm:$0xf]
        %v1232 = vld [vmem:[#allocation5 + $0x1f4] sm:$0xf]
        %v1233 = vld [vmem:[#allocation5 + $0x1f8] sm:$0xf]
        %v1234 = vld [vmem:[#allocation5 + $0x1fc] sm:$0xf]
        %v1235 = vld [vmem:[#allocation5 + $0x200] sm:$0xf]
        %v1236 = vld [vmem:[#allocation5 + $0x204] sm:$0xf]
        %v1237 = vld [vmem:[#allocation5 + $0x208] sm:$0xf]
        %v1238 = vld [vmem:[#allocation5 + $0x20c] sm:$0xf]
        %v1239 = vld [vmem:[#allocation5 + $0x210] sm:$0xf]
        %v1240 = vld [vmem:[#allocation5 + $0x214] sm:$0xf]
        %v1241 = vld [vmem:[#allocation5 + $0x218] sm:$0xf]
        %v1242 = vld [vmem:[#allocation5 + $0x21c] sm:$0xf]
        %v1243 = vld [vmem:[#allocation5 + $0x220] sm:$0xf]
        %v1244 = vld [vmem:[#allocation5 + $0x224] sm:$0xf]
        %v1245 = vld [vmem:[#allocation5 + $0x228] sm:$0xf]
        %v1246 = vld [vmem:[#allocation5 + $0x22c] sm:$0xf]
        %v1247 = vld [vmem:[#allocation5 + $0x230] sm:$0xf]
        %v1248 = vld [vmem:[#allocation5 + $0x234] sm:$0xf]
        %v1249 = vld [vmem:[#allocation5 + $0x238] sm:$0xf]
        %v1250 = vld [vmem:[#allocation5 + $0x23c] sm:$0xf]
        %v1251 = vld [vmem:[%s2] sm:$0x1]
        %v1253 = vlaneseq
        %v1254 = vshrl.u32 %v1253, 7
        %v1255 = vsub.s32 0, %v1254
        %v1256 = vrot.slane %v1251, %v1255
        %v1258 = vpack.c.b16 %v1011, %v1008
        %v1259 = vpack.c.b16 %v1012, %v1009
        %v1260 = vpack.c.b16 %v1013, %v1010
        %v1261 = vpack.c.b16 %v1014, %v1011
        %v1262 = vpack.c.b16 %v1015, %v1012
        %v1263 = vpack.c.b16 %v1016, %v1013
        %v1264 = vpack.c.b16 %v1017, %v1014
        %v1265 = vpack.c.b16 %v1018, %v1015
        %v1266 = vpack.c.b16 %v1019, %v1016
        %v1267 = vpack.c.b16 %v1020, %v1017
        %v1268 = vpack.c.b16 %v1021, %v1018
        %v1269 = vpack.c.b16 %v1022, %v1019
        %v1270 = vpack.c.b16 %v1023, %v1020
        %v1271 = vpack.c.b16 %v1024, %v1021
        %v1272 = vpack.c.b16 %v1025, %v1022
        %v1273 = vpack.c.b16 %v1026, %v1023
        %v1274 = vpack.c.b16 %v1027, %v1024
        %v1275 = vpack.c.b16 %v1028, %v1025
        %v1276 = vpack.c.b16 %v1029, %v1026
        %v1277 = vpack.c.b16 %v1030, %v1027
        %v1278 = vpack.c.b16 %v1031, %v1028
        %v1279 = vpack.c.b16 %v1032, %v1029
        %v1280 = vpack.c.b16 %v1033, %v1030
        %v1281 = vpack.c.b16 %v1034, %v1031
        %v1282 = vpack.c.b16 %v1008, %v1032
        %v1283 = vpack.c.b16 %v1009, %v1033
        %v1284 = vpack.c.b16 %v1010, %v1034
        %v1285 = vpack.c.b16 %v1035, %v1008
        %v1286 = vpack.c.b16 %v1036, %v1009
        %v1287 = vpack.c.b16 %v1037, %v1010
        %v1288 = vpack.c.b16 %v1038, %v1035
        %v1289 = vpack.c.b16 %v1039, %v1036
        %v1290 = vpack.c.b16 %v1040, %v1037
        %v1291 = vpack.c.b16 %v1041, %v1038
        %v1292 = vpack.c.b16 %v1042, %v1039
        %v1293 = vpack.c.b16 %v1043, %v1040
        %v1294 = vpack.c.b16 %v1044, %v1041
        %v1295 = vpack.c.b16 %v1045, %v1042
        %v1296 = vpack.c.b16 %v1046, %v1043
        %v1297 = vpack.c.b16 %v1047, %v1044
        %v1298 = vpack.c.b16 %v1048, %v1045
        %v1299 = vpack.c.b16 %v1049, %v1046
        %v1300 = vpack.c.b16 %v1050, %v1047
        %v1301 = vpack.c.b16 %v1051, %v1048
        %v1302 = vpack.c.b16 %v1052, %v1049
        %v1303 = vpack.c.b16 %v1053, %v1050
        %v1304 = vpack.c.b16 %v1054, %v1051
        %v1305 = vpack.c.b16 %v1055, %v1052
        %v1306 = vpack.c.b16 %v1056, %v1053
        %v1307 = vpack.c.b16 %v1057, %v1054
        %v1308 = vpack.c.b16 %v1058, %v1055
        %v1309 = vpack.c.b16 %v1008, %v1056
        %v1310 = vpack.c.b16 %v1009, %v1057
        %v1311 = vpack.c.b16 %v1010, %v1058
        %v1312 = vpack.c.b16 %v1059, %v1008
        %v1313 = vpack.c.b16 %v1060, %v1009
        %v1314 = vpack.c.b16 %v1061, %v1010
        %v1315 = vpack.c.b16 %v1062, %v1059
        %v1316 = vpack.c.b16 %v1063, %v1060
        %v1317 = vpack.c.b16 %v1064, %v1061
        %v1318 = vpack.c.b16 %v1065, %v1062
        %v1319 = vpack.c.b16 %v1066, %v1063
        %v1320 = vpack.c.b16 %v1067, %v1064
        %v1321 = vpack.c.b16 %v1068, %v1065
        %v1322 = vpack.c.b16 %v1069, %v1066
        %v1323 = vpack.c.b16 %v1070, %v1067
        %v1324 = vpack.c.b16 %v1071, %v1068
        %v1325 = vpack.c.b16 %v1072, %v1069
        %v1326 = vpack.c.b16 %v1073, %v1070
        %v1327 = vpack.c.b16 %v1074, %v1071
        %v1328 = vpack.c.b16 %v1075, %v1072
        %v1329 = vpack.c.b16 %v1076, %v1073
        %v1330 = vpack.c.b16 %v1077, %v1074
        %v1331 = vpack.c.b16 %v1078, %v1075
        %v1332 = vpack.c.b16 %v1079, %v1076
        %v1333 = vpack.c.b16 %v1080, %v1077
        %v1334 = vpack.c.b16 %v1081, %v1078
        %v1335 = vpack.c.b16 %v1082, %v1079
        %v1336 = vpack.c.b16 %v1008, %v1080
        %v1337 = vpack.c.b16 %v1009, %v1081
        %v1338 = vpack.c.b16 %v1010, %v1082
        %v1339 = vpack.c.b16 %v1083, %v1008
        %v1340 = vpack.c.b16 %v1084, %v1009
        %v1341 = vpack.c.b16 %v1085, %v1010
        %v1342 = vpack.c.b16 %v1086, %v1083
        %v1343 = vpack.c.b16 %v1087, %v1084
        %v1344 = vpack.c.b16 %v1088, %v1085
        %v1345 = vpack.c.b16 %v1089, %v1086
        %v1346 = vpack.c.b16 %v1090, %v1087
        %v1347 = vpack.c.b16 %v1091, %v1088
        %v1348 = vpack.c.b16 %v1092, %v1089
        %v1349 = vpack.c.b16 %v1093, %v1090
        %v1350 = vpack.c.b16 %v1094, %v1091
        %v1351 = vpack.c.b16 %v1095, %v1092
        %v1352 = vpack.c.b16 %v1096, %v1093
        %v1353 = vpack.c.b16 %v1097, %v1094
        %v1354 = vpack.c.b16 %v1098, %v1095
        %v1355 = vpack.c.b16 %v1099, %v1096
        %v1356 = vpack.c.b16 %v1100, %v1097
        %v1357 = vpack.c.b16 %v1101, %v1098
        %v1358 = vpack.c.b16 %v1102, %v1099
        %v1359 = vpack.c.b16 %v1103, %v1100
        %v1360 = vpack.c.b16 %v1104, %v1101
        %v1361 = vpack.c.b16 %v1105, %v1102
        %v1362 = vpack.c.b16 %v1106, %v1103
        %v1363 = vpack.c.b16 %v1008, %v1104
        %v1364 = vpack.c.b16 %v1009, %v1105
        %v1365 = vpack.c.b16 %v1010, %v1106
        %v1618 = vunpack.c.l.b16 %v1107
        %v1619 = vunpack.c.l.b16 %v1108
        %v1620 = vunpack.c.l.b16 %v1109
        %v1621 = vunpack.c.l.b16 %v1110
        %v1622 = vunpack.c.l.b16 %v1111
        %v1623 = vunpack.c.l.b16 %v1112
        %v1624 = vunpack.c.l.b16 %v1113
        %v1625 = vunpack.c.l.b16 %v1114
        %v1626 = vunpack.c.l.b16 %v1115
        %v1627 = vunpack.c.l.b16 %v1116
        %v1628 = vunpack.c.l.b16 %v1117
        %v1629 = vunpack.c.l.b16 %v1118
        %v1630 = vunpack.c.l.b16 %v1119
        %v1631 = vunpack.c.l.b16 %v1120
        %v1632 = vunpack.c.l.b16 %v1121
        %v1633 = vunpack.c.l.b16 %v1122
        %v1634 = vunpack.c.l.b16 %v1123
        %v1635 = vunpack.c.l.b16 %v1124
        %v1636 = vunpack.c.l.b16 %v1125
        %v1637 = vunpack.c.l.b16 %v1126
        %v1638 = vunpack.c.l.b16 %v1127
        %v1639 = vunpack.c.l.b16 %v1128
        %v1640 = vunpack.c.l.b16 %v1129
        %v1641 = vunpack.c.l.b16 %v1130
        %v1642 = vunpack.c.l.b16 %v1131
        %v1643 = vunpack.c.l.b16 %v1132
        %v1644 = vunpack.c.l.b16 %v1133
        %v1645 = vunpack.c.l.b16 %v1134
        %v1646 = vunpack.c.l.b16 %v1135
        %v1647 = vunpack.c.l.b16 %v1136
        %v1648 = vunpack.c.l.b16 %v1137
        %v1649 = vunpack.c.l.b16 %v1138
        %v1650 = vunpack.c.l.b16 %v1139
        %v1651 = vunpack.c.l.b16 %v1140
        %v1652 = vunpack.c.l.b16 %v1141
        %v1653 = vunpack.c.l.b16 %v1142
        %v1654 = vunpack.c.l.b16 %v1143
        %v1655 = vunpack.c.l.b16 %v1144
        %v1656 = vunpack.c.l.b16 %v1145
        %v1657 = vunpack.c.l.b16 %v1146
        %v1658 = vunpack.c.l.b16 %v1147
        %v1659 = vunpack.c.l.b16 %v1148
        %v1660 = vunpack.c.l.b16 %v1149
        %v1661 = vunpack.c.l.b16 %v1150
        %v1662 = vunpack.c.l.b16 %v1151
        %v1663 = vunpack.c.l.b16 %v1152
        %v1664 = vunpack.c.l.b16 %v1153
        %v1665 = vunpack.c.l.b16 %v1154
        %v1666 = vunpack.c.l.b16 %v1155
        %v1667 = vunpack.c.l.b16 %v1156
        %v1668 = vunpack.c.l.b16 %v1157
        %v1669 = vunpack.c.l.b16 %v1158
        %v1670 = vunpack.c.l.b16 %v1159
        %v1671 = vunpack.c.l.b16 %v1160
        %v1672 = vunpack.c.l.b16 %v1161
        %v1673 = vunpack.c.l.b16 %v1162
        %v1674 = vunpack.c.l.b16 %v1163
        %v1675 = vunpack.c.l.b16 %v1164
        %v1676 = vunpack.c.l.b16 %v1165
        %v1677 = vunpack.c.l.b16 %v1166
        %v1678 = vunpack.c.l.b16 %v1167
        %v1679 = vunpack.c.l.b16 %v1168
        %v1680 = vunpack.c.l.b16 %v1169
        %v1681 = vunpack.c.l.b16 %v1170
        %v1682 = vunpack.c.l.b16 %v1171
        %v1683 = vunpack.c.l.b16 %v1172
        %v1684 = vunpack.c.l.b16 %v1173
        %v1685 = vunpack.c.l.b16 %v1174
        %v1686 = vunpack.c.l.b16 %v1175
        %v1687 = vunpack.c.l.b16 %v1176
        %v1688 = vunpack.c.l.b16 %v1177
        %v1689 = vunpack.c.l.b16 %v1178
        %v1690 = vunpack.c.l.b16 %v1179
        %v1691 = vunpack.c.l.b16 %v1180
        %v1692 = vunpack.c.l.b16 %v1181
        %v1693 = vunpack.c.l.b16 %v1182
        %v1694 = vunpack.c.l.b16 %v1183
        %v1695 = vunpack.c.l.b16 %v1184
        %v1696 = vunpack.c.l.b16 %v1185
        %v1697 = vunpack.c.l.b16 %v1186
        %v1698 = vunpack.c.l.b16 %v1187
        %v1699 = vunpack.c.l.b16 %v1188
        %v1700 = vunpack.c.l.b16 %v1189
        %v1701 = vunpack.c.l.b16 %v1190
        %v1702 = vunpack.c.l.b16 %v1191
        %v1703 = vunpack.c.l.b16 %v1192
        %v1704 = vunpack.c.l.b16 %v1193
        %v1705 = vunpack.c.l.b16 %v1194
        %v1706 = vunpack.c.l.b16 %v1195
        %v1707 = vunpack.c.l.b16 %v1196
        %v1708 = vunpack.c.l.b16 %v1197
        %v1709 = vunpack.c.l.b16 %v1198
        %v1710 = vunpack.c.l.b16 %v1199
        %v1711 = vunpack.c.l.b16 %v1200
        %v1712 = vunpack.c.l.b16 %v1201
        %v1713 = vunpack.c.l.b16 %v1202
        %v1714 = vunpack.c.l.b16 %v1203
        %v1715 = vunpack.c.l.b16 %v1204
        %v1716 = vunpack.c.l.b16 %v1205
        %v1717 = vunpack.c.l.b16 %v1206
        %v1718 = vunpack.c.l.b16 %v1207
        %v1719 = vunpack.c.l.b16 %v1208
        %v1720 = vunpack.c.l.b16 %v1209
        %v1721 = vunpack.c.l.b16 %v1210
        %v1722 = vunpack.c.l.b16 %v1211
        %v1723 = vunpack.c.l.b16 %v1212
        %v1724 = vunpack.c.l.b16 %v1213
        %v1725 = vunpack.c.l.b16 %v1214
        %v1726 = vunpack.c.l.b16 %v1215
        %v1727 = vunpack.c.l.b16 %v1216
        %v1728 = vunpack.c.l.b16 %v1217
        %v1729 = vunpack.c.l.b16 %v1218
        %v1730 = vunpack.c.l.b16 %v1219
        %v1731 = vunpack.c.l.b16 %v1220
        %v1732 = vunpack.c.l.b16 %v1221
        %v1733 = vunpack.c.l.b16 %v1222
        %v1734 = vunpack.c.l.b16 %v1223
        %v1735 = vunpack.c.l.b16 %v1224
        %v1736 = vunpack.c.l.b16 %v1225
        %v1737 = vunpack.c.l.b16 %v1226
        %v1738 = vunpack.c.l.b16 %v1227
        %v1739 = vunpack.c.l.b16 %v1228
        %v1740 = vunpack.c.l.b16 %v1229
        %v1741 = vunpack.c.l.b16 %v1230
        %v1742 = vunpack.c.l.b16 %v1231
        %v1743 = vunpack.c.l.b16 %v1232
        %v1744 = vunpack.c.l.b16 %v1233
        %v1745 = vunpack.c.l.b16 %v1234
        %v1746 = vunpack.c.l.b16 %v1235
        %v1747 = vunpack.c.l.b16 %v1236
        %v1748 = vunpack.c.l.b16 %v1237
        %v1749 = vunpack.c.l.b16 %v1238
        %v1750 = vunpack.c.l.b16 %v1239
        %v1751 = vunpack.c.l.b16 %v1240
        %v1752 = vunpack.c.l.b16 %v1241
        %v1753 = vunpack.c.l.b16 %v1242
        %v1754 = vunpack.c.l.b16 %v1243
        %v1755 = vunpack.c.l.b16 %v1244
        %v1756 = vunpack.c.l.b16 %v1245
        %v1757 = vunpack.c.l.b16 %v1246
        %v1758 = vunpack.c.l.b16 %v1247
        %v1759 = vunpack.c.l.b16 %v1248
        %v1760 = vunpack.c.l.b16 %v1249
        %v1761 = vunpack.c.l.b16 %v1250
        %v1762 = vpack.c.b16 %v1619, %v1618
        %v1763 = vpack.c.b16 %v1621, %v1620
        %v1764 = vpack.c.b16 %v1623, %v1622
        %v1765 = vpack.c.b16 %v1625, %v1624
        %v1766 = vpack.c.b16 %v1627, %v1626
        %v1767 = vpack.c.b16 %v1629, %v1628
        %v1768 = vpack.c.b16 %v1631, %v1630
        %v1769 = vpack.c.b16 %v1633, %v1632
        %v1770 = vpack.c.b16 %v1635, %v1634
        %v1771 = vpack.c.b16 %v1637, %v1636
        %v1772 = vpack.c.b16 %v1639, %v1638
        %v1773 = vpack.c.b16 %v1641, %v1640
        %v1774 = vpack.c.b16 %v1643, %v1642
        %v1775 = vpack.c.b16 %v1645, %v1644
        %v1776 = vpack.c.b16 %v1647, %v1646
        %v1777 = vpack.c.b16 %v1649, %v1648
        %v1778 = vpack.c.b16 %v1651, %v1650
        %v1779 = vpack.c.b16 %v1653, %v1652
        %v1780 = vpack.c.b16 %v1655, %v1654
        %v1781 = vpack.c.b16 %v1657, %v1656
        %v1782 = vpack.c.b16 %v1659, %v1658
        %v1783 = vpack.c.b16 %v1661, %v1660
        %v1784 = vpack.c.b16 %v1663, %v1662
        %v1785 = vpack.c.b16 %v1665, %v1664
        %v1786 = vpack.c.b16 %v1667, %v1666
        %v1787 = vpack.c.b16 %v1669, %v1668
        %v1788 = vpack.c.b16 %v1671, %v1670
        %v1789 = vpack.c.b16 %v1673, %v1672
        %v1790 = vpack.c.b16 %v1675, %v1674
        %v1791 = vpack.c.b16 %v1677, %v1676
        %v1792 = vpack.c.b16 %v1679, %v1678
        %v1793 = vpack.c.b16 %v1681, %v1680
        %v1794 = vpack.c.b16 %v1683, %v1682
        %v1795 = vpack.c.b16 %v1685, %v1684
        %v1796 = vpack.c.b16 %v1687, %v1686
        %v1797 = vpack.c.b16 %v1689, %v1688
        %v1798 = vpack.c.b16 %v1691, %v1690
        %v1799 = vpack.c.b16 %v1693, %v1692
        %v1800 = vpack.c.b16 %v1695, %v1694
        %v1801 = vpack.c.b16 %v1697, %v1696
        %v1802 = vpack.c.b16 %v1699, %v1698
        %v1803 = vpack.c.b16 %v1701, %v1700
        %v1804 = vpack.c.b16 %v1703, %v1702
        %v1805 = vpack.c.b16 %v1705, %v1704
        %v1806 = vpack.c.b16 %v1707, %v1706
        %v1807 = vpack.c.b16 %v1709, %v1708
        %v1808 = vpack.c.b16 %v1711, %v1710
        %v1809 = vpack.c.b16 %v1713, %v1712
        %v1810 = vpack.c.b16 %v1715, %v1714
        %v1811 = vpack.c.b16 %v1717, %v1716
        %v1812 = vpack.c.b16 %v1719, %v1718
        %v1813 = vpack.c.b16 %v1721, %v1720
        %v1814 = vpack.c.b16 %v1723, %v1722
        %v1815 = vpack.c.b16 %v1725, %v1724
        %v1816 = vpack.c.b16 %v1727, %v1726
        %v1817 = vpack.c.b16 %v1729, %v1728
        %v1818 = vpack.c.b16 %v1731, %v1730
        %v1819 = vpack.c.b16 %v1733, %v1732
        %v1820 = vpack.c.b16 %v1735, %v1734
        %v1821 = vpack.c.b16 %v1737, %v1736
        %v1822 = vpack.c.b16 %v1739, %v1738
        %v1823 = vpack.c.b16 %v1741, %v1740
        %v1824 = vpack.c.b16 %v1743, %v1742
        %v1825 = vpack.c.b16 %v1745, %v1744
        %v1826 = vpack.c.b16 %v1747, %v1746
        %v1827 = vpack.c.b16 %v1749, %v1748
        %v1828 = vpack.c.b16 %v1751, %v1750
        %v1829 = vpack.c.b16 %v1753, %v1752
        %v1830 = vpack.c.b16 %v1755, %v1754
        %v1831 = vpack.c.b16 %v1757, %v1756
        %v1832 = vpack.c.b16 %v1759, %v1758
        %v1833 = vpack.c.b16 %v1761, %v1760
        %1906 = vmatprep.subr.bf16.mxu0 0
        %1907 = vmatpush1.bf16.msra.mxu0 %v1769
        %1908 = vmatprep.subr.bf16.mxu0 0
        %1909 = vmatpush1.bf16.msra.mxu0 %v1768
        %1910 = vmatprep.subr.bf16.mxu0 0
        %1911 = vmatpush1.bf16.msra.mxu0 %v1767
        %1912 = vmatprep.subr.bf16.mxu0 0
        %1913 = vmatpush1.bf16.msra.mxu0 %v1766
        %1914 = vmatprep.subr.bf16.mxu0 0
        %1915 = vmatpush1.bf16.msra.mxu0 %v1765
        %1916 = vmatprep.subr.bf16.mxu0 0
        %1917 = vmatpush1.bf16.msra.mxu0 %v1764
        %1918 = vmatprep.subr.bf16.mxu0 0
        %1919 = vmatpush1.bf16.msra.mxu0 %v1763
        %1920 = vmatprep.subr.bf16.mxu0 0
        %1921 = vmatpush1.bf16.msra.mxu0 %v1762
        %1922 = vmatprep.subr.bf16.mxu0 0
        %1923 = vmatpush2.bf16.msra.mxu0 %v1777
        %1924 = vmatprep.subr.bf16.mxu0 0
        %1925 = vmatpush2.bf16.msra.mxu0 %v1776
        %1926 = vmatprep.subr.bf16.mxu0 0
        %1927 = vmatpush2.bf16.msra.mxu0 %v1775
        %1928 = vmatprep.subr.bf16.mxu0 0
        %1929 = vmatpush2.bf16.msra.mxu0 %v1774
        %1930 = vmatprep.subr.bf16.mxu0 0
        %1931 = vmatpush2.bf16.msra.mxu0 %v1773
        %1932 = vmatprep.subr.bf16.mxu0 0
        %1933 = vmatpush2.bf16.msra.mxu0 %v1772
        %1934 = vmatprep.subr.bf16.mxu0 0
        %1935 = vmatpush2.bf16.msra.mxu0 %v1771
        %1936 = vmatprep.subr.bf16.mxu0 0
        %1937 = vmatpush2.bf16.msra.mxu0 %v1770
        %1938 = vmatprep.mubr.bf16.mxu0 %v1259
        %1939 = vmatmul.mubr.bf16.gmra.mxu0 %v1258
        %v1940 = vpop.f32.mrf.mxu0
        %v1941 = vadd.f32 %v1256, %v1940
        %v1942 = vpop.f32.mrf.mxu0
        %v1943 = vpop.f32.mrf.mxu0
        %v1944 = vadd.f32 %v1256, %v1943
        %v1945 = vpop.f32.mrf.mxu0
        %1946 = vmatprep.mubr.bf16.mxu0 %v1265
        %1947 = vmatmul.mubr.bf16.gmra.mxu0 %v1264
        %v1948 = vpop.f32.mrf.mxu0
        %v1949 = vadd.f32 %v1256, %v1948
        %v1950 = vpop.f32.mrf.mxu0
        %v1951 = vpop.f32.mrf.mxu0
        %v1952 = vadd.f32 %v1256, %v1951
        %v1953 = vpop.f32.mrf.mxu0
        %1954 = vmatprep.mubr.bf16.mxu0 %v1271
        %1955 = vmatmul.mubr.bf16.gmra.mxu0 %v1270
        %v1956 = vpop.f32.mrf.mxu0
        %v1957 = vadd.f32 %v1256, %v1956
        %v1958 = vpop.f32.mrf.mxu0
        %v1959 = vpop.f32.mrf.mxu0
        %v1960 = vadd.f32 %v1256, %v1959
        %v1961 = vpop.f32.mrf.mxu0
        %1962 = vmatprep.mubr.bf16.mxu0 %v1277
        %1963 = vmatmul.mubr.bf16.gmra.mxu0 %v1276
        %v1964 = vpop.f32.mrf.mxu0
        %v1965 = vadd.f32 %v1256, %v1964
        %v1966 = vpop.f32.mrf.mxu0
        %v1967 = vpop.f32.mrf.mxu0
        %v1968 = vadd.f32 %v1256, %v1967
        %v1969 = vpop.f32.mrf.mxu0
        %1970 = vmatprep.mubr.bf16.mxu0 %v1286
        %1971 = vmatmul.mubr.bf16.gmra.mxu0 %v1285
        %v1972 = vpop.f32.mrf.mxu0
        %v1973 = vadd.f32 %v1256, %v1972
        %v1974 = vpop.f32.mrf.mxu0
        %v1975 = vpop.f32.mrf.mxu0
        %v1976 = vadd.f32 %v1256, %v1975
        %v1977 = vpop.f32.mrf.mxu0
        %1978 = vmatprep.mubr.bf16.mxu0 %v1292
        %1979 = vmatmul.mubr.bf16.gmra.mxu0 %v1291
        %v1980 = vpop.f32.mrf.mxu0
        %v1981 = vadd.f32 %v1256, %v1980
        %v1982 = vpop.f32.mrf.mxu0
        %v1983 = vpop.f32.mrf.mxu0
        %v1984 = vadd.f32 %v1256, %v1983
        %v1985 = vpop.f32.mrf.mxu0
        %1986 = vmatprep.mubr.bf16.mxu0 %v1298
        %1987 = vmatmul.mubr.bf16.gmra.mxu0 %v1297
        %v1988 = vpop.f32.mrf.mxu0
        %v1989 = vadd.f32 %v1256, %v1988
        %v1990 = vpop.f32.mrf.mxu0
        %v1991 = vpop.f32.mrf.mxu0
        %v1992 = vadd.f32 %v1256, %v1991
        %v1993 = vpop.f32.mrf.mxu0
        %1994 = vmatprep.mubr.bf16.mxu0 %v1304
        %1995 = vmatmul.mubr.bf16.gmra.mxu0 %v1303
        %v1996 = vpop.f32.mrf.mxu0
        %v1997 = vadd.f32 %v1256, %v1996
        %v1998 = vpop.f32.mrf.mxu0
        %v1999 = vpop.f32.mrf.mxu0
        %v2000 = vadd.f32 %v1256, %v1999
        %v2001 = vpop.f32.mrf.mxu0
        %2002 = vmatprep.mubr.bf16.mxu0 %v1313
        %2003 = vmatmul.mubr.bf16.gmra.mxu0 %v1312
        %v2004 = vpop.f32.mrf.mxu0
        %v2005 = vadd.f32 %v1256, %v2004
        %v2006 = vpop.f32.mrf.mxu0
        %v2007 = vpop.f32.mrf.mxu0
        %v2008 = vadd.f32 %v1256, %v2007
        %v2009 = vpop.f32.mrf.mxu0
        %2010 = vmatprep.mubr.bf16.mxu0 %v1319
        %2011 = vmatmul.mubr.bf16.gmra.mxu0 %v1318
        %v2012 = vpop.f32.mrf.mxu0
        %v2013 = vadd.f32 %v1256, %v2012
        %v2014 = vpop.f32.mrf.mxu0
        %v2015 = vpop.f32.mrf.mxu0
        %v2016 = vadd.f32 %v1256, %v2015
        %v2017 = vpop.f32.mrf.mxu0
        %2018 = vmatprep.mubr.bf16.mxu0 %v1325
        %2019 = vmatmul.mubr.bf16.gmra.mxu0 %v1324
        %v2020 = vpop.f32.mrf.mxu0
        %v2021 = vadd.f32 %v1256, %v2020
        %v2022 = vpop.f32.mrf.mxu0
        %v2023 = vpop.f32.mrf.mxu0
        %v2024 = vadd.f32 %v1256, %v2023
        %v2025 = vpop.f32.mrf.mxu0
        %2026 = vmatprep.mubr.bf16.mxu0 %v1331
        %2027 = vmatmul.mubr.bf16.gmra.mxu0 %v1330
        %v2028 = vpop.f32.mrf.mxu0
        %v2029 = vadd.f32 %v1256, %v2028
        %v2030 = vpop.f32.mrf.mxu0
        %v2031 = vpop.f32.mrf.mxu0
        %v2032 = vadd.f32 %v1256, %v2031
        %v2033 = vpop.f32.mrf.mxu0
        %2034 = vmatprep.mubr.bf16.mxu0 %v1340
        %2035 = vmatmul.mubr.bf16.gmra.mxu0 %v1339
        %v2036 = vpop.f32.mrf.mxu0
        %v2037 = vadd.f32 %v1256, %v2036
        %v2038 = vpop.f32.mrf.mxu0
        %v2039 = vpop.f32.mrf.mxu0
        %v2040 = vadd.f32 %v1256, %v2039
        %v2041 = vpop.f32.mrf.mxu0
        %2042 = vmatprep.mubr.bf16.mxu0 %v1346
        %2043 = vmatmul.mubr.bf16.gmra.mxu0 %v1345
        %v2044 = vpop.f32.mrf.mxu0
        %v2045 = vadd.f32 %v1256, %v2044
        %v2046 = vpop.f32.mrf.mxu0
        %v2047 = vpop.f32.mrf.mxu0
        %v2048 = vadd.f32 %v1256, %v2047
        %v2049 = vpop.f32.mrf.mxu0
        %2050 = vmatprep.mubr.bf16.mxu0 %v1352
        %2051 = vmatmul.mubr.bf16.gmra.mxu0 %v1351
        %v2052 = vpop.f32.mrf.mxu0
        %v2053 = vadd.f32 %v1256, %v2052
        %v2054 = vpop.f32.mrf.mxu0
        %v2055 = vpop.f32.mrf.mxu0
        %v2056 = vadd.f32 %v1256, %v2055
        %v2057 = vpop.f32.mrf.mxu0
        %2058 = vmatprep.mubr.bf16.mxu0 %v1358
        %2059 = vmatmul.mubr.bf16.gmra.mxu0 %v1357
        %v2060 = vpop.f32.mrf.mxu0
        %v2061 = vadd.f32 %v1256, %v2060
        %v2062 = vpop.f32.mrf.mxu0
        %v2063 = vpop.f32.mrf.mxu0
        %v2064 = vadd.f32 %v1256, %v2063
        %v2065 = vpop.f32.mrf.mxu0
        %2066 = vdwg.mxu0
        %2067 = vmatprep.subr.bf16.mxu0 0
        %2068 = vmatpush1.bf16.msra.mxu0 %v1785
        %2069 = vmatprep.subr.bf16.mxu0 0
        %2070 = vmatpush1.bf16.msra.mxu0 %v1784
        %2071 = vmatprep.subr.bf16.mxu0 0
        %2072 = vmatpush1.bf16.msra.mxu0 %v1783
        %2073 = vmatprep.subr.bf16.mxu0 0
        %2074 = vmatpush1.bf16.msra.mxu0 %v1782
        %2075 = vmatprep.subr.bf16.mxu0 0
        %2076 = vmatpush1.bf16.msra.mxu0 %v1781
        %2077 = vmatprep.subr.bf16.mxu0 0
        %2078 = vmatpush1.bf16.msra.mxu0 %v1780
        %2079 = vmatprep.subr.bf16.mxu0 0
        %2080 = vmatpush1.bf16.msra.mxu0 %v1779
        %2081 = vmatprep.subr.bf16.mxu0 0
        %2082 = vmatpush1.bf16.msra.mxu0 %v1778
        %2083 = vmatprep.subr.bf16.mxu0 0
        %2084 = vmatpush2.bf16.msra.mxu0 %v1793
        %2085 = vmatprep.subr.bf16.mxu0 0
        %2086 = vmatpush2.bf16.msra.mxu0 %v1792
        %2087 = vmatprep.subr.bf16.mxu0 0
        %2088 = vmatpush2.bf16.msra.mxu0 %v1791
        %2089 = vmatprep.subr.bf16.mxu0 0
        %2090 = vmatpush2.bf16.msra.mxu0 %v1790
        %2091 = vmatprep.subr.bf16.mxu0 0
        %2092 = vmatpush2.bf16.msra.mxu0 %v1789
        %2093 = vmatprep.subr.bf16.mxu0 0
        %2094 = vmatpush2.bf16.msra.mxu0 %v1788
        %2095 = vmatprep.subr.bf16.mxu0 0
        %2096 = vmatpush2.bf16.msra.mxu0 %v1787
        %2097 = vmatprep.subr.bf16.mxu0 0
        %2098 = vmatpush2.bf16.msra.mxu0 %v1786
        %2099 = vmatprep.mubr.bf16.mxu0 %v1261
        %2100 = vmatmul.mubr.bf16.gmra.mxu0 %v1260
        %v2101 = vpop.f32.mrf.mxu0
        %v2102 = vadd.f32 %v1941, %v2101
        %v2103 = vpop.f32.mrf.mxu0
        %v2104 = vpop.f32.mrf.mxu0
        %v2105 = vadd.f32 %v1944, %v2104
        %v2106 = vpop.f32.mrf.mxu0
        %2107 = vmatprep.mubr.bf16.mxu0 %v1267
        %2108 = vmatmul.mubr.bf16.gmra.mxu0 %v1266
        %v2109 = vpop.f32.mrf.mxu0
        %v2110 = vadd.f32 %v1949, %v2109
        %v2111 = vpop.f32.mrf.mxu0
        %v2112 = vpop.f32.mrf.mxu0
        %v2113 = vadd.f32 %v1952, %v2112
        %v2114 = vpop.f32.mrf.mxu0
        %2115 = vmatprep.mubr.bf16.mxu0 %v1273
        %2116 = vmatmul.mubr.bf16.gmra.mxu0 %v1272
        %v2117 = vpop.f32.mrf.mxu0
        %v2118 = vadd.f32 %v1957, %v2117
        %v2119 = vpop.f32.mrf.mxu0
        %v2120 = vpop.f32.mrf.mxu0
        %v2121 = vadd.f32 %v1960, %v2120
        %v2122 = vpop.f32.mrf.mxu0
        %2123 = vmatprep.mubr.bf16.mxu0 %v1279
        %2124 = vmatmul.mubr.bf16.gmra.mxu0 %v1278
        %v2125 = vpop.f32.mrf.mxu0
        %v2126 = vadd.f32 %v1965, %v2125
        %v2127 = vpop.f32.mrf.mxu0
        %v2128 = vpop.f32.mrf.mxu0
        %v2129 = vadd.f32 %v1968, %v2128
        %v2130 = vpop.f32.mrf.mxu0
        %2131 = vmatprep.mubr.bf16.mxu0 %v1288
        %2132 = vmatmul.mubr.bf16.gmra.mxu0 %v1287
        %v2133 = vpop.f32.mrf.mxu0
        %v2134 = vadd.f32 %v1973, %v2133
        %v2135 = vpop.f32.mrf.mxu0
        %v2136 = vpop.f32.mrf.mxu0
        %v2137 = vadd.f32 %v1976, %v2136
        %v2138 = vpop.f32.mrf.mxu0
        %2139 = vmatprep.mubr.bf16.mxu0 %v1294
        %2140 = vmatmul.mubr.bf16.gmra.mxu0 %v1293
        %v2141 = vpop.f32.mrf.mxu0
        %v2142 = vadd.f32 %v1981, %v2141
        %v2143 = vpop.f32.mrf.mxu0
        %v2144 = vpop.f32.mrf.mxu0
        %v2145 = vadd.f32 %v1984, %v2144
        %v2146 = vpop.f32.mrf.mxu0
        %2147 = vmatprep.mubr.bf16.mxu0 %v1300
        %2148 = vmatmul.mubr.bf16.gmra.mxu0 %v1299
        %v2149 = vpop.f32.mrf.mxu0
        %v2150 = vadd.f32 %v1989, %v2149
        %v2151 = vpop.f32.mrf.mxu0
        %v2152 = vpop.f32.mrf.mxu0
        %v2153 = vadd.f32 %v1992, %v2152
        %v2154 = vpop.f32.mrf.mxu0
        %2155 = vmatprep.mubr.bf16.mxu0 %v1306
        %2156 = vmatmul.mubr.bf16.gmra.mxu0 %v1305
        %v2157 = vpop.f32.mrf.mxu0
        %v2158 = vadd.f32 %v1997, %v2157
        %v2159 = vpop.f32.mrf.mxu0
        %v2160 = vpop.f32.mrf.mxu0
        %v2161 = vadd.f32 %v2000, %v2160
        %v2162 = vpop.f32.mrf.mxu0
        %2163 = vmatprep.mubr.bf16.mxu0 %v1315
        %2164 = vmatmul.mubr.bf16.gmra.mxu0 %v1314
        %v2165 = vpop.f32.mrf.mxu0
        %v2166 = vadd.f32 %v2005, %v2165
        %v2167 = vpop.f32.mrf.mxu0
        %v2168 = vpop.f32.mrf.mxu0
        %v2169 = vadd.f32 %v2008, %v2168
        %v2170 = vpop.f32.mrf.mxu0
        %2171 = vmatprep.mubr.bf16.mxu0 %v1321
        %2172 = vmatmul.mubr.bf16.gmra.mxu0 %v1320
        %v2173 = vpop.f32.mrf.mxu0
        %v2174 = vadd.f32 %v2013, %v2173
        %v2175 = vpop.f32.mrf.mxu0
        %v2176 = vpop.f32.mrf.mxu0
        %v2177 = vadd.f32 %v2016, %v2176
        %v2178 = vpop.f32.mrf.mxu0
        %2179 = vmatprep.mubr.bf16.mxu0 %v1327
        %2180 = vmatmul.mubr.bf16.gmra.mxu0 %v1326
        %v2181 = vpop.f32.mrf.mxu0
        %v2182 = vadd.f32 %v2021, %v2181
        %v2183 = vpop.f32.mrf.mxu0
        %v2184 = vpop.f32.mrf.mxu0
        %v2185 = vadd.f32 %v2024, %v2184
        %v2186 = vpop.f32.mrf.mxu0
        %2187 = vmatprep.mubr.bf16.mxu0 %v1333
        %2188 = vmatmul.mubr.bf16.gmra.mxu0 %v1332
        %v2189 = vpop.f32.mrf.mxu0
        %v2190 = vadd.f32 %v2029, %v2189
        %v2191 = vpop.f32.mrf.mxu0
        %v2192 = vpop.f32.mrf.mxu0
        %v2193 = vadd.f32 %v2032, %v2192
        %v2194 = vpop.f32.mrf.mxu0
        %2195 = vmatprep.mubr.bf16.mxu0 %v1342
        %2196 = vmatmul.mubr.bf16.gmra.mxu0 %v1341
        %v2197 = vpop.f32.mrf.mxu0
        %v2198 = vadd.f32 %v2037, %v2197
        %v2199 = vpop.f32.mrf.mxu0
        %v2200 = vpop.f32.mrf.mxu0
        %v2201 = vadd.f32 %v2040, %v2200
        %v2202 = vpop.f32.mrf.mxu0
        %2203 = vmatprep.mubr.bf16.mxu0 %v1348
        %2204 = vmatmul.mubr.bf16.gmra.mxu0 %v1347
        %v2205 = vpop.f32.mrf.mxu0
        %v2206 = vadd.f32 %v2045, %v2205
        %v2207 = vpop.f32.mrf.mxu0
        %v2208 = vpop.f32.mrf.mxu0
        %v2209 = vadd.f32 %v2048, %v2208
        %v2210 = vpop.f32.mrf.mxu0
        %2211 = vmatprep.mubr.bf16.mxu0 %v1354
        %2212 = vmatmul.mubr.bf16.gmra.mxu0 %v1353
        %v2213 = vpop.f32.mrf.mxu0
        %v2214 = vadd.f32 %v2053, %v2213
        %v2215 = vpop.f32.mrf.mxu0
        %v2216 = vpop.f32.mrf.mxu0
        %v2217 = vadd.f32 %v2056, %v2216
        %v2218 = vpop.f32.mrf.mxu0
        %2219 = vmatprep.mubr.bf16.mxu0 %v1360
        %2220 = vmatmul.mubr.bf16.gmra.mxu0 %v1359
        %v2221 = vpop.f32.mrf.mxu0
        %v2222 = vadd.f32 %v2061, %v2221
        %v2223 = vpop.f32.mrf.mxu0
        %v2224 = vpop.f32.mrf.mxu0
        %v2225 = vadd.f32 %v2064, %v2224
        %v2226 = vpop.f32.mrf.mxu0
        %2227 = vdwg.mxu0
        %2228 = vmatprep.subr.bf16.mxu0 0
        %2229 = vmatpush1.bf16.msra.mxu0 %v1801
        %2230 = vmatprep.subr.bf16.mxu0 0
        %2231 = vmatpush1.bf16.msra.mxu0 %v1800
        %2232 = vmatprep.subr.bf16.mxu0 0
        %2233 = vmatpush1.bf16.msra.mxu0 %v1799
        %2234 = vmatprep.subr.bf16.mxu0 0
        %2235 = vmatpush1.bf16.msra.mxu0 %v1798
        %2236 = vmatprep.subr.bf16.mxu0 0
        %2237 = vmatpush1.bf16.msra.mxu0 %v1797
        %2238 = vmatprep.subr.bf16.mxu0 0
        %2239 = vmatpush1.bf16.msra.mxu0 %v1796
        %2240 = vmatprep.subr.bf16.mxu0 0
        %2241 = vmatpush1.bf16.msra.mxu0 %v1795
        %2242 = vmatprep.subr.bf16.mxu0 0
        %2243 = vmatpush1.bf16.msra.mxu0 %v1794
        %2244 = vmatprep.subr.bf16.mxu0 0
        %2245 = vmatpush2.bf16.msra.mxu0 %v1809
        %2246 = vmatprep.subr.bf16.mxu0 0
        %2247 = vmatpush2.bf16.msra.mxu0 %v1808
        %2248 = vmatprep.subr.bf16.mxu0 0
        %2249 = vmatpush2.bf16.msra.mxu0 %v1807
        %2250 = vmatprep.subr.bf16.mxu0 0
        %2251 = vmatpush2.bf16.msra.mxu0 %v1806
        %2252 = vmatprep.subr.bf16.mxu0 0
        %2253 = vmatpush2.bf16.msra.mxu0 %v1805
        %2254 = vmatprep.subr.bf16.mxu0 0
        %2255 = vmatpush2.bf16.msra.mxu0 %v1804
        %2256 = vmatprep.subr.bf16.mxu0 0
        %2257 = vmatpush2.bf16.msra.mxu0 %v1803
        %2258 = vmatprep.subr.bf16.mxu0 0
        %2259 = vmatpush2.bf16.msra.mxu0 %v1802
        %2260 = vmatprep.mubr.bf16.mxu0 %v1263
        %2261 = vmatmul.mubr.bf16.gmra.mxu0 %v1262
        %v2262 = vpop.f32.mrf.mxu0
        %v2263 = vadd.f32 %v2102, %v2262
        %v2264 = vpop.f32.mrf.mxu0
        %v2265 = vpop.f32.mrf.mxu0
        %v2266 = vadd.f32 %v2105, %v2265
        %v2267 = vpop.f32.mrf.mxu0
        %2268 = vmatprep.mubr.bf16.mxu0 %v1269
        %2269 = vmatmul.mubr.bf16.gmra.mxu0 %v1268
        %v2270 = vpop.f32.mrf.mxu0
        %v2271 = vadd.f32 %v2110, %v2270
        %v2272 = vpop.f32.mrf.mxu0
        %v2273 = vpop.f32.mrf.mxu0
        %v2274 = vadd.f32 %v2113, %v2273
        %v2275 = vpop.f32.mrf.mxu0
        %2276 = vmatprep.mubr.bf16.mxu0 %v1275
        %2277 = vmatmul.mubr.bf16.gmra.mxu0 %v1274
        %v2278 = vpop.f32.mrf.mxu0
        %v2279 = vadd.f32 %v2118, %v2278
        %v2280 = vpop.f32.mrf.mxu0
        %v2281 = vpop.f32.mrf.mxu0
        %v2282 = vadd.f32 %v2121, %v2281
        %v2283 = vpop.f32.mrf.mxu0
        %2284 = vmatprep.mubr.bf16.mxu0 %v1281
        %2285 = vmatmul.mubr.bf16.gmra.mxu0 %v1280
        %v2286 = vpop.f32.mrf.mxu0
        %v2287 = vadd.f32 %v2126, %v2286
        %v2288 = vpop.f32.mrf.mxu0
        %v2289 = vpop.f32.mrf.mxu0
        %v2290 = vadd.f32 %v2129, %v2289
        %v2291 = vpop.f32.mrf.mxu0
        %2292 = vmatprep.mubr.bf16.mxu0 %v1290
        %2293 = vmatmul.mubr.bf16.gmra.mxu0 %v1289
        %v2294 = vpop.f32.mrf.mxu0
        %v2295 = vadd.f32 %v2134, %v2294
        %v2296 = vpop.f32.mrf.mxu0
        %v2297 = vpop.f32.mrf.mxu0
        %v2298 = vadd.f32 %v2137, %v2297
        %v2299 = vpop.f32.mrf.mxu0
        %2300 = vmatprep.mubr.bf16.mxu0 %v1296
        %2301 = vmatmul.mubr.bf16.gmra.mxu0 %v1295
        %v2302 = vpop.f32.mrf.mxu0
        %v2303 = vadd.f32 %v2142, %v2302
        %v2304 = vpop.f32.mrf.mxu0
        %v2305 = vpop.f32.mrf.mxu0
        %v2306 = vadd.f32 %v2145, %v2305
        %v2307 = vpop.f32.mrf.mxu0
        %2308 = vmatprep.mubr.bf16.mxu0 %v1302
        %2309 = vmatmul.mubr.bf16.gmra.mxu0 %v1301
        %v2310 = vpop.f32.mrf.mxu0
        %v2311 = vadd.f32 %v2150, %v2310
        %v2312 = vpop.f32.mrf.mxu0
        %v2313 = vpop.f32.mrf.mxu0
        %v2314 = vadd.f32 %v2153, %v2313
        %v2315 = vpop.f32.mrf.mxu0
        %2316 = vmatprep.mubr.bf16.mxu0 %v1308
        %2317 = vmatmul.mubr.bf16.gmra.mxu0 %v1307
        %v2318 = vpop.f32.mrf.mxu0
        %v2319 = vadd.f32 %v2158, %v2318
        %v2320 = vpop.f32.mrf.mxu0
        %v2321 = vpop.f32.mrf.mxu0
        %v2322 = vadd.f32 %v2161, %v2321
        %v2323 = vpop.f32.mrf.mxu0
        %2324 = vmatprep.mubr.bf16.mxu0 %v1317
        %2325 = vmatmul.mubr.bf16.gmra.mxu0 %v1316
        %v2326 = vpop.f32.mrf.mxu0
        %v2327 = vadd.f32 %v2166, %v2326
        %v2328 = vpop.f32.mrf.mxu0
        %v2329 = vpop.f32.mrf.mxu0
        %v2330 = vadd.f32 %v2169, %v2329
        %v2331 = vpop.f32.mrf.mxu0
        %2332 = vmatprep.mubr.bf16.mxu0 %v1323
        %2333 = vmatmul.mubr.bf16.gmra.mxu0 %v1322
        %v2334 = vpop.f32.mrf.mxu0
        %v2335 = vadd.f32 %v2174, %v2334
        %v2336 = vpop.f32.mrf.mxu0
        %v2337 = vpop.f32.mrf.mxu0
        %v2338 = vadd.f32 %v2177, %v2337
        %v2339 = vpop.f32.mrf.mxu0
        %2340 = vmatprep.mubr.bf16.mxu0 %v1329
        %2341 = vmatmul.mubr.bf16.gmra.mxu0 %v1328
        %v2342 = vpop.f32.mrf.mxu0
        %v2343 = vadd.f32 %v2182, %v2342
        %v2344 = vpop.f32.mrf.mxu0
        %v2345 = vpop.f32.mrf.mxu0
        %v2346 = vadd.f32 %v2185, %v2345
        %v2347 = vpop.f32.mrf.mxu0
        %2348 = vmatprep.mubr.bf16.mxu0 %v1335
        %2349 = vmatmul.mubr.bf16.gmra.mxu0 %v1334
        %v2350 = vpop.f32.mrf.mxu0
        %v2351 = vadd.f32 %v2190, %v2350
        %v2352 = vpop.f32.mrf.mxu0
        %v2353 = vpop.f32.mrf.mxu0
        %v2354 = vadd.f32 %v2193, %v2353
        %v2355 = vpop.f32.mrf.mxu0
        %2356 = vmatprep.mubr.bf16.mxu0 %v1344
        %2357 = vmatmul.mubr.bf16.gmra.mxu0 %v1343
        %v2358 = vpop.f32.mrf.mxu0
        %v2359 = vadd.f32 %v2198, %v2358
        %v2360 = vpop.f32.mrf.mxu0
        %v2361 = vpop.f32.mrf.mxu0
        %v2362 = vadd.f32 %v2201, %v2361
        %v2363 = vpop.f32.mrf.mxu0
        %2364 = vmatprep.mubr.bf16.mxu0 %v1350
        %2365 = vmatmul.mubr.bf16.gmra.mxu0 %v1349
        %v2366 = vpop.f32.mrf.mxu0
        %v2367 = vadd.f32 %v2206, %v2366
        %v2368 = vpop.f32.mrf.mxu0
        %v2369 = vpop.f32.mrf.mxu0
        %v2370 = vadd.f32 %v2209, %v2369
        %v2371 = vpop.f32.mrf.mxu0
        %2372 = vmatprep.mubr.bf16.mxu0 %v1356
        %2373 = vmatmul.mubr.bf16.gmra.mxu0 %v1355
        %v2374 = vpop.f32.mrf.mxu0
        %v2375 = vadd.f32 %v2214, %v2374
        %v2376 = vpop.f32.mrf.mxu0
        %v2377 = vpop.f32.mrf.mxu0
        %v2378 = vadd.f32 %v2217, %v2377
        %v2379 = vpop.f32.mrf.mxu0
        %2380 = vmatprep.mubr.bf16.mxu0 %v1362
        %2381 = vmatmul.mubr.bf16.gmra.mxu0 %v1361
        %v2382 = vpop.f32.mrf.mxu0
        %v2383 = vadd.f32 %v2222, %v2382
        %v2384 = vpop.f32.mrf.mxu0
        %v2385 = vpop.f32.mrf.mxu0
        %v2386 = vadd.f32 %v2225, %v2385
        %v2387 = vpop.f32.mrf.mxu0
        %2388 = vdwg.mxu0
        %2389 = vmatprep.subr.bf16.mxu0 0
        %2390 = vmatpush1.bf16.msra.mxu0 %v1817
        %2391 = vmatprep.subr.bf16.mxu0 0
        %2392 = vmatpush1.bf16.msra.mxu0 %v1816
        %2393 = vmatprep.subr.bf16.mxu0 0
        %2394 = vmatpush1.bf16.msra.mxu0 %v1815
        %2395 = vmatprep.subr.bf16.mxu0 0
        %2396 = vmatpush1.bf16.msra.mxu0 %v1814
        %2397 = vmatprep.subr.bf16.mxu0 0
        %2398 = vmatpush1.bf16.msra.mxu0 %v1813
        %2399 = vmatprep.subr.bf16.mxu0 0
        %2400 = vmatpush1.bf16.msra.mxu0 %v1812
        %2401 = vmatprep.subr.bf16.mxu0 0
        %2402 = vmatpush1.bf16.msra.mxu0 %v1811
        %2403 = vmatprep.subr.bf16.mxu0 0
        %2404 = vmatpush1.bf16.msra.mxu0 %v1810
        %2405 = vmatprep.subr.bf16.mxu0 0
        %2406 = vmatpush2.bf16.msra.mxu0 %v1825
        %2407 = vmatprep.subr.bf16.mxu0 0
        %2408 = vmatpush2.bf16.msra.mxu0 %v1824
        %2409 = vmatprep.subr.bf16.mxu0 0
        %2410 = vmatpush2.bf16.msra.mxu0 %v1823
        %2411 = vmatprep.subr.bf16.mxu0 0
        %2412 = vmatpush2.bf16.msra.mxu0 %v1822
        %2413 = vmatprep.subr.bf16.mxu0 0
        %2414 = vmatpush2.bf16.msra.mxu0 %v1821
        %2415 = vmatprep.subr.bf16.mxu0 0
        %2416 = vmatpush2.bf16.msra.mxu0 %v1820
        %2417 = vmatprep.subr.bf16.mxu0 0
        %2418 = vmatpush2.bf16.msra.mxu0 %v1819
        %2419 = vmatprep.subr.bf16.mxu0 0
        %2420 = vmatpush2.bf16.msra.mxu0 %v1818
        %2421 = vmatprep.mubr.bf16.mxu0 %v1265
        %2422 = vmatmul.mubr.bf16.gmra.mxu0 %v1264
        %v2423 = vpop.f32.mrf.mxu0
        %v2424 = vadd.f32 %v2263, %v2423
        %v2425 = vpop.f32.mrf.mxu0
        %v2426 = vpop.f32.mrf.mxu0
        %v2427 = vadd.f32 %v2266, %v2426
        %v2428 = vpop.f32.mrf.mxu0
        %2429 = vmatprep.mubr.bf16.mxu0 %v1271
        %2430 = vmatmul.mubr.bf16.gmra.mxu0 %v1270
        %v2431 = vpop.f32.mrf.mxu0
        %v2432 = vadd.f32 %v2271, %v2431
        %v2433 = vpop.f32.mrf.mxu0
        %v2434 = vpop.f32.mrf.mxu0
        %v2435 = vadd.f32 %v2274, %v2434
        %v2436 = vpop.f32.mrf.mxu0
        %2437 = vmatprep.mubr.bf16.mxu0 %v1277
        %2438 = vmatmul.mubr.bf16.gmra.mxu0 %v1276
        %v2439 = vpop.f32.mrf.mxu0
        %v2440 = vadd.f32 %v2279, %v2439
        %v2441 = vpop.f32.mrf.mxu0
        %v2442 = vpop.f32.mrf.mxu0
        %v2443 = vadd.f32 %v2282, %v2442
        %v2444 = vpop.f32.mrf.mxu0
        %2445 = vmatprep.mubr.bf16.mxu0 %v1283
        %2446 = vmatmul.mubr.bf16.gmra.mxu0 %v1282
        %v2447 = vpop.f32.mrf.mxu0
        %v2448 = vadd.f32 %v2287, %v2447
        %v2449 = vpop.f32.mrf.mxu0
        %v2450 = vpop.f32.mrf.mxu0
        %v2451 = vadd.f32 %v2290, %v2450
        %v2452 = vpop.f32.mrf.mxu0
        %2453 = vmatprep.mubr.bf16.mxu0 %v1292
        %2454 = vmatmul.mubr.bf16.gmra.mxu0 %v1291
        %v2455 = vpop.f32.mrf.mxu0
        %v2456 = vadd.f32 %v2295, %v2455
        %v2457 = vpop.f32.mrf.mxu0
        %v2458 = vpop.f32.mrf.mxu0
        %v2459 = vadd.f32 %v2298, %v2458
        %v2460 = vpop.f32.mrf.mxu0
        %2461 = vmatprep.mubr.bf16.mxu0 %v1298
        %2462 = vmatmul.mubr.bf16.gmra.mxu0 %v1297
        %v2463 = vpop.f32.mrf.mxu0
        %v2464 = vadd.f32 %v2303, %v2463
        %v2465 = vpop.f32.mrf.mxu0
        %v2466 = vpop.f32.mrf.mxu0
        %v2467 = vadd.f32 %v2306, %v2466
        %v2468 = vpop.f32.mrf.mxu0
        %2469 = vmatprep.mubr.bf16.mxu0 %v1304
        %2470 = vmatmul.mubr.bf16.gmra.mxu0 %v1303
        %v2471 = vpop.f32.mrf.mxu0
        %v2472 = vadd.f32 %v2311, %v2471
        %v2473 = vpop.f32.mrf.mxu0
        %v2474 = vpop.f32.mrf.mxu0
        %v2475 = vadd.f32 %v2314, %v2474
        %v2476 = vpop.f32.mrf.mxu0
        %2477 = vmatprep.mubr.bf16.mxu0 %v1310
        %2478 = vmatmul.mubr.bf16.gmra.mxu0 %v1309
        %v2479 = vpop.f32.mrf.mxu0
        %v2480 = vadd.f32 %v2319, %v2479
        %v2481 = vpop.f32.mrf.mxu0
        %v2482 = vpop.f32.mrf.mxu0
        %v2483 = vadd.f32 %v2322, %v2482
        %v2484 = vpop.f32.mrf.mxu0
        %2485 = vmatprep.mubr.bf16.mxu0 %v1319
        %2486 = vmatmul.mubr.bf16.gmra.mxu0 %v1318
        %v2487 = vpop.f32.mrf.mxu0
        %v2488 = vadd.f32 %v2327, %v2487
        %v2489 = vpop.f32.mrf.mxu0
        %v2490 = vpop.f32.mrf.mxu0
        %v2491 = vadd.f32 %v2330, %v2490
        %v2492 = vpop.f32.mrf.mxu0
        %2493 = vmatprep.mubr.bf16.mxu0 %v1325
        %2494 = vmatmul.mubr.bf16.gmra.mxu0 %v1324
        %v2495 = vpop.f32.mrf.mxu0
        %v2496 = vadd.f32 %v2335, %v2495
        %v2497 = vpop.f32.mrf.mxu0
        %v2498 = vpop.f32.mrf.mxu0
        %v2499 = vadd.f32 %v2338, %v2498
        %v2500 = vpop.f32.mrf.mxu0
        %2501 = vmatprep.mubr.bf16.mxu0 %v1331
        %2502 = vmatmul.mubr.bf16.gmra.mxu0 %v1330
        %v2503 = vpop.f32.mrf.mxu0
        %v2504 = vadd.f32 %v2343, %v2503
        %v2505 = vpop.f32.mrf.mxu0
        %v2506 = vpop.f32.mrf.mxu0
        %v2507 = vadd.f32 %v2346, %v2506
        %v2508 = vpop.f32.mrf.mxu0
        %2509 = vmatprep.mubr.bf16.mxu0 %v1337
        %2510 = vmatmul.mubr.bf16.gmra.mxu0 %v1336
        %v2511 = vpop.f32.mrf.mxu0
        %v2512 = vadd.f32 %v2351, %v2511
        %v2513 = vpop.f32.mrf.mxu0
        %v2514 = vpop.f32.mrf.mxu0
        %v2515 = vadd.f32 %v2354, %v2514
        %v2516 = vpop.f32.mrf.mxu0
        %2517 = vmatprep.mubr.bf16.mxu0 %v1346
        %2518 = vmatmul.mubr.bf16.gmra.mxu0 %v1345
        %v2519 = vpop.f32.mrf.mxu0
        %v2520 = vadd.f32 %v2359, %v2519
        %v2521 = vpop.f32.mrf.mxu0
        %v2522 = vpop.f32.mrf.mxu0
        %v2523 = vadd.f32 %v2362, %v2522
        %v2524 = vpop.f32.mrf.mxu0
        %2525 = vmatprep.mubr.bf16.mxu0 %v1352
        %2526 = vmatmul.mubr.bf16.gmra.mxu0 %v1351
        %v2527 = vpop.f32.mrf.mxu0
        %v2528 = vadd.f32 %v2367, %v2527
        %v2529 = vpop.f32.mrf.mxu0
        %v2530 = vpop.f32.mrf.mxu0
        %v2531 = vadd.f32 %v2370, %v2530
        %v2532 = vpop.f32.mrf.mxu0
        %2533 = vmatprep.mubr.bf16.mxu0 %v1358
        %2534 = vmatmul.mubr.bf16.gmra.mxu0 %v1357
        %v2535 = vpop.f32.mrf.mxu0
        %v2536 = vadd.f32 %v2375, %v2535
        %v2537 = vpop.f32.mrf.mxu0
        %v2538 = vpop.f32.mrf.mxu0
        %v2539 = vadd.f32 %v2378, %v2538
        %v2540 = vpop.f32.mrf.mxu0
        %2541 = vmatprep.mubr.bf16.mxu0 %v1364
        %2542 = vmatmul.mubr.bf16.gmra.mxu0 %v1363
        %v2543 = vpop.f32.mrf.mxu0
        %v2544 = vadd.f32 %v2383, %v2543
        %v2545 = vpop.f32.mrf.mxu0
        %v2546 = vpop.f32.mrf.mxu0
        %v2547 = vadd.f32 %v2386, %v2546
        %v2548 = vpop.f32.mrf.mxu0
        %2549 = vdwg.mxu0
        %2550 = vmatprep.subr.bf16.mxu0 0
        %2551 = vmatpush1.bf16.msra.mxu0 %v1833
        %2552 = vmatprep.subr.bf16.mxu0 0
        %2553 = vmatpush1.bf16.msra.mxu0 %v1832
        %2554 = vmatprep.subr.bf16.mxu0 0
        %2555 = vmatpush1.bf16.msra.mxu0 %v1831
        %2556 = vmatprep.subr.bf16.mxu0 0
        %2557 = vmatpush1.bf16.msra.mxu0 %v1830
        %2558 = vmatprep.subr.bf16.mxu0 0
        %2559 = vmatpush1.bf16.msra.mxu0 %v1829
        %2560 = vmatprep.subr.bf16.mxu0 0
        %2561 = vmatpush1.bf16.msra.mxu0 %v1828
        %2562 = vmatprep.subr.bf16.mxu0 0
        %2563 = vmatpush1.bf16.msra.mxu0 %v1827
        %2564 = vmatprep.subr.bf16.mxu0 0
        %2565 = vmatpush1.bf16.msra.mxu0 %v1826
        %2566 = vmatprep.subr.bf16.mxu0 0
        %2567 = vmatpush2.bf16.msra.mxu0 0
        %2568 = vmatprep.subr.bf16.mxu0 0
        %2569 = vmatpush2.bf16.msra.mxu0 0
        %2570 = vmatprep.subr.bf16.mxu0 0
        %2571 = vmatpush2.bf16.msra.mxu0 0
        %2572 = vmatprep.subr.bf16.mxu0 0
        %2573 = vmatpush2.bf16.msra.mxu0 0
        %2574 = vmatprep.subr.bf16.mxu0 0
        %2575 = vmatpush2.bf16.msra.mxu0 0
        %2576 = vmatprep.subr.bf16.mxu0 0
        %2577 = vmatpush2.bf16.msra.mxu0 0
        %2578 = vmatprep.subr.bf16.mxu0 0
        %2579 = vmatpush2.bf16.msra.mxu0 0
        %2580 = vmatprep.subr.bf16.mxu0 0
        %2581 = vmatpush2.bf16.msra.mxu0 0
        %2582 = vmatprep.mubr.bf16.mxu0 0
        %2583 = vmatmul.mubr.bf16.gmra.mxu0 %v1266
        %v2584 = vpop.f32.mrf.mxu0
        %v2585 = vadd.f32 %v2424, %v2584
        %v2586 = vpop.f32.mrf.mxu0
        %v2587 = vpop.f32.mrf.mxu0
        %v2588 = vadd.f32 %v2427, %v2587
        %v2589 = vpop.f32.mrf.mxu0
        %2590 = vmatprep.mubr.bf16.mxu0 0
        %2591 = vmatmul.mubr.bf16.gmra.mxu0 %v1272
        %v2592 = vpop.f32.mrf.mxu0
        %v2593 = vadd.f32 %v2432, %v2592
        %v2594 = vpop.f32.mrf.mxu0
        %v2595 = vpop.f32.mrf.mxu0
        %v2596 = vadd.f32 %v2435, %v2595
        %v2597 = vpop.f32.mrf.mxu0
        %2598 = vmatprep.mubr.bf16.mxu0 0
        %2599 = vmatmul.mubr.bf16.gmra.mxu0 %v1278
        %v2600 = vpop.f32.mrf.mxu0
        %v2601 = vadd.f32 %v2440, %v2600
        %v2602 = vpop.f32.mrf.mxu0
        %v2603 = vpop.f32.mrf.mxu0
        %v2604 = vadd.f32 %v2443, %v2603
        %v2605 = vpop.f32.mrf.mxu0
        %2606 = vmatprep.mubr.bf16.mxu0 0
        %2607 = vmatmul.mubr.bf16.gmra.mxu0 %v1284
        %v2608 = vpop.f32.mrf.mxu0
        %v2609 = vadd.f32 %v2448, %v2608
        %v2610 = vpop.f32.mrf.mxu0
        %v2611 = vpop.f32.mrf.mxu0
        %v2612 = vadd.f32 %v2451, %v2611
        %v2613 = vpop.f32.mrf.mxu0
        %2614 = vmatprep.mubr.bf16.mxu0 0
        %2615 = vmatmul.mubr.bf16.gmra.mxu0 %v1293
        %v2616 = vpop.f32.mrf.mxu0
        %v2617 = vadd.f32 %v2456, %v2616
        %v2618 = vpop.f32.mrf.mxu0
        %v2619 = vpop.f32.mrf.mxu0
        %v2620 = vadd.f32 %v2459, %v2619
        %v2621 = vpop.f32.mrf.mxu0
        %2622 = vmatprep.mubr.bf16.mxu0 0
        %2623 = vmatmul.mubr.bf16.gmra.mxu0 %v1299
        %v2624 = vpop.f32.mrf.mxu0
        %v2625 = vadd.f32 %v2464, %v2624
        %v2626 = vpop.f32.mrf.mxu0
        %v2627 = vpop.f32.mrf.mxu0
        %v2628 = vadd.f32 %v2467, %v2627
        %v2629 = vpop.f32.mrf.mxu0
        %2630 = vmatprep.mubr.bf16.mxu0 0
        %2631 = vmatmul.mubr.bf16.gmra.mxu0 %v1305
        %v2632 = vpop.f32.mrf.mxu0
        %v2633 = vadd.f32 %v2472, %v2632
        %v2634 = vpop.f32.mrf.mxu0
        %v2635 = vpop.f32.mrf.mxu0
        %v2636 = vadd.f32 %v2475, %v2635
        %v2637 = vpop.f32.mrf.mxu0
        %2638 = vmatprep.mubr.bf16.mxu0 0
        %2639 = vmatmul.mubr.bf16.gmra.mxu0 %v1311
        %v2640 = vpop.f32.mrf.mxu0
        %v2641 = vadd.f32 %v2480, %v2640
        %v2642 = vpop.f32.mrf.mxu0
        %v2643 = vpop.f32.mrf.mxu0
        %v2644 = vadd.f32 %v2483, %v2643
        %v2645 = vpop.f32.mrf.mxu0
        %2646 = vmatprep.mubr.bf16.mxu0 0
        %2647 = vmatmul.mubr.bf16.gmra.mxu0 %v1320
        %v2648 = vpop.f32.mrf.mxu0
        %v2649 = vadd.f32 %v2488, %v2648
        %v2650 = vpop.f32.mrf.mxu0
        %v2651 = vpop.f32.mrf.mxu0
        %v2652 = vadd.f32 %v2491, %v2651
        %v2653 = vpop.f32.mrf.mxu0
        %2654 = vmatprep.mubr.bf16.mxu0 0
        %2655 = vmatmul.mubr.bf16.gmra.mxu0 %v1326
        %v2656 = vpop.f32.mrf.mxu0
        %v2657 = vadd.f32 %v2496, %v2656
        %v2658 = vpop.f32.mrf.mxu0
        %v2659 = vpop.f32.mrf.mxu0
        %v2660 = vadd.f32 %v2499, %v2659
        %v2661 = vpop.f32.mrf.mxu0
        %2662 = vmatprep.mubr.bf16.mxu0 0
        %2663 = vmatmul.mubr.bf16.gmra.mxu0 %v1332
        %v2664 = vpop.f32.mrf.mxu0
        %v2665 = vadd.f32 %v2504, %v2664
        %v2666 = vpop.f32.mrf.mxu0
        %v2667 = vpop.f32.mrf.mxu0
        %v2668 = vadd.f32 %v2507, %v2667
        %v2669 = vpop.f32.mrf.mxu0
        %2670 = vmatprep.mubr.bf16.mxu0 0
        %2671 = vmatmul.mubr.bf16.gmra.mxu0 %v1338
        %v2672 = vpop.f32.mrf.mxu0
        %v2673 = vadd.f32 %v2512, %v2672
        %v2674 = vpop.f32.mrf.mxu0
        %v2675 = vpop.f32.mrf.mxu0
        %v2676 = vadd.f32 %v2515, %v2675
        %v2677 = vpop.f32.mrf.mxu0
        %2678 = vmatprep.mubr.bf16.mxu0 0
        %2679 = vmatmul.mubr.bf16.gmra.mxu0 %v1347
        %v2680 = vpop.f32.mrf.mxu0
        %v2681 = vadd.f32 %v2520, %v2680
        %v2682 = vpop.f32.mrf.mxu0
        %v2683 = vpop.f32.mrf.mxu0
        %v2684 = vadd.f32 %v2523, %v2683
        %v2685 = vpop.f32.mrf.mxu0
        %2686 = vmatprep.mubr.bf16.mxu0 0
        %2687 = vmatmul.mubr.bf16.gmra.mxu0 %v1353
        %v2688 = vpop.f32.mrf.mxu0
        %v2689 = vadd.f32 %v2528, %v2688
        %v2690 = vpop.f32.mrf.mxu0
        %v2691 = vpop.f32.mrf.mxu0
        %v2692 = vadd.f32 %v2531, %v2691
        %v2693 = vpop.f32.mrf.mxu0
        %2694 = vmatprep.mubr.bf16.mxu0 0
        %2695 = vmatmul.mubr.bf16.gmra.mxu0 %v1359
        %v2696 = vpop.f32.mrf.mxu0
        %v2697 = vadd.f32 %v2536, %v2696
        %v2698 = vpop.f32.mrf.mxu0
        %v2699 = vpop.f32.mrf.mxu0
        %v2700 = vadd.f32 %v2539, %v2699
        %v2701 = vpop.f32.mrf.mxu0
        %2702 = vmatprep.mubr.bf16.mxu0 0
        %2703 = vmatmul.mubr.bf16.gmra.mxu0 %v1365
        %v2704 = vpop.f32.mrf.mxu0
        %v2705 = vadd.f32 %v2544, %v2704
        %v2706 = vpop.f32.mrf.mxu0
        %v2707 = vpop.f32.mrf.mxu0
        %v2708 = vadd.f32 %v2547, %v2707
        %v2709 = vpop.f32.mrf.mxu0
        %2710 = vdwg.mxu0
        %v2711 = vmax.f32 %v2585, 0.0
        %v2712 = vmax.f32 %v2588, 0.0
        %v2713 = vmax.f32 %v2593, 0.0
        %v2714 = vmax.f32 %v2596, 0.0
        %v2715 = vmax.f32 %v2601, 0.0
        %v2716 = vmax.f32 %v2604, 0.0
        %v2717 = vmax.f32 %v2609, 0.0
        %v2718 = vmax.f32 %v2612, 0.0
        %v2719 = vmax.f32 %v2617, 0.0
        %v2720 = vmax.f32 %v2620, 0.0
        %v2721 = vmax.f32 %v2625, 0.0
        %v2722 = vmax.f32 %v2628, 0.0
        %v2723 = vmax.f32 %v2633, 0.0
        %v2724 = vmax.f32 %v2636, 0.0
        %v2725 = vmax.f32 %v2641, 0.0
        %v2726 = vmax.f32 %v2644, 0.0
        %v2727 = vmax.f32 %v2649, 0.0
        %v2728 = vmax.f32 %v2652, 0.0
        %v2729 = vmax.f32 %v2657, 0.0
        %v2730 = vmax.f32 %v2660, 0.0
        %v2731 = vmax.f32 %v2665, 0.0
        %v2732 = vmax.f32 %v2668, 0.0
        %v2733 = vmax.f32 %v2673, 0.0
        %v2734 = vmax.f32 %v2676, 0.0
        %v2735 = vmax.f32 %v2681, 0.0
        %v2736 = vmax.f32 %v2684, 0.0
        %v2737 = vmax.f32 %v2689, 0.0
        %v2738 = vmax.f32 %v2692, 0.0
        %v2739 = vmax.f32 %v2697, 0.0
        %v2740 = vmax.f32 %v2700, 0.0
        %v2741 = vmax.f32 %v2705, 0.0
        %v2742 = vmax.f32 %v2708, 0.0
        %v2743 = vpack.c.bf16 %v2712, %v2711
        %v2744 = vpack.c.bf16 %v2714, %v2713
        %v2745 = vpack.c.bf16 %v2716, %v2715
        %v2746 = vpack.c.bf16 %v2718, %v2717
        %v2747 = vpack.c.bf16 %v2720, %v2719
        %v2748 = vpack.c.bf16 %v2722, %v2721
        %v2749 = vpack.c.bf16 %v2724, %v2723
        %v2750 = vpack.c.bf16 %v2726, %v2725
        %v2751 = vpack.c.bf16 %v2728, %v2727
        %v2752 = vpack.c.bf16 %v2730, %v2729
        %v2753 = vpack.c.bf16 %v2732, %v2731
        %v2754 = vpack.c.bf16 %v2734, %v2733
        %v2755 = vpack.c.bf16 %v2736, %v2735
        %v2756 = vpack.c.bf16 %v2738, %v2737
        %v2757 = vpack.c.bf16 %v2740, %v2739
        %v2758 = vpack.c.bf16 %v2742, %v2741
        %v2775 = vunpack.c.l.b16 %v2743
        %v2776 = vunpack.c.h.b16 %v2743
        %v2777 = vunpack.c.l.b16 %v2744
        %v2778 = vunpack.c.h.b16 %v2744
        %v2779 = vunpack.c.l.b16 %v2745
        %v2780 = vunpack.c.h.b16 %v2745
        %v2781 = vunpack.c.l.b16 %v2746
        %v2782 = vunpack.c.h.b16 %v2746
        %v2783 = vunpack.c.l.b16 %v2747
        %v2784 = vunpack.c.h.b16 %v2747
        %v2785 = vunpack.c.l.b16 %v2748
        %v2786 = vunpack.c.h.b16 %v2748
        %v2787 = vunpack.c.l.b16 %v2749
        %v2788 = vunpack.c.h.b16 %v2749
        %v2789 = vunpack.c.l.b16 %v2750
        %v2790 = vunpack.c.h.b16 %v2750
        %v2791 = vunpack.c.l.b16 %v2751
        %v2792 = vunpack.c.h.b16 %v2751
        %v2793 = vunpack.c.l.b16 %v2752
        %v2794 = vunpack.c.h.b16 %v2752
        %v2795 = vunpack.c.l.b16 %v2753
        %v2796 = vunpack.c.h.b16 %v2753
        %v2797 = vunpack.c.l.b16 %v2754
        %v2798 = vunpack.c.h.b16 %v2754
        %v2799 = vunpack.c.l.b16 %v2755
        %v2800 = vunpack.c.h.b16 %v2755
        %v2801 = vunpack.c.l.b16 %v2756
        %v2802 = vunpack.c.h.b16 %v2756
        %v2803 = vunpack.c.l.b16 %v2757
        %v2804 = vunpack.c.h.b16 %v2757
        %v2805 = vunpack.c.l.b16 %v2758
        %v2806 = vunpack.c.h.b16 %v2758
        %v2807 = vld [vmem:[#allocation7] sm:$0xf]
        %v2808 = vld [vmem:[#allocation7 + $0x4] sm:$0xf]
        %v2809 = vld [vmem:[#allocation7 + $0x8] sm:$0xf]
        %v2810 = vld [vmem:[#allocation7 + $0xc] sm:$0xf]
        %v2811 = vld [vmem:[#allocation7 + $0x10] sm:$0xf]
        %v2812 = vld [vmem:[#allocation7 + $0x14] sm:$0xf]
        %v2813 = vld [vmem:[#allocation7 + $0x18] sm:$0xf]
        %v2814 = vld [vmem:[#allocation7 + $0x1c] sm:$0xf]
        %v2815 = vld [vmem:[#allocation7 + $0x20] sm:$0xf]
        %v2816 = vld [vmem:[#allocation7 + $0x24] sm:$0xf]
        %v2817 = vld [vmem:[#allocation7 + $0x28] sm:$0xf]
        %v2818 = vld [vmem:[#allocation7 + $0x2c] sm:$0xf]
        %v2819 = vld [vmem:[#allocation7 + $0x30] sm:$0xf]
        %v2820 = vld [vmem:[#allocation7 + $0x34] sm:$0xf]
        %v2821 = vld [vmem:[#allocation7 + $0x38] sm:$0xf]
        %v2822 = vld [vmem:[#allocation7 + $0x3c] sm:$0xf]
        %v2823 = vld [vmem:[#allocation7 + $0x40] sm:$0xf]
        %v2824 = vld [vmem:[#allocation7 + $0x44] sm:$0xf]
        %v2825 = vld [vmem:[#allocation7 + $0x48] sm:$0xf]
        %v2826 = vld [vmem:[#allocation7 + $0x4c] sm:$0xf]
        %v2827 = vld [vmem:[#allocation7 + $0x50] sm:$0xf]
        %v2828 = vld [vmem:[#allocation7 + $0x54] sm:$0xf]
        %v2829 = vld [vmem:[#allocation7 + $0x58] sm:$0xf]
        %v2830 = vld [vmem:[#allocation7 + $0x5c] sm:$0xf]
        %v2831 = vld [vmem:[#allocation7 + $0x60] sm:$0xf]
        %v2832 = vld [vmem:[#allocation7 + $0x64] sm:$0xf]
        %v2833 = vld [vmem:[#allocation7 + $0x68] sm:$0xf]
        %v2834 = vld [vmem:[#allocation7 + $0x6c] sm:$0xf]
        %v2835 = vld [vmem:[#allocation7 + $0x70] sm:$0xf]
        %v2836 = vld [vmem:[#allocation7 + $0x74] sm:$0xf]
        %v2837 = vld [vmem:[#allocation7 + $0x78] sm:$0xf]
        %v2838 = vld [vmem:[#allocation7 + $0x7c] sm:$0xf]
        %v2839 = vld [vmem:[#allocation7 + $0x80] sm:$0xf]
        %v2840 = vld [vmem:[#allocation7 + $0x84] sm:$0xf]
        %v2841 = vld [vmem:[#allocation7 + $0x88] sm:$0xf]
        %v2842 = vld [vmem:[#allocation7 + $0x8c] sm:$0xf]
        %v2843 = vld [vmem:[#allocation7 + $0x90] sm:$0xf]
        %v2844 = vld [vmem:[#allocation7 + $0x94] sm:$0xf]
        %v2845 = vld [vmem:[#allocation7 + $0x98] sm:$0xf]
        %v2846 = vld [vmem:[#allocation7 + $0x9c] sm:$0xf]
        %v2847 = vld [vmem:[#allocation7 + $0xa0] sm:$0xf]
        %v2848 = vld [vmem:[#allocation7 + $0xa4] sm:$0xf]
        %v2849 = vld [vmem:[#allocation7 + $0xa8] sm:$0xf]
        %v2850 = vld [vmem:[#allocation7 + $0xac] sm:$0xf]
        %v2851 = vld [vmem:[#allocation7 + $0xb0] sm:$0xf]
        %v2852 = vld [vmem:[#allocation7 + $0xb4] sm:$0xf]
        %v2853 = vld [vmem:[#allocation7 + $0xb8] sm:$0xf]
        %v2854 = vld [vmem:[#allocation7 + $0xbc] sm:$0xf]
        %v2855 = vld [vmem:[%s4] sm:$0x1]
        %v2857 = vlaneseq
        %v2858 = vshrl.u32 %v2857, 7
        %v2859 = vsub.s32 0, %v2858
        %v2860 = vrot.slane %v2855, %v2859
        %v2862 = vpack.c.b16 %v1009, %v1009
        %v2863 = vpack.c.b16 %v2776, %v2775
        %v2864 = vpack.c.b16 %v2784, %v2783
        %v2865 = vpack.c.b16 %v2778, %v2777
        %v2866 = vpack.c.b16 %v2786, %v2785
        %v2867 = vpack.c.b16 %v2780, %v2779
        %v2868 = vpack.c.b16 %v2788, %v2787
        %v2869 = vpack.c.b16 %v2782, %v2781
        %v2870 = vpack.c.b16 %v2790, %v2789
        %v2871 = vpack.c.b16 %v2792, %v2791
        %v2872 = vpack.c.b16 %v2794, %v2793
        %v2873 = vpack.c.b16 %v2796, %v2795
        %v2874 = vpack.c.b16 %v2798, %v2797
        %v2875 = vpack.c.b16 %v2800, %v2799
        %v2876 = vpack.c.b16 %v2802, %v2801
        %v2877 = vpack.c.b16 %v2804, %v2803
        %v2878 = vpack.c.b16 %v2806, %v2805
        %v2944 = vunpack.c.l.b16 %v2807
        %v2945 = vunpack.c.l.b16 %v2808
        %v2946 = vunpack.c.l.b16 %v2809
        %v2947 = vunpack.c.l.b16 %v2810
        %v2948 = vunpack.c.l.b16 %v2811
        %v2949 = vunpack.c.l.b16 %v2812
        %v2950 = vunpack.c.l.b16 %v2813
        %v2951 = vunpack.c.l.b16 %v2814
        %v2952 = vunpack.c.l.b16 %v2815
        %v2953 = vunpack.c.l.b16 %v2816
        %v2954 = vunpack.c.l.b16 %v2817
        %v2955 = vunpack.c.l.b16 %v2818
        %v2956 = vunpack.c.l.b16 %v2819
        %v2957 = vunpack.c.l.b16 %v2820
        %v2958 = vunpack.c.l.b16 %v2821
        %v2959 = vunpack.c.l.b16 %v2822
        %v2960 = vunpack.c.l.b16 %v2823
        %v2961 = vunpack.c.l.b16 %v2824
        %v2962 = vunpack.c.l.b16 %v2825
        %v2963 = vunpack.c.l.b16 %v2826
        %v2964 = vunpack.c.l.b16 %v2827
        %v2965 = vunpack.c.l.b16 %v2828
        %v2966 = vunpack.c.l.b16 %v2829
        %v2967 = vunpack.c.l.b16 %v2830
        %v2968 = vunpack.c.l.b16 %v2831
        %v2969 = vunpack.c.l.b16 %v2832
        %v2970 = vunpack.c.l.b16 %v2833
        %v2971 = vunpack.c.l.b16 %v2834
        %v2972 = vunpack.c.l.b16 %v2835
        %v2973 = vunpack.c.l.b16 %v2836
        %v2974 = vunpack.c.l.b16 %v2837
        %v2975 = vunpack.c.l.b16 %v2838
        %v2976 = vunpack.c.l.b16 %v2839
        %v2977 = vunpack.c.l.b16 %v2840
        %v2978 = vunpack.c.l.b16 %v2841
        %v2979 = vunpack.c.l.b16 %v2842
        %v2980 = vunpack.c.l.b16 %v2843
        %v2981 = vunpack.c.l.b16 %v2844
        %v2982 = vunpack.c.l.b16 %v2845
        %v2983 = vunpack.c.l.b16 %v2846
        %v2984 = vunpack.c.l.b16 %v2847
        %v2985 = vunpack.c.l.b16 %v2848
        %v2986 = vunpack.c.l.b16 %v2849
        %v2987 = vunpack.c.l.b16 %v2850
        %v2988 = vunpack.c.l.b16 %v2851
        %v2989 = vunpack.c.l.b16 %v2852
        %v2990 = vunpack.c.l.b16 %v2853
        %v2991 = vunpack.c.l.b16 %v2854
        %v2992 = vpack.c.b16 %v2945, %v2944
        %v2993 = vpack.c.b16 %v2947, %v2946
        %v2994 = vpack.c.b16 %v2949, %v2948
        %v2995 = vpack.c.b16 %v2951, %v2950
        %v2996 = vpack.c.b16 %v2953, %v2952
        %v2997 = vpack.c.b16 %v2955, %v2954
        %v2998 = vpack.c.b16 %v2957, %v2956
        %v2999 = vpack.c.b16 %v2959, %v2958
        %v3000 = vpack.c.b16 %v2961, %v2960
        %v3001 = vpack.c.b16 %v2963, %v2962
        %v3002 = vpack.c.b16 %v2965, %v2964
        %v3003 = vpack.c.b16 %v2967, %v2966
        %v3004 = vpack.c.b16 %v2969, %v2968
        %v3005 = vpack.c.b16 %v2971, %v2970
        %v3006 = vpack.c.b16 %v2973, %v2972
        %v3007 = vpack.c.b16 %v2975, %v2974
        %v3008 = vpack.c.b16 %v2977, %v2976
        %v3009 = vpack.c.b16 %v2979, %v2978
        %v3010 = vpack.c.b16 %v2981, %v2980
        %v3011 = vpack.c.b16 %v2983, %v2982
        %v3012 = vpack.c.b16 %v2985, %v2984
        %v3013 = vpack.c.b16 %v2987, %v2986
        %v3014 = vpack.c.b16 %v2989, %v2988
        %v3015 = vpack.c.b16 %v2991, %v2990
        %3040 = vmatprep.subr.bf16.mxu0 0
        %3041 = vmatpush1.bf16.msra.mxu0 %v2999
        %3042 = vmatprep.subr.bf16.mxu0 0
        %3043 = vmatpush1.bf16.msra.mxu0 %v2998
        %3044 = vmatprep.subr.bf16.mxu0 0
        %3045 = vmatpush1.bf16.msra.mxu0 %v2997
        %3046 = vmatprep.subr.bf16.mxu0 0
        %3047 = vmatpush1.bf16.msra.mxu0 %v2996
        %3048 = vmatprep.subr.bf16.mxu0 0
        %3049 = vmatpush1.bf16.msra.mxu0 %v2995
        %3050 = vmatprep.subr.bf16.mxu0 0
        %3051 = vmatpush1.bf16.msra.mxu0 %v2994
        %3052 = vmatprep.subr.bf16.mxu0 0
        %3053 = vmatpush1.bf16.msra.mxu0 %v2993
        %3054 = vmatprep.subr.bf16.mxu0 0
        %3055 = vmatpush1.bf16.msra.mxu0 %v2992
        %3056 = vmatprep.subr.bf16.mxu0 0
        %3057 = vmatpush2.bf16.msra.mxu0 %v3007
        %3058 = vmatprep.subr.bf16.mxu0 0
        %3059 = vmatpush2.bf16.msra.mxu0 %v3006
        %3060 = vmatprep.subr.bf16.mxu0 0
        %3061 = vmatpush2.bf16.msra.mxu0 %v3005
        %3062 = vmatprep.subr.bf16.mxu0 0
        %3063 = vmatpush2.bf16.msra.mxu0 %v3004
        %3064 = vmatprep.subr.bf16.mxu0 0
        %3065 = vmatpush2.bf16.msra.mxu0 %v3003
        %3066 = vmatprep.subr.bf16.mxu0 0
        %3067 = vmatpush2.bf16.msra.mxu0 %v3002
        %3068 = vmatprep.subr.bf16.mxu0 0
        %3069 = vmatpush2.bf16.msra.mxu0 %v3001
        %3070 = vmatprep.subr.bf16.mxu0 0
        %3071 = vmatpush2.bf16.msra.mxu0 %v3000
        %3072 = vmatprep.mubr.bf16.mxu0 %v2863
        %3073 = vmatmul.mubr.bf16.gmra.mxu0 %v2862
        %v3074 = vpop.f32.mrf.mxu0
        %v3075 = vadd.f32 %v2860, %v3074
        %v3076 = vpop.f32.mrf.mxu0
        %v3077 = vpop.f32.mrf.mxu0
        %v3078 = vadd.f32 %v2860, %v3077
        %v3079 = vpop.f32.mrf.mxu0
        %3080 = vmatprep.mubr.bf16.mxu0 %v2865
        %3081 = vmatmul.mubr.bf16.gmra.mxu0 %v2862
        %v3082 = vpop.f32.mrf.mxu0
        %v3083 = vadd.f32 %v2860, %v3082
        %v3084 = vpop.f32.mrf.mxu0
        %v3085 = vpop.f32.mrf.mxu0
        %v3086 = vadd.f32 %v2860, %v3085
        %v3087 = vpop.f32.mrf.mxu0
        %3088 = vmatprep.mubr.bf16.mxu0 %v2867
        %3089 = vmatmul.mubr.bf16.gmra.mxu0 %v2862
        %v3090 = vpop.f32.mrf.mxu0
        %v3091 = vadd.f32 %v2860, %v3090
        %v3092 = vpop.f32.mrf.mxu0
        %v3093 = vpop.f32.mrf.mxu0
        %v3094 = vadd.f32 %v2860, %v3093
        %v3095 = vpop.f32.mrf.mxu0
        %3096 = vmatprep.mubr.bf16.mxu0 %v2869
        %3097 = vmatmul.mubr.bf16.gmra.mxu0 %v2862
        %v3098 = vpop.f32.mrf.mxu0
        %v3099 = vadd.f32 %v2860, %v3098
        %v3100 = vpop.f32.mrf.mxu0
        %v3101 = vpop.f32.mrf.mxu0
        %v3102 = vadd.f32 %v2860, %v3101
        %v3103 = vpop.f32.mrf.mxu0
        %3104 = vmatprep.mubr.bf16.mxu0 %v2864
        %3105 = vmatmul.mubr.bf16.gmra.mxu0 %v2863
        %v3106 = vpop.f32.mrf.mxu0
        %v3107 = vadd.f32 %v2860, %v3106
        %v3108 = vpop.f32.mrf.mxu0
        %v3109 = vpop.f32.mrf.mxu0
        %v3110 = vadd.f32 %v2860, %v3109
        %v3111 = vpop.f32.mrf.mxu0
        %3112 = vmatprep.mubr.bf16.mxu0 %v2866
        %3113 = vmatmul.mubr.bf16.gmra.mxu0 %v2865
        %v3114 = vpop.f32.mrf.mxu0
        %v3115 = vadd.f32 %v2860, %v3114
        %v3116 = vpop.f32.mrf.mxu0
        %v3117 = vpop.f32.mrf.mxu0
        %v3118 = vadd.f32 %v2860, %v3117
        %v3119 = vpop.f32.mrf.mxu0
        %3120 = vmatprep.mubr.bf16.mxu0 %v2868
        %3121 = vmatmul.mubr.bf16.gmra.mxu0 %v2867
        %v3122 = vpop.f32.mrf.mxu0
        %v3123 = vadd.f32 %v2860, %v3122
        %v3124 = vpop.f32.mrf.mxu0
        %v3125 = vpop.f32.mrf.mxu0
        %v3126 = vadd.f32 %v2860, %v3125
        %v3127 = vpop.f32.mrf.mxu0
        %3128 = vmatprep.mubr.bf16.mxu0 %v2870
        %3129 = vmatmul.mubr.bf16.gmra.mxu0 %v2869
        %v3130 = vpop.f32.mrf.mxu0
        %v3131 = vadd.f32 %v2860, %v3130
        %v3132 = vpop.f32.mrf.mxu0
        %v3133 = vpop.f32.mrf.mxu0
        %v3134 = vadd.f32 %v2860, %v3133
        %v3135 = vpop.f32.mrf.mxu0
        %3136 = vmatprep.mubr.bf16.mxu0 %v2871
        %3137 = vmatmul.mubr.bf16.gmra.mxu0 %v2864
        %v3138 = vpop.f32.mrf.mxu0
        %v3139 = vadd.f32 %v2860, %v3138
        %v3140 = vpop.f32.mrf.mxu0
        %v3141 = vpop.f32.mrf.mxu0
        %v3142 = vadd.f32 %v2860, %v3141
        %v3143 = vpop.f32.mrf.mxu0
        %3144 = vmatprep.mubr.bf16.mxu0 %v2872
        %3145 = vmatmul.mubr.bf16.gmra.mxu0 %v2866
        %v3146 = vpop.f32.mrf.mxu0
        %v3147 = vadd.f32 %v2860, %v3146
        %v3148 = vpop.f32.mrf.mxu0
        %v3149 = vpop.f32.mrf.mxu0
        %v3150 = vadd.f32 %v2860, %v3149
        %v3151 = vpop.f32.mrf.mxu0
        %3152 = vmatprep.mubr.bf16.mxu0 %v2873
        %3153 = vmatmul.mubr.bf16.gmra.mxu0 %v2868
        %v3154 = vpop.f32.mrf.mxu0
        %v3155 = vadd.f32 %v2860, %v3154
        %v3156 = vpop.f32.mrf.mxu0
        %v3157 = vpop.f32.mrf.mxu0
        %v3158 = vadd.f32 %v2860, %v3157
        %v3159 = vpop.f32.mrf.mxu0
        %3160 = vmatprep.mubr.bf16.mxu0 %v2874
        %3161 = vmatmul.mubr.bf16.gmra.mxu0 %v2870
        %v3162 = vpop.f32.mrf.mxu0
        %v3163 = vadd.f32 %v2860, %v3162
        %v3164 = vpop.f32.mrf.mxu0
        %v3165 = vpop.f32.mrf.mxu0
        %v3166 = vadd.f32 %v2860, %v3165
        %v3167 = vpop.f32.mrf.mxu0
        %3168 = vmatprep.mubr.bf16.mxu0 %v2875
        %3169 = vmatmul.mubr.bf16.gmra.mxu0 %v2871
        %v3170 = vpop.f32.mrf.mxu0
        %v3171 = vadd.f32 %v2860, %v3170
        %v3172 = vpop.f32.mrf.mxu0
        %v3173 = vpop.f32.mrf.mxu0
        %v3174 = vadd.f32 %v2860, %v3173
        %v3175 = vpop.f32.mrf.mxu0
        %3176 = vmatprep.mubr.bf16.mxu0 %v2876
        %3177 = vmatmul.mubr.bf16.gmra.mxu0 %v2872
        %v3178 = vpop.f32.mrf.mxu0
        %v3179 = vadd.f32 %v2860, %v3178
        %v3180 = vpop.f32.mrf.mxu0
        %v3181 = vpop.f32.mrf.mxu0
        %v3182 = vadd.f32 %v2860, %v3181
        %v3183 = vpop.f32.mrf.mxu0
        %3184 = vmatprep.mubr.bf16.mxu0 %v2877
        %3185 = vmatmul.mubr.bf16.gmra.mxu0 %v2873
        %v3186 = vpop.f32.mrf.mxu0
        %v3187 = vadd.f32 %v2860, %v3186
        %v3188 = vpop.f32.mrf.mxu0
        %v3189 = vpop.f32.mrf.mxu0
        %v3190 = vadd.f32 %v2860, %v3189
        %v3191 = vpop.f32.mrf.mxu0
        %3192 = vmatprep.mubr.bf16.mxu0 %v2878
        %3193 = vmatmul.mubr.bf16.gmra.mxu0 %v2874
        %v3194 = vpop.f32.mrf.mxu0
        %v3195 = vadd.f32 %v2860, %v3194
        %v3196 = vpop.f32.mrf.mxu0
        %v3197 = vpop.f32.mrf.mxu0
        %v3198 = vadd.f32 %v2860, %v3197
        %v3199 = vpop.f32.mrf.mxu0
        %3200 = vdwg.mxu0
        %3201 = vmatprep.subr.bf16.mxu0 0
        %3202 = vmatpush1.bf16.msra.mxu0 %v3015
        %3203 = vmatprep.subr.bf16.mxu0 0
        %3204 = vmatpush1.bf16.msra.mxu0 %v3014
        %3205 = vmatprep.subr.bf16.mxu0 0
        %3206 = vmatpush1.bf16.msra.mxu0 %v3013
        %3207 = vmatprep.subr.bf16.mxu0 0
        %3208 = vmatpush1.bf16.msra.mxu0 %v3012
        %3209 = vmatprep.subr.bf16.mxu0 0
        %3210 = vmatpush1.bf16.msra.mxu0 %v3011
        %3211 = vmatprep.subr.bf16.mxu0 0
        %3212 = vmatpush1.bf16.msra.mxu0 %v3010
        %3213 = vmatprep.subr.bf16.mxu0 0
        %3214 = vmatpush1.bf16.msra.mxu0 %v3009
        %3215 = vmatprep.subr.bf16.mxu0 0
        %3216 = vmatpush1.bf16.msra.mxu0 %v3008
        %3217 = vmatprep.subr.bf16.mxu0 0
        %3218 = vmatpush2.bf16.msra.mxu0 0
        %3219 = vmatprep.subr.bf16.mxu0 0
        %3220 = vmatpush2.bf16.msra.mxu0 0
        %3221 = vmatprep.subr.bf16.mxu0 0
        %3222 = vmatpush2.bf16.msra.mxu0 0
        %3223 = vmatprep.subr.bf16.mxu0 0
        %3224 = vmatpush2.bf16.msra.mxu0 0
        %3225 = vmatprep.subr.bf16.mxu0 0
        %3226 = vmatpush2.bf16.msra.mxu0 0
        %3227 = vmatprep.subr.bf16.mxu0 0
        %3228 = vmatpush2.bf16.msra.mxu0 0
        %3229 = vmatprep.subr.bf16.mxu0 0
        %3230 = vmatpush2.bf16.msra.mxu0 0
        %3231 = vmatprep.subr.bf16.mxu0 0
        %3232 = vmatpush2.bf16.msra.mxu0 0
        %3233 = vmatprep.mubr.bf16.mxu0 0
        %3234 = vmatmul.mubr.bf16.gmra.mxu0 %v2864
        %v3235 = vpop.f32.mrf.mxu0
        %v3236 = vadd.f32 %v3075, %v3235
        %v3237 = vpop.f32.mrf.mxu0
        %v3238 = vpop.f32.mrf.mxu0
        %v3239 = vadd.f32 %v3078, %v3238
        %v3240 = vpop.f32.mrf.mxu0
        %3241 = vmatprep.mubr.bf16.mxu0 0
        %3242 = vmatmul.mubr.bf16.gmra.mxu0 %v2866
        %v3243 = vpop.f32.mrf.mxu0
        %v3244 = vadd.f32 %v3083, %v3243
        %v3245 = vpop.f32.mrf.mxu0
        %v3246 = vpop.f32.mrf.mxu0
        %v3247 = vadd.f32 %v3086, %v3246
        %v3248 = vpop.f32.mrf.mxu0
        %3249 = vmatprep.mubr.bf16.mxu0 0
        %3250 = vmatmul.mubr.bf16.gmra.mxu0 %v2868
        %v3251 = vpop.f32.mrf.mxu0
        %v3252 = vadd.f32 %v3091, %v3251
        %v3253 = vpop.f32.mrf.mxu0
        %v3254 = vpop.f32.mrf.mxu0
        %v3255 = vadd.f32 %v3094, %v3254
        %v3256 = vpop.f32.mrf.mxu0
        %3257 = vmatprep.mubr.bf16.mxu0 0
        %3258 = vmatmul.mubr.bf16.gmra.mxu0 %v2870
        %v3259 = vpop.f32.mrf.mxu0
        %v3260 = vadd.f32 %v3099, %v3259
        %v3261 = vpop.f32.mrf.mxu0
        %v3262 = vpop.f32.mrf.mxu0
        %v3263 = vadd.f32 %v3102, %v3262
        %v3264 = vpop.f32.mrf.mxu0
        %3265 = vmatprep.mubr.bf16.mxu0 0
        %3266 = vmatmul.mubr.bf16.gmra.mxu0 %v2871
        %v3267 = vpop.f32.mrf.mxu0
        %v3268 = vadd.f32 %v3107, %v3267
        %v3269 = vpop.f32.mrf.mxu0
        %v3270 = vpop.f32.mrf.mxu0
        %v3271 = vadd.f32 %v3110, %v3270
        %v3272 = vpop.f32.mrf.mxu0
        %3273 = vmatprep.mubr.bf16.mxu0 0
        %3274 = vmatmul.mubr.bf16.gmra.mxu0 %v2872
        %v3275 = vpop.f32.mrf.mxu0
        %v3276 = vadd.f32 %v3115, %v3275
        %v3277 = vpop.f32.mrf.mxu0
        %v3278 = vpop.f32.mrf.mxu0
        %v3279 = vadd.f32 %v3118, %v3278
        %v3280 = vpop.f32.mrf.mxu0
        %3281 = vmatprep.mubr.bf16.mxu0 0
        %3282 = vmatmul.mubr.bf16.gmra.mxu0 %v2873
        %v3283 = vpop.f32.mrf.mxu0
        %v3284 = vadd.f32 %v3123, %v3283
        %v3285 = vpop.f32.mrf.mxu0
        %v3286 = vpop.f32.mrf.mxu0
        %v3287 = vadd.f32 %v3126, %v3286
        %v3288 = vpop.f32.mrf.mxu0
        %3289 = vmatprep.mubr.bf16.mxu0 0
        %3290 = vmatmul.mubr.bf16.gmra.mxu0 %v2874
        %v3291 = vpop.f32.mrf.mxu0
        %v3292 = vadd.f32 %v3131, %v3291
        %v3293 = vpop.f32.mrf.mxu0
        %v3294 = vpop.f32.mrf.mxu0
        %v3295 = vadd.f32 %v3134, %v3294
        %v3296 = vpop.f32.mrf.mxu0
        %3297 = vmatprep.mubr.bf16.mxu0 0
        %3298 = vmatmul.mubr.bf16.gmra.mxu0 %v2875
        %v3299 = vpop.f32.mrf.mxu0
        %v3300 = vadd.f32 %v3139, %v3299
        %v3301 = vpop.f32.mrf.mxu0
        %v3302 = vpop.f32.mrf.mxu0
        %v3303 = vadd.f32 %v3142, %v3302
        %v3304 = vpop.f32.mrf.mxu0
        %3305 = vmatprep.mubr.bf16.mxu0 0
        %3306 = vmatmul.mubr.bf16.gmra.mxu0 %v2876
        %v3307 = vpop.f32.mrf.mxu0
        %v3308 = vadd.f32 %v3147, %v3307
        %v3309 = vpop.f32.mrf.mxu0
        %v3310 = vpop.f32.mrf.mxu0
        %v3311 = vadd.f32 %v3150, %v3310
        %v3312 = vpop.f32.mrf.mxu0
        %3313 = vmatprep.mubr.bf16.mxu0 0
        %3314 = vmatmul.mubr.bf16.gmra.mxu0 %v2877
        %v3315 = vpop.f32.mrf.mxu0
        %v3316 = vadd.f32 %v3155, %v3315
        %v3317 = vpop.f32.mrf.mxu0
        %v3318 = vpop.f32.mrf.mxu0
        %v3319 = vadd.f32 %v3158, %v3318
        %v3320 = vpop.f32.mrf.mxu0
        %3321 = vmatprep.mubr.bf16.mxu0 0
        %3322 = vmatmul.mubr.bf16.gmra.mxu0 %v2878
        %v3323 = vpop.f32.mrf.mxu0
        %v3324 = vadd.f32 %v3163, %v3323
        %v3325 = vpop.f32.mrf.mxu0
        %v3326 = vpop.f32.mrf.mxu0
        %v3327 = vadd.f32 %v3166, %v3326
        %v3328 = vpop.f32.mrf.mxu0
        %3329 = vmatprep.mubr.bf16.mxu0 0
        %3330 = vmatmul.mubr.bf16.gmra.mxu0 %v2862
        %v3331 = vpop.f32.mrf.mxu0
        %v3332 = vadd.f32 %v3171, %v3331
        %v3333 = vpop.f32.mrf.mxu0
        %v3334 = vpop.f32.mrf.mxu0
        %v3335 = vadd.f32 %v3174, %v3334
        %v3336 = vpop.f32.mrf.mxu0
        %3337 = vmatprep.mubr.bf16.mxu0 0
        %3338 = vmatmul.mubr.bf16.gmra.mxu0 %v2862
        %v3339 = vpop.f32.mrf.mxu0
        %v3340 = vadd.f32 %v3179, %v3339
        %v3341 = vpop.f32.mrf.mxu0
        %v3342 = vpop.f32.mrf.mxu0
        %v3343 = vadd.f32 %v3182, %v3342
        %v3344 = vpop.f32.mrf.mxu0
        %3345 = vmatprep.mubr.bf16.mxu0 0
        %3346 = vmatmul.mubr.bf16.gmra.mxu0 %v2862
        %v3347 = vpop.f32.mrf.mxu0
        %v3348 = vadd.f32 %v3187, %v3347
        %v3349 = vpop.f32.mrf.mxu0
        %v3350 = vpop.f32.mrf.mxu0
        %v3351 = vadd.f32 %v3190, %v3350
        %v3352 = vpop.f32.mrf.mxu0
        %3353 = vmatprep.mubr.bf16.mxu0 0
        %3354 = vmatmul.mubr.bf16.gmra.mxu0 %v2862
        %v3355 = vpop.f32.mrf.mxu0
        %v3356 = vadd.f32 %v3195, %v3355
        %v3357 = vpop.f32.mrf.mxu0
        %v3358 = vpop.f32.mrf.mxu0
        %v3359 = vadd.f32 %v3198, %v3358
        %v3360 = vpop.f32.mrf.mxu0
        %3361 = vdwg.mxu0
        %v3362 = vmax.f32 %v3236, 0.0
        %v3363 = vmax.f32 %v3239, 0.0
        %v3364 = vmax.f32 %v3244, 0.0
        %v3365 = vmax.f32 %v3247, 0.0
        %v3366 = vmax.f32 %v3252, 0.0
        %v3367 = vmax.f32 %v3255, 0.0
        %v3368 = vmax.f32 %v3260, 0.0
        %v3369 = vmax.f32 %v3263, 0.0
        %v3370 = vmax.f32 %v3268, 0.0
        %v3371 = vmax.f32 %v3271, 0.0
        %v3372 = vmax.f32 %v3276, 0.0
        %v3373 = vmax.f32 %v3279, 0.0
        %v3374 = vmax.f32 %v3284, 0.0
        %v3375 = vmax.f32 %v3287, 0.0
        %v3376 = vmax.f32 %v3292, 0.0
        %v3377 = vmax.f32 %v3295, 0.0
        %v3378 = vmax.f32 %v3300, 0.0
        %v3379 = vmax.f32 %v3303, 0.0
        %v3380 = vmax.f32 %v3308, 0.0
        %v3381 = vmax.f32 %v3311, 0.0
        %v3382 = vmax.f32 %v3316, 0.0
        %v3383 = vmax.f32 %v3319, 0.0
        %v3384 = vmax.f32 %v3324, 0.0
        %v3385 = vmax.f32 %v3327, 0.0
        %v3386 = vmax.f32 %v3332, 0.0
        %v3387 = vmax.f32 %v3335, 0.0
        %v3388 = vmax.f32 %v3340, 0.0
        %v3389 = vmax.f32 %v3343, 0.0
        %v3390 = vmax.f32 %v3348, 0.0
        %v3391 = vmax.f32 %v3351, 0.0
        %v3392 = vmax.f32 %v3356, 0.0
        %v3393 = vmax.f32 %v3359, 0.0
        %v3394 = vpack.c.bf16 %v3363, %v3362
        %v3395 = vpack.c.bf16 %v3365, %v3364
        %v3396 = vpack.c.bf16 %v3367, %v3366
        %v3397 = vpack.c.bf16 %v3369, %v3368
        %v3398 = vpack.c.bf16 %v3371, %v3370
        %v3399 = vpack.c.bf16 %v3373, %v3372
        %v3400 = vpack.c.bf16 %v3375, %v3374
        %v3401 = vpack.c.bf16 %v3377, %v3376
        %v3402 = vpack.c.bf16 %v3379, %v3378
        %v3403 = vpack.c.bf16 %v3381, %v3380
        %v3404 = vpack.c.bf16 %v3383, %v3382
        %v3405 = vpack.c.bf16 %v3385, %v3384
        %v3406 = vpack.c.bf16 %v3387, %v3386
        %v3407 = vpack.c.bf16 %v3389, %v3388
        %v3408 = vpack.c.bf16 %v3391, %v3390
        %v3409 = vpack.c.bf16 %v3393, %v3392
        %v3426 = vunpack.c.l.b16 %v3394
        %v3427 = vunpack.c.h.b16 %v3394
        %v3428 = vunpack.c.l.b16 %v3395
        %v3429 = vunpack.c.h.b16 %v3395
        %v3430 = vunpack.c.l.b16 %v3396
        %v3431 = vunpack.c.h.b16 %v3396
        %v3432 = vunpack.c.l.b16 %v3397
        %v3433 = vunpack.c.h.b16 %v3397
        %v3434 = vunpack.c.l.b16 %v3398
        %v3435 = vunpack.c.h.b16 %v3398
        %v3436 = vunpack.c.l.b16 %v3399
        %v3437 = vunpack.c.h.b16 %v3399
        %v3438 = vunpack.c.l.b16 %v3400
        %v3439 = vunpack.c.h.b16 %v3400
        %v3440 = vunpack.c.l.b16 %v3401
        %v3441 = vunpack.c.h.b16 %v3401
        %v3442 = vunpack.c.l.b16 %v3402
        %v3443 = vunpack.c.h.b16 %v3402
        %v3444 = vunpack.c.l.b16 %v3403
        %v3445 = vunpack.c.h.b16 %v3403
        %v3446 = vunpack.c.l.b16 %v3404
        %v3447 = vunpack.c.h.b16 %v3404
        %v3448 = vunpack.c.l.b16 %v3405
        %v3449 = vunpack.c.h.b16 %v3405
        %v3450 = vunpack.c.l.b16 %v3406
        %v3451 = vunpack.c.h.b16 %v3406
        %v3452 = vunpack.c.l.b16 %v3407
        %v3453 = vunpack.c.h.b16 %v3407
        %v3454 = vunpack.c.l.b16 %v3408
        %v3455 = vunpack.c.h.b16 %v3408
        %v3456 = vunpack.c.l.b16 %v3409
        %v3457 = vunpack.c.h.b16 %v3409
        %v3458 = vpack.c.b16 %v3426, %v3426
        %v3459 = vpack.c.b16 %v3427, %v3427
        %v3460 = vpack.c.b16 %v3428, %v3428
        %v3461 = vpack.c.b16 %v3429, %v3429
        %v3462 = vpack.c.b16 %v3430, %v3430
        %v3463 = vpack.c.b16 %v3431, %v3431
        %v3464 = vpack.c.b16 %v3432, %v3432
        %v3465 = vpack.c.b16 %v3434, %v3434
        %v3466 = vpack.c.b16 %v3435, %v3435
        %v3467 = vpack.c.b16 %v3436, %v3436
        %v3468 = vpack.c.b16 %v3437, %v3437
        %v3469 = vpack.c.b16 %v3438, %v3438
        %v3470 = vpack.c.b16 %v3439, %v3439
        %v3471 = vpack.c.b16 %v3440, %v3440
        %v3472 = vpack.c.b16 %v3442, %v3442
        %v3473 = vpack.c.b16 %v3443, %v3443
        %v3474 = vpack.c.b16 %v3444, %v3444
        %v3475 = vpack.c.b16 %v3445, %v3445
        %v3476 = vpack.c.b16 %v3446, %v3446
        %v3477 = vpack.c.b16 %v3447, %v3447
        %v3478 = vpack.c.b16 %v3448, %v3448
        %v3479 = vpack.c.b16 %v3450, %v3450
        %v3480 = vpack.c.b16 %v3451, %v3451
        %v3481 = vpack.c.b16 %v3452, %v3452
        %v3482 = vpack.c.b16 %v3453, %v3453
        %v3483 = vpack.c.b16 %v3454, %v3454
        %v3484 = vpack.c.b16 %v3455, %v3455
        %v3485 = vpack.c.b16 %v3456, %v3456
        %v3487 = vshrl.u32 %v3458, 16
        %v3489 = vrot.slane %v3487, 7
        %v3490 = vshll.u32 %v3458, 16
        %v3492 = vor.u32 %v3489, %v3490
        %v3494 = vshrl.u32 %v3459, 16
        %v3496 = vrot.slane %v3494, 7
        %v3497 = vshll.u32 %v3459, 16
        %v3499 = vor.u32 %v3496, %v3497
        %v3501 = vshrl.u32 %v3460, 16
        %v3503 = vrot.slane %v3501, 7
        %v3504 = vshll.u32 %v3460, 16
        %v3506 = vor.u32 %v3503, %v3504
        %v3508 = vshrl.u32 %v3461, 16
        %v3510 = vrot.slane %v3508, 7
        %v3511 = vshll.u32 %v3461, 16
        %v3513 = vor.u32 %v3510, %v3511
        %v3515 = vshrl.u32 %v3462, 16
        %v3517 = vrot.slane %v3515, 7
        %v3518 = vshll.u32 %v3462, 16
        %v3520 = vor.u32 %v3517, %v3518
        %v3522 = vshrl.u32 %v3463, 16
        %v3524 = vrot.slane %v3522, 7
        %v3525 = vshll.u32 %v3463, 16
        %v3527 = vor.u32 %v3524, %v3525
        %v3529 = vshrl.u32 %v3464, 16
        %v3531 = vrot.slane %v3529, 7
        %v3532 = vshll.u32 %v3464, 16
        %v3534 = vor.u32 %v3531, %v3532
        %v3536 = vshrl.u32 %v3465, 16
        %v3538 = vrot.slane %v3536, 7
        %v3539 = vshll.u32 %v3465, 16
        %v3541 = vor.u32 %v3538, %v3539
        %v3543 = vshrl.u32 %v3466, 16
        %v3545 = vrot.slane %v3543, 7
        %v3546 = vshll.u32 %v3466, 16
        %v3548 = vor.u32 %v3545, %v3546
        %v3550 = vshrl.u32 %v3467, 16
        %v3552 = vrot.slane %v3550, 7
        %v3553 = vshll.u32 %v3467, 16
        %v3555 = vor.u32 %v3552, %v3553
        %v3557 = vshrl.u32 %v3468, 16
        %v3559 = vrot.slane %v3557, 7
        %v3560 = vshll.u32 %v3468, 16
        %v3562 = vor.u32 %v3559, %v3560
        %v3564 = vshrl.u32 %v3469, 16
        %v3566 = vrot.slane %v3564, 7
        %v3567 = vshll.u32 %v3469, 16
        %v3569 = vor.u32 %v3566, %v3567
        %v3571 = vshrl.u32 %v3470, 16
        %v3573 = vrot.slane %v3571, 7
        %v3574 = vshll.u32 %v3470, 16
        %v3576 = vor.u32 %v3573, %v3574
        %v3578 = vshrl.u32 %v3471, 16
        %v3580 = vrot.slane %v3578, 7
        %v3581 = vshll.u32 %v3471, 16
        %v3583 = vor.u32 %v3580, %v3581
        %v3585 = vshrl.u32 %v3472, 16
        %v3587 = vrot.slane %v3585, 7
        %v3588 = vshll.u32 %v3472, 16
        %v3590 = vor.u32 %v3587, %v3588
        %v3592 = vshrl.u32 %v3473, 16
        %v3594 = vrot.slane %v3592, 7
        %v3595 = vshll.u32 %v3473, 16
        %v3597 = vor.u32 %v3594, %v3595
        %v3599 = vshrl.u32 %v3474, 16
        %v3601 = vrot.slane %v3599, 7
        %v3602 = vshll.u32 %v3474, 16
        %v3604 = vor.u32 %v3601, %v3602
        %v3606 = vshrl.u32 %v3475, 16
        %v3608 = vrot.slane %v3606, 7
        %v3609 = vshll.u32 %v3475, 16
        %v3611 = vor.u32 %v3608, %v3609
        %v3613 = vshrl.u32 %v3476, 16
        %v3615 = vrot.slane %v3613, 7
        %v3616 = vshll.u32 %v3476, 16
        %v3618 = vor.u32 %v3615, %v3616
        %v3620 = vshrl.u32 %v3477, 16
        %v3622 = vrot.slane %v3620, 7
        %v3623 = vshll.u32 %v3477, 16
        %v3625 = vor.u32 %v3622, %v3623
        %v3627 = vshrl.u32 %v3478, 16
        %v3629 = vrot.slane %v3627, 7
        %v3630 = vshll.u32 %v3478, 16
        %v3632 = vor.u32 %v3629, %v3630
        %v3634 = vshrl.u32 %v3479, 16
        %v3636 = vrot.slane %v3634, 7
        %v3637 = vshll.u32 %v3479, 16
        %v3639 = vor.u32 %v3636, %v3637
        %v3641 = vshrl.u32 %v3480, 16
        %v3643 = vrot.slane %v3641, 7
        %v3644 = vshll.u32 %v3480, 16
        %v3646 = vor.u32 %v3643, %v3644
        %v3648 = vshrl.u32 %v3481, 16
        %v3650 = vrot.slane %v3648, 7
        %v3651 = vshll.u32 %v3481, 16
        %v3653 = vor.u32 %v3650, %v3651
        %v3655 = vshrl.u32 %v3482, 16
        %v3657 = vrot.slane %v3655, 7
        %v3658 = vshll.u32 %v3482, 16
        %v3660 = vor.u32 %v3657, %v3658
        %v3662 = vshrl.u32 %v3483, 16
        %v3664 = vrot.slane %v3662, 7
        %v3665 = vshll.u32 %v3483, 16
        %v3667 = vor.u32 %v3664, %v3665
        %v3669 = vshrl.u32 %v3484, 16
        %v3671 = vrot.slane %v3669, 7
        %v3672 = vshll.u32 %v3484, 16
        %v3674 = vor.u32 %v3671, %v3672
        %v3676 = vshrl.u32 %v3485, 16
        %v3678 = vrot.slane %v3676, 7
        %v3679 = vshll.u32 %v3485, 16
        %v3681 = vor.u32 %v3678, %v3679
        %v3710 = vsel %vm708, 0, %v3492
        %v3711 = vsel %vm708, 0, %v3499
        %v3712 = vsel %vm708, 0, %v3506
        %v3713 = vsel %vm708, 0, %v3513
        %v3714 = vsel %vm708, 0, %v3520
        %v3715 = vsel %vm708, 0, %v3527
        %v3716 = vsel %vm708, 0, %v3534
        %v3717 = vsel %vm708, 0, %v3541
        %v3718 = vsel %vm708, 0, %v3548
        %v3719 = vsel %vm708, 0, %v3555
        %v3720 = vsel %vm708, 0, %v3562
        %v3721 = vsel %vm708, 0, %v3569
        %v3722 = vsel %vm708, 0, %v3576
        %v3723 = vsel %vm708, 0, %v3583
        %v3724 = vsel %vm708, 0, %v3590
        %v3725 = vsel %vm708, 0, %v3597
        %v3726 = vsel %vm708, 0, %v3604
        %v3727 = vsel %vm708, 0, %v3611
        %v3728 = vsel %vm708, 0, %v3618
        %v3729 = vsel %vm708, 0, %v3625
        %v3730 = vsel %vm708, 0, %v3632
        %v3731 = vsel %vm708, 0, %v3639
        %v3732 = vsel %vm708, 0, %v3646
        %v3733 = vsel %vm708, 0, %v3653
        %v3734 = vsel %vm708, 0, %v3660
        %v3735 = vsel %vm708, 0, %v3667
        %v3736 = vsel %vm708, 0, %v3674
        %v3737 = vsel %vm708, 0, %v3681
        %v3738 = vrot.slane %v3490, 1
        %v3739 = vor.u32 %v3487, %v3738
        %v3740 = vrot.slane %v3497, 1
        %v3741 = vor.u32 %v3494, %v3740
        %v3742 = vrot.slane %v3504, 1
        %v3743 = vor.u32 %v3501, %v3742
        %v3744 = vrot.slane %v3511, 1
        %v3745 = vor.u32 %v3508, %v3744
        %v3746 = vrot.slane %v3518, 1
        %v3747 = vor.u32 %v3515, %v3746
        %v3748 = vrot.slane %v3525, 1
        %v3749 = vor.u32 %v3522, %v3748
        %v3750 = vrot.slane %v3532, 1
        %v3751 = vor.u32 %v3529, %v3750
        %v3752 = vrot.slane %v3539, 1
        %v3753 = vor.u32 %v3536, %v3752
        %v3754 = vrot.slane %v3546, 1
        %v3755 = vor.u32 %v3543, %v3754
        %v3756 = vrot.slane %v3553, 1
        %v3757 = vor.u32 %v3550, %v3756
        %v3758 = vrot.slane %v3560, 1
        %v3759 = vor.u32 %v3557, %v3758
        %v3760 = vrot.slane %v3567, 1
        %v3761 = vor.u32 %v3564, %v3760
        %v3762 = vrot.slane %v3574, 1
        %v3763 = vor.u32 %v3571, %v3762
        %v3764 = vrot.slane %v3581, 1
        %v3765 = vor.u32 %v3578, %v3764
        %v3766 = vrot.slane %v3588, 1
        %v3767 = vor.u32 %v3585, %v3766
        %v3768 = vrot.slane %v3595, 1
        %v3769 = vor.u32 %v3592, %v3768
        %v3770 = vrot.slane %v3602, 1
        %v3771 = vor.u32 %v3599, %v3770
        %v3772 = vrot.slane %v3609, 1
        %v3773 = vor.u32 %v3606, %v3772
        %v3774 = vrot.slane %v3616, 1
        %v3775 = vor.u32 %v3613, %v3774
        %v3776 = vrot.slane %v3623, 1
        %v3777 = vor.u32 %v3620, %v3776
        %v3778 = vrot.slane %v3630, 1
        %v3779 = vor.u32 %v3627, %v3778
        %v3780 = vrot.slane %v3637, 1
        %v3781 = vor.u32 %v3634, %v3780
        %v3782 = vrot.slane %v3644, 1
        %v3783 = vor.u32 %v3641, %v3782
        %v3784 = vrot.slane %v3651, 1
        %v3785 = vor.u32 %v3648, %v3784
        %v3786 = vrot.slane %v3658, 1
        %v3787 = vor.u32 %v3655, %v3786
        %v3788 = vrot.slane %v3665, 1
        %v3789 = vor.u32 %v3662, %v3788
        %v3790 = vrot.slane %v3672, 1
        %v3791 = vor.u32 %v3669, %v3790
        %v3792 = vrot.slane %v3679, 1
        %v3793 = vor.u32 %v3676, %v3792
        %v3822 = vsel %vm827, %v3739, 0
        %v3823 = vsel %vm827, %v3741, 0
        %v3824 = vsel %vm827, %v3743, 0
        %v3825 = vsel %vm827, %v3745, 0
        %v3826 = vsel %vm827, %v3747, 0
        %v3827 = vsel %vm827, %v3749, 0
        %v3828 = vsel %vm827, %v3751, 0
        %v3829 = vsel %vm827, %v3753, 0
        %v3830 = vsel %vm827, %v3755, 0
        %v3831 = vsel %vm827, %v3757, 0
        %v3832 = vsel %vm827, %v3759, 0
        %v3833 = vsel %vm827, %v3761, 0
        %v3834 = vsel %vm827, %v3763, 0
        %v3835 = vsel %vm827, %v3765, 0
        %v3836 = vsel %vm827, %v3767, 0
        %v3837 = vsel %vm827, %v3769, 0
        %v3838 = vsel %vm827, %v3771, 0
        %v3839 = vsel %vm827, %v3773, 0
        %v3840 = vsel %vm827, %v3775, 0
        %v3841 = vsel %vm827, %v3777, 0
        %v3842 = vsel %vm827, %v3779, 0
        %v3843 = vsel %vm827, %v3781, 0
        %v3844 = vsel %vm827, %v3783, 0
        %v3845 = vsel %vm827, %v3785, 0
        %v3846 = vsel %vm827, %v3787, 0
        %v3847 = vsel %vm827, %v3789, 0
        %v3848 = vsel %vm827, %v3791, 0
        %v3849 = vsel %vm827, %v3793, 0
        %v3850 = vpack.c.b16 %v3433, %v3433
        %v3851 = vpack.c.b16 %v3441, %v3441
        %v3852 = vpack.c.b16 %v3449, %v3449
        %v3853 = vpack.c.b16 %v3457, %v3457
        %v3855 = vshrl.u32 %v3850, 16
        %v3857 = vrot.slane %v3855, 7
        %v3858 = vshll.u32 %v3850, 16
        %v3860 = vor.u32 %v3857, %v3858
        %v3862 = vshrl.u32 %v3851, 16
        %v3864 = vrot.slane %v3862, 7
        %v3865 = vshll.u32 %v3851, 16
        %v3867 = vor.u32 %v3864, %v3865
        %v3869 = vshrl.u32 %v3852, 16
        %v3871 = vrot.slane %v3869, 7
        %v3872 = vshll.u32 %v3852, 16
        %v3874 = vor.u32 %v3871, %v3872
        %v3876 = vshrl.u32 %v3853, 16
        %v3878 = vrot.slane %v3876, 7
        %v3879 = vshll.u32 %v3853, 16
        %v3881 = vor.u32 %v3878, %v3879
        %v3886 = vsel %vm708, 0, %v3860
        %v3887 = vsel %vm708, 0, %v3867
        %v3888 = vsel %vm708, 0, %v3874
        %v3889 = vsel %vm708, 0, %v3881
        %v3890 = vrot.slane %v3858, 1
        %v3891 = vor.u32 %v3855, %v3890
        %v3892 = vrot.slane %v3865, 1
        %v3893 = vor.u32 %v3862, %v3892
        %v3894 = vrot.slane %v3872, 1
        %v3895 = vor.u32 %v3869, %v3894
        %v3896 = vrot.slane %v3879, 1
        %v3897 = vor.u32 %v3876, %v3896
        %v3902 = vsel %vm827, %v3891, 0
        %v3903 = vsel %vm827, %v3893, 0
        %v3904 = vsel %vm827, %v3895, 0
        %v3905 = vsel %vm827, %v3897, 0
        %v3907 = vshrl.u32 %v2862, 16
        %v3909 = vrot.slane %v3907, 7
        %v3910 = vshll.u32 %v2862, 16
        %v3912 = vor.u32 %v3909, %v3910
        %v3914 = vsel %vm708, 0, %v3912
        %v3915 = vrot.slane %v3910, 1
        %v3916 = vor.u32 %v3907, %v3915
        %v3918 = vsel %vm827, %v3916, 0
        %v3985 = vunpack.c.l.b16 %v3710
        %v3986 = vunpack.c.l.b16 %v3822
        %v3987 = vunpack.c.l.b16 %v3711
        %v3988 = vunpack.c.l.b16 %v3823
        %v3989 = vunpack.c.l.b16 %v3712
        %v3990 = vunpack.c.l.b16 %v3824
        %v3991 = vunpack.c.l.b16 %v3713
        %v3992 = vunpack.c.l.b16 %v3825
        %v3993 = vunpack.c.l.b16 %v3714
        %v3994 = vunpack.c.l.b16 %v3826
        %v3995 = vunpack.c.l.b16 %v3715
        %v3996 = vunpack.c.l.b16 %v3827
        %v3997 = vunpack.c.l.b16 %v3716
        %v3998 = vunpack.c.l.b16 %v3828
        %v3999 = vunpack.c.l.b16 %v3886
        %v4000 = vunpack.c.l.b16 %v3902
        %v4001 = vunpack.c.l.b16 %v3914
        %v4002 = vunpack.c.l.b16 %v3918
        %v4003 = vunpack.c.l.b16 %v3717
        %v4004 = vunpack.c.l.b16 %v3829
        %v4005 = vunpack.c.l.b16 %v3718
        %v4006 = vunpack.c.l.b16 %v3830
        %v4007 = vunpack.c.l.b16 %v3719
        %v4008 = vunpack.c.l.b16 %v3831
        %v4009 = vunpack.c.l.b16 %v3720
        %v4010 = vunpack.c.l.b16 %v3832
        %v4011 = vunpack.c.l.b16 %v3721
        %v4012 = vunpack.c.l.b16 %v3833
        %v4013 = vunpack.c.l.b16 %v3722
        %v4014 = vunpack.c.l.b16 %v3834
        %v4015 = vunpack.c.l.b16 %v3723
        %v4016 = vunpack.c.l.b16 %v3835
        %v4017 = vunpack.c.l.b16 %v3887
        %v4018 = vunpack.c.l.b16 %v3903
        %v4019 = vunpack.c.l.b16 %v3724
        %v4020 = vunpack.c.l.b16 %v3836
        %v4021 = vunpack.c.l.b16 %v3725
        %v4022 = vunpack.c.l.b16 %v3837
        %v4023 = vunpack.c.l.b16 %v3726
        %v4024 = vunpack.c.l.b16 %v3838
        %v4025 = vunpack.c.l.b16 %v3727
        %v4026 = vunpack.c.l.b16 %v3839
        %v4027 = vunpack.c.l.b16 %v3728
        %v4028 = vunpack.c.l.b16 %v3840
        %v4029 = vunpack.c.l.b16 %v3729
        %v4030 = vunpack.c.l.b16 %v3841
        %v4031 = vunpack.c.l.b16 %v3730
        %v4032 = vunpack.c.l.b16 %v3842
        %v4033 = vunpack.c.l.b16 %v3888
        %v4034 = vunpack.c.l.b16 %v3904
        %v4035 = vunpack.c.l.b16 %v3731
        %v4036 = vunpack.c.l.b16 %v3843
        %v4037 = vunpack.c.l.b16 %v3732
        %v4038 = vunpack.c.l.b16 %v3844
        %v4039 = vunpack.c.l.b16 %v3733
        %v4040 = vunpack.c.l.b16 %v3845
        %v4041 = vunpack.c.l.b16 %v3734
        %v4042 = vunpack.c.l.b16 %v3846
        %v4043 = vunpack.c.l.b16 %v3735
        %v4044 = vunpack.c.l.b16 %v3847
        %v4045 = vunpack.c.l.b16 %v3736
        %v4046 = vunpack.c.l.b16 %v3848
        %v4047 = vunpack.c.l.b16 %v3737
        %v4048 = vunpack.c.l.b16 %v3849
        %v4049 = vunpack.c.l.b16 %v3889
        %v4050 = vunpack.c.l.b16 %v3905
        %v4051 = vld [vmem:[#allocation8] sm:$0xf]
        %v4052 = vld [vmem:[#allocation8 + $0x4] sm:$0xf]
        %v4053 = vld [vmem:[#allocation8 + $0x8] sm:$0xf]
        %v4054 = vld [vmem:[#allocation8 + $0xc] sm:$0xf]
        %v4055 = vld [vmem:[#allocation8 + $0x10] sm:$0xf]
        %v4056 = vld [vmem:[#allocation8 + $0x14] sm:$0xf]
        %v4057 = vld [vmem:[#allocation8 + $0x18] sm:$0xf]
        %v4058 = vld [vmem:[#allocation8 + $0x1c] sm:$0xf]
        %v4059 = vld [vmem:[#allocation8 + $0x20] sm:$0xf]
        %v4060 = vld [vmem:[#allocation8 + $0x24] sm:$0xf]
        %v4061 = vld [vmem:[#allocation8 + $0x28] sm:$0xf]
        %v4062 = vld [vmem:[#allocation8 + $0x2c] sm:$0xf]
        %v4063 = vld [vmem:[#allocation8 + $0x30] sm:$0xf]
        %v4064 = vld [vmem:[#allocation8 + $0x34] sm:$0xf]
        %v4065 = vld [vmem:[#allocation8 + $0x38] sm:$0xf]
        %v4066 = vld [vmem:[#allocation8 + $0x3c] sm:$0xf]
        %v4067 = vld [vmem:[#allocation8 + $0x40] sm:$0xf]
        %v4068 = vld [vmem:[#allocation8 + $0x44] sm:$0xf]
        %v4069 = vld [vmem:[#allocation8 + $0x48] sm:$0xf]
        %v4070 = vld [vmem:[#allocation8 + $0x4c] sm:$0xf]
        %v4071 = vld [vmem:[#allocation8 + $0x50] sm:$0xf]
        %v4072 = vld [vmem:[#allocation8 + $0x54] sm:$0xf]
        %v4073 = vld [vmem:[#allocation8 + $0x58] sm:$0xf]
        %v4074 = vld [vmem:[#allocation8 + $0x5c] sm:$0xf]
        %v4075 = vld [vmem:[#allocation8 + $0x60] sm:$0xf]
        %v4076 = vld [vmem:[#allocation8 + $0x64] sm:$0xf]
        %v4077 = vld [vmem:[#allocation8 + $0x68] sm:$0xf]
        %v4078 = vld [vmem:[#allocation8 + $0x6c] sm:$0xf]
        %v4079 = vld [vmem:[#allocation8 + $0x70] sm:$0xf]
        %v4080 = vld [vmem:[#allocation8 + $0x74] sm:$0xf]
        %v4081 = vld [vmem:[#allocation8 + $0x78] sm:$0xf]
        %v4082 = vld [vmem:[#allocation8 + $0x7c] sm:$0xf]
        %v4083 = vld [vmem:[#allocation8 + $0x80] sm:$0xf]
        %v4084 = vld [vmem:[#allocation8 + $0x84] sm:$0xf]
        %v4085 = vld [vmem:[#allocation8 + $0x88] sm:$0xf]
        %v4086 = vld [vmem:[#allocation8 + $0x8c] sm:$0xf]
        %v4087 = vld [vmem:[#allocation8 + $0x90] sm:$0xf]
        %v4088 = vld [vmem:[#allocation8 + $0x94] sm:$0xf]
        %v4089 = vld [vmem:[#allocation8 + $0x98] sm:$0xf]
        %v4090 = vld [vmem:[#allocation8 + $0x9c] sm:$0xf]
        %v4091 = vld [vmem:[#allocation8 + $0xa0] sm:$0xf]
        %v4092 = vld [vmem:[#allocation8 + $0xa4] sm:$0xf]
        %v4093 = vld [vmem:[#allocation8 + $0xa8] sm:$0xf]
        %v4094 = vld [vmem:[#allocation8 + $0xac] sm:$0xf]
        %v4095 = vld [vmem:[#allocation8 + $0xb0] sm:$0xf]
        %v4096 = vld [vmem:[#allocation8 + $0xb4] sm:$0xf]
        %v4097 = vld [vmem:[#allocation8 + $0xb8] sm:$0xf]
        %v4098 = vld [vmem:[#allocation8 + $0xbc] sm:$0xf]
        %v4099 = vld [vmem:[#allocation8 + $0xc0] sm:$0xf]
        %v4100 = vld [vmem:[#allocation8 + $0xc4] sm:$0xf]
        %v4101 = vld [vmem:[#allocation8 + $0xc8] sm:$0xf]
        %v4102 = vld [vmem:[#allocation8 + $0xcc] sm:$0xf]
        %v4103 = vld [vmem:[#allocation8 + $0xd0] sm:$0xf]
        %v4104 = vld [vmem:[#allocation8 + $0xd4] sm:$0xf]
        %v4105 = vld [vmem:[#allocation8 + $0xd8] sm:$0xf]
        %v4106 = vld [vmem:[#allocation8 + $0xdc] sm:$0xf]
        %v4107 = vld [vmem:[#allocation8 + $0xe0] sm:$0xf]
        %v4108 = vld [vmem:[#allocation8 + $0xe4] sm:$0xf]
        %v4109 = vld [vmem:[#allocation8 + $0xe8] sm:$0xf]
        %v4110 = vld [vmem:[#allocation8 + $0xec] sm:$0xf]
        %v4111 = vld [vmem:[#allocation8 + $0xf0] sm:$0xf]
        %v4112 = vld [vmem:[#allocation8 + $0xf4] sm:$0xf]
        %v4113 = vld [vmem:[#allocation8 + $0xf8] sm:$0xf]
        %v4114 = vld [vmem:[#allocation8 + $0xfc] sm:$0xf]
        %v4115 = vld [vmem:[#allocation8 + $0x100] sm:$0xf]
        %v4116 = vld [vmem:[#allocation8 + $0x104] sm:$0xf]
        %v4117 = vld [vmem:[#allocation8 + $0x108] sm:$0xf]
        %v4118 = vld [vmem:[#allocation8 + $0x10c] sm:$0xf]
        %v4119 = vld [vmem:[#allocation8 + $0x110] sm:$0xf]
        %v4120 = vld [vmem:[#allocation8 + $0x114] sm:$0xf]
        %v4121 = vld [vmem:[#allocation8 + $0x118] sm:$0xf]
        %v4122 = vld [vmem:[#allocation8 + $0x11c] sm:$0xf]
        %v4123 = vld [vmem:[#allocation8 + $0x120] sm:$0xf]
        %v4124 = vld [vmem:[#allocation8 + $0x124] sm:$0xf]
        %v4125 = vld [vmem:[#allocation8 + $0x128] sm:$0xf]
        %v4126 = vld [vmem:[#allocation8 + $0x12c] sm:$0xf]
        %v4127 = vld [vmem:[#allocation8 + $0x130] sm:$0xf]
        %v4128 = vld [vmem:[#allocation8 + $0x134] sm:$0xf]
        %v4129 = vld [vmem:[#allocation8 + $0x138] sm:$0xf]
        %v4130 = vld [vmem:[#allocation8 + $0x13c] sm:$0xf]
        %v4131 = vld [vmem:[#allocation8 + $0x140] sm:$0xf]
        %v4132 = vld [vmem:[#allocation8 + $0x144] sm:$0xf]
        %v4133 = vld [vmem:[#allocation8 + $0x148] sm:$0xf]
        %v4134 = vld [vmem:[#allocation8 + $0x14c] sm:$0xf]
        %v4135 = vld [vmem:[#allocation8 + $0x150] sm:$0xf]
        %v4136 = vld [vmem:[#allocation8 + $0x154] sm:$0xf]
        %v4137 = vld [vmem:[#allocation8 + $0x158] sm:$0xf]
        %v4138 = vld [vmem:[#allocation8 + $0x15c] sm:$0xf]
        %v4139 = vld [vmem:[#allocation8 + $0x160] sm:$0xf]
        %v4140 = vld [vmem:[#allocation8 + $0x164] sm:$0xf]
        %v4141 = vld [vmem:[#allocation8 + $0x168] sm:$0xf]
        %v4142 = vld [vmem:[#allocation8 + $0x16c] sm:$0xf]
        %v4143 = vld [vmem:[#allocation8 + $0x170] sm:$0xf]
        %v4144 = vld [vmem:[#allocation8 + $0x174] sm:$0xf]
        %v4145 = vld [vmem:[#allocation8 + $0x178] sm:$0xf]
        %v4146 = vld [vmem:[#allocation8 + $0x17c] sm:$0xf]
        %v4147 = vld [vmem:[#allocation8 + $0x180] sm:$0xf]
        %v4148 = vld [vmem:[#allocation8 + $0x184] sm:$0xf]
        %v4149 = vld [vmem:[#allocation8 + $0x188] sm:$0xf]
        %v4150 = vld [vmem:[#allocation8 + $0x18c] sm:$0xf]
        %v4151 = vld [vmem:[#allocation8 + $0x190] sm:$0xf]
        %v4152 = vld [vmem:[#allocation8 + $0x194] sm:$0xf]
        %v4153 = vld [vmem:[#allocation8 + $0x198] sm:$0xf]
        %v4154 = vld [vmem:[#allocation8 + $0x19c] sm:$0xf]
        %v4155 = vld [vmem:[#allocation8 + $0x1a0] sm:$0xf]
        %v4156 = vld [vmem:[#allocation8 + $0x1a4] sm:$0xf]
        %v4157 = vld [vmem:[#allocation8 + $0x1a8] sm:$0xf]
        %v4158 = vld [vmem:[#allocation8 + $0x1ac] sm:$0xf]
        %v4159 = vld [vmem:[#allocation8 + $0x1b0] sm:$0xf]
        %v4160 = vld [vmem:[#allocation8 + $0x1b4] sm:$0xf]
        %v4161 = vld [vmem:[#allocation8 + $0x1b8] sm:$0xf]
        %v4162 = vld [vmem:[#allocation8 + $0x1bc] sm:$0xf]
        %v4163 = vld [vmem:[#allocation8 + $0x1c0] sm:$0xf]
        %v4164 = vld [vmem:[#allocation8 + $0x1c4] sm:$0xf]
        %v4165 = vld [vmem:[#allocation8 + $0x1c8] sm:$0xf]
        %v4166 = vld [vmem:[#allocation8 + $0x1cc] sm:$0xf]
        %v4167 = vld [vmem:[#allocation8 + $0x1d0] sm:$0xf]
        %v4168 = vld [vmem:[#allocation8 + $0x1d4] sm:$0xf]
        %v4169 = vld [vmem:[#allocation8 + $0x1d8] sm:$0xf]
        %v4170 = vld [vmem:[#allocation8 + $0x1dc] sm:$0xf]
        %v4171 = vld [vmem:[#allocation8 + $0x1e0] sm:$0xf]
        %v4172 = vld [vmem:[#allocation8 + $0x1e4] sm:$0xf]
        %v4173 = vld [vmem:[#allocation8 + $0x1e8] sm:$0xf]
        %v4174 = vld [vmem:[#allocation8 + $0x1ec] sm:$0xf]
        %v4175 = vld [vmem:[#allocation8 + $0x1f0] sm:$0xf]
        %v4176 = vld [vmem:[#allocation8 + $0x1f4] sm:$0xf]
        %v4177 = vld [vmem:[#allocation8 + $0x1f8] sm:$0xf]
        %v4178 = vld [vmem:[#allocation8 + $0x1fc] sm:$0xf]
        %v4179 = vld [vmem:[#allocation8 + $0x200] sm:$0xf]
        %v4180 = vld [vmem:[#allocation8 + $0x204] sm:$0xf]
        %v4181 = vld [vmem:[#allocation8 + $0x208] sm:$0xf]
        %v4182 = vld [vmem:[#allocation8 + $0x20c] sm:$0xf]
        %v4183 = vld [vmem:[#allocation8 + $0x210] sm:$0xf]
        %v4184 = vld [vmem:[#allocation8 + $0x214] sm:$0xf]
        %v4185 = vld [vmem:[#allocation8 + $0x218] sm:$0xf]
        %v4186 = vld [vmem:[#allocation8 + $0x21c] sm:$0xf]
        %v4187 = vld [vmem:[#allocation8 + $0x220] sm:$0xf]
        %v4188 = vld [vmem:[#allocation8 + $0x224] sm:$0xf]
        %v4189 = vld [vmem:[#allocation8 + $0x228] sm:$0xf]
        %v4190 = vld [vmem:[#allocation8 + $0x22c] sm:$0xf]
        %v4191 = vld [vmem:[#allocation8 + $0x230] sm:$0xf]
        %v4192 = vld [vmem:[#allocation8 + $0x234] sm:$0xf]
        %v4193 = vld [vmem:[#allocation8 + $0x238] sm:$0xf]
        %v4194 = vld [vmem:[#allocation8 + $0x23c] sm:$0xf]
        %v4195 = vld [vmem:[%s6] sm:$0x1]
        %v4197 = vlaneseq
        %v4198 = vshrl.u32 %v4197, 7
        %v4199 = vsub.s32 0, %v4198
        %v4200 = vrot.slane %v4195, %v4199
        %v4202 = vpack.c.b16 %v3985, %v1008
        %v4203 = vpack.c.b16 %v3426, %v1009
        %v4204 = vpack.c.b16 %v3986, %v1010
        %v4205 = vpack.c.b16 %v3987, %v3985
        %v4206 = vpack.c.b16 %v3427, %v3426
        %v4207 = vpack.c.b16 %v3988, %v3986
        %v4208 = vpack.c.b16 %v3989, %v3987
        %v4209 = vpack.c.b16 %v3428, %v3427
        %v4210 = vpack.c.b16 %v3990, %v3988
        %v4211 = vpack.c.b16 %v3991, %v3989
        %v4212 = vpack.c.b16 %v3429, %v3428
        %v4213 = vpack.c.b16 %v3992, %v3990
        %v4214 = vpack.c.b16 %v3993, %v3991
        %v4215 = vpack.c.b16 %v3430, %v3429
        %v4216 = vpack.c.b16 %v3994, %v3992
        %v4217 = vpack.c.b16 %v3995, %v3993
        %v4218 = vpack.c.b16 %v3431, %v3430
        %v4219 = vpack.c.b16 %v3996, %v3994
        %v4220 = vpack.c.b16 %v3997, %v3995
        %v4221 = vpack.c.b16 %v3432, %v3431
        %v4222 = vpack.c.b16 %v3998, %v3996
        %v4223 = vpack.c.b16 %v3999, %v3997
        %v4224 = vpack.c.b16 %v3433, %v3432
        %v4225 = vpack.c.b16 %v4000, %v3998
        %v4226 = vpack.c.b16 %v4001, %v3999
        %v4227 = vpack.c.b16 %v1009, %v3433
        %v4228 = vpack.c.b16 %v4002, %v4000
        %v4229 = vpack.c.b16 %v4003, %v1008
        %v4230 = vpack.c.b16 %v3434, %v1009
        %v4231 = vpack.c.b16 %v4004, %v1010
        %v4232 = vpack.c.b16 %v4005, %v4003
        %v4233 = vpack.c.b16 %v3435, %v3434
        %v4234 = vpack.c.b16 %v4006, %v4004
        %v4235 = vpack.c.b16 %v4007, %v4005
        %v4236 = vpack.c.b16 %v3436, %v3435
        %v4237 = vpack.c.b16 %v4008, %v4006
        %v4238 = vpack.c.b16 %v4009, %v4007
        %v4239 = vpack.c.b16 %v3437, %v3436
        %v4240 = vpack.c.b16 %v4010, %v4008
        %v4241 = vpack.c.b16 %v4011, %v4009
        %v4242 = vpack.c.b16 %v3438, %v3437
        %v4243 = vpack.c.b16 %v4012, %v4010
        %v4244 = vpack.c.b16 %v4013, %v4011
        %v4245 = vpack.c.b16 %v3439, %v3438
        %v4246 = vpack.c.b16 %v4014, %v4012
        %v4247 = vpack.c.b16 %v4015, %v4013
        %v4248 = vpack.c.b16 %v3440, %v3439
        %v4249 = vpack.c.b16 %v4016, %v4014
        %v4250 = vpack.c.b16 %v4017, %v4015
        %v4251 = vpack.c.b16 %v3441, %v3440
        %v4252 = vpack.c.b16 %v4018, %v4016
        %v4253 = vpack.c.b16 %v4001, %v4017
        %v4254 = vpack.c.b16 %v1009, %v3441
        %v4255 = vpack.c.b16 %v4002, %v4018
        %v4256 = vpack.c.b16 %v4019, %v1008
        %v4257 = vpack.c.b16 %v3442, %v1009
        %v4258 = vpack.c.b16 %v4020, %v1010
        %v4259 = vpack.c.b16 %v4021, %v4019
        %v4260 = vpack.c.b16 %v3443, %v3442
        %v4261 = vpack.c.b16 %v4022, %v4020
        %v4262 = vpack.c.b16 %v4023, %v4021
        %v4263 = vpack.c.b16 %v3444, %v3443
        %v4264 = vpack.c.b16 %v4024, %v4022
        %v4265 = vpack.c.b16 %v4025, %v4023
        %v4266 = vpack.c.b16 %v3445, %v3444
        %v4267 = vpack.c.b16 %v4026, %v4024
        %v4268 = vpack.c.b16 %v4027, %v4025
        %v4269 = vpack.c.b16 %v3446, %v3445
        %v4270 = vpack.c.b16 %v4028, %v4026
        %v4271 = vpack.c.b16 %v4029, %v4027
        %v4272 = vpack.c.b16 %v3447, %v3446
        %v4273 = vpack.c.b16 %v4030, %v4028
        %v4274 = vpack.c.b16 %v4031, %v4029
        %v4275 = vpack.c.b16 %v3448, %v3447
        %v4276 = vpack.c.b16 %v4032, %v4030
        %v4277 = vpack.c.b16 %v4033, %v4031
        %v4278 = vpack.c.b16 %v3449, %v3448
        %v4279 = vpack.c.b16 %v4034, %v4032
        %v4280 = vpack.c.b16 %v4001, %v4033
        %v4281 = vpack.c.b16 %v1009, %v3449
        %v4282 = vpack.c.b16 %v4002, %v4034
        %v4283 = vpack.c.b16 %v4035, %v1008
        %v4284 = vpack.c.b16 %v3450, %v1009
        %v4285 = vpack.c.b16 %v4036, %v1010
        %v4286 = vpack.c.b16 %v4037, %v4035
        %v4287 = vpack.c.b16 %v3451, %v3450
        %v4288 = vpack.c.b16 %v4038, %v4036
        %v4289 = vpack.c.b16 %v4039, %v4037
        %v4290 = vpack.c.b16 %v3452, %v3451
        %v4291 = vpack.c.b16 %v4040, %v4038
        %v4292 = vpack.c.b16 %v4041, %v4039
        %v4293 = vpack.c.b16 %v3453, %v3452
        %v4294 = vpack.c.b16 %v4042, %v4040
        %v4295 = vpack.c.b16 %v4043, %v4041
        %v4296 = vpack.c.b16 %v3454, %v3453
        %v4297 = vpack.c.b16 %v4044, %v4042
        %v4298 = vpack.c.b16 %v4045, %v4043
        %v4299 = vpack.c.b16 %v3455, %v3454
        %v4300 = vpack.c.b16 %v4046, %v4044
        %v4301 = vpack.c.b16 %v4047, %v4045
        %v4302 = vpack.c.b16 %v3456, %v3455
        %v4303 = vpack.c.b16 %v4048, %v4046
        %v4304 = vpack.c.b16 %v4049, %v4047
        %v4305 = vpack.c.b16 %v3457, %v3456
        %v4306 = vpack.c.b16 %v4050, %v4048
        %v4307 = vpack.c.b16 %v4001, %v4049
        %v4308 = vpack.c.b16 %v1009, %v3457
        %v4309 = vpack.c.b16 %v4002, %v4050
        %v4562 = vunpack.c.l.b16 %v4051
        %v4563 = vunpack.c.l.b16 %v4052
        %v4564 = vunpack.c.l.b16 %v4053
        %v4565 = vunpack.c.l.b16 %v4054
        %v4566 = vunpack.c.l.b16 %v4055
        %v4567 = vunpack.c.l.b16 %v4056
        %v4568 = vunpack.c.l.b16 %v4057
        %v4569 = vunpack.c.l.b16 %v4058
        %v4570 = vunpack.c.l.b16 %v4059
        %v4571 = vunpack.c.l.b16 %v4060
        %v4572 = vunpack.c.l.b16 %v4061
        %v4573 = vunpack.c.l.b16 %v4062
        %v4574 = vunpack.c.l.b16 %v4063
        %v4575 = vunpack.c.l.b16 %v4064
        %v4576 = vunpack.c.l.b16 %v4065
        %v4577 = vunpack.c.l.b16 %v4066
        %v4578 = vunpack.c.l.b16 %v4067
        %v4579 = vunpack.c.l.b16 %v4068
        %v4580 = vunpack.c.l.b16 %v4069
        %v4581 = vunpack.c.l.b16 %v4070
        %v4582 = vunpack.c.l.b16 %v4071
        %v4583 = vunpack.c.l.b16 %v4072
        %v4584 = vunpack.c.l.b16 %v4073
        %v4585 = vunpack.c.l.b16 %v4074
        %v4586 = vunpack.c.l.b16 %v4075
        %v4587 = vunpack.c.l.b16 %v4076
        %v4588 = vunpack.c.l.b16 %v4077
        %v4589 = vunpack.c.l.b16 %v4078
        %v4590 = vunpack.c.l.b16 %v4079
        %v4591 = vunpack.c.l.b16 %v4080
        %v4592 = vunpack.c.l.b16 %v4081
        %v4593 = vunpack.c.l.b16 %v4082
        %v4594 = vunpack.c.l.b16 %v4083
        %v4595 = vunpack.c.l.b16 %v4084
        %v4596 = vunpack.c.l.b16 %v4085
        %v4597 = vunpack.c.l.b16 %v4086
        %v4598 = vunpack.c.l.b16 %v4087
        %v4599 = vunpack.c.l.b16 %v4088
        %v4600 = vunpack.c.l.b16 %v4089
        %v4601 = vunpack.c.l.b16 %v4090
        %v4602 = vunpack.c.l.b16 %v4091
        %v4603 = vunpack.c.l.b16 %v4092
        %v4604 = vunpack.c.l.b16 %v4093
        %v4605 = vunpack.c.l.b16 %v4094
        %v4606 = vunpack.c.l.b16 %v4095
        %v4607 = vunpack.c.l.b16 %v4096
        %v4608 = vunpack.c.l.b16 %v4097
        %v4609 = vunpack.c.l.b16 %v4098
        %v4610 = vunpack.c.l.b16 %v4099
        %v4611 = vunpack.c.l.b16 %v4100
        %v4612 = vunpack.c.l.b16 %v4101
        %v4613 = vunpack.c.l.b16 %v4102
        %v4614 = vunpack.c.l.b16 %v4103
        %v4615 = vunpack.c.l.b16 %v4104
        %v4616 = vunpack.c.l.b16 %v4105
        %v4617 = vunpack.c.l.b16 %v4106
        %v4618 = vunpack.c.l.b16 %v4107
        %v4619 = vunpack.c.l.b16 %v4108
        %v4620 = vunpack.c.l.b16 %v4109
        %v4621 = vunpack.c.l.b16 %v4110
        %v4622 = vunpack.c.l.b16 %v4111
        %v4623 = vunpack.c.l.b16 %v4112
        %v4624 = vunpack.c.l.b16 %v4113
        %v4625 = vunpack.c.l.b16 %v4114
        %v4626 = vunpack.c.l.b16 %v4115
        %v4627 = vunpack.c.l.b16 %v4116
        %v4628 = vunpack.c.l.b16 %v4117
        %v4629 = vunpack.c.l.b16 %v4118
        %v4630 = vunpack.c.l.b16 %v4119
        %v4631 = vunpack.c.l.b16 %v4120
        %v4632 = vunpack.c.l.b16 %v4121
        %v4633 = vunpack.c.l.b16 %v4122
        %v4634 = vunpack.c.l.b16 %v4123
        %v4635 = vunpack.c.l.b16 %v4124
        %v4636 = vunpack.c.l.b16 %v4125
        %v4637 = vunpack.c.l.b16 %v4126
        %v4638 = vunpack.c.l.b16 %v4127
        %v4639 = vunpack.c.l.b16 %v4128
        %v4640 = vunpack.c.l.b16 %v4129
        %v4641 = vunpack.c.l.b16 %v4130
        %v4642 = vunpack.c.l.b16 %v4131
        %v4643 = vunpack.c.l.b16 %v4132
        %v4644 = vunpack.c.l.b16 %v4133
        %v4645 = vunpack.c.l.b16 %v4134
        %v4646 = vunpack.c.l.b16 %v4135
        %v4647 = vunpack.c.l.b16 %v4136
        %v4648 = vunpack.c.l.b16 %v4137
        %v4649 = vunpack.c.l.b16 %v4138
        %v4650 = vunpack.c.l.b16 %v4139
        %v4651 = vunpack.c.l.b16 %v4140
        %v4652 = vunpack.c.l.b16 %v4141
        %v4653 = vunpack.c.l.b16 %v4142
        %v4654 = vunpack.c.l.b16 %v4143
        %v4655 = vunpack.c.l.b16 %v4144
        %v4656 = vunpack.c.l.b16 %v4145
        %v4657 = vunpack.c.l.b16 %v4146
        %v4658 = vunpack.c.l.b16 %v4147
        %v4659 = vunpack.c.l.b16 %v4148
        %v4660 = vunpack.c.l.b16 %v4149
        %v4661 = vunpack.c.l.b16 %v4150
        %v4662 = vunpack.c.l.b16 %v4151
        %v4663 = vunpack.c.l.b16 %v4152
        %v4664 = vunpack.c.l.b16 %v4153
        %v4665 = vunpack.c.l.b16 %v4154
        %v4666 = vunpack.c.l.b16 %v4155
        %v4667 = vunpack.c.l.b16 %v4156
        %v4668 = vunpack.c.l.b16 %v4157
        %v4669 = vunpack.c.l.b16 %v4158
        %v4670 = vunpack.c.l.b16 %v4159
        %v4671 = vunpack.c.l.b16 %v4160
        %v4672 = vunpack.c.l.b16 %v4161
        %v4673 = vunpack.c.l.b16 %v4162
        %v4674 = vunpack.c.l.b16 %v4163
        %v4675 = vunpack.c.l.b16 %v4164
        %v4676 = vunpack.c.l.b16 %v4165
        %v4677 = vunpack.c.l.b16 %v4166
        %v4678 = vunpack.c.l.b16 %v4167
        %v4679 = vunpack.c.l.b16 %v4168
        %v4680 = vunpack.c.l.b16 %v4169
        %v4681 = vunpack.c.l.b16 %v4170
        %v4682 = vunpack.c.l.b16 %v4171
        %v4683 = vunpack.c.l.b16 %v4172
        %v4684 = vunpack.c.l.b16 %v4173
        %v4685 = vunpack.c.l.b16 %v4174
        %v4686 = vunpack.c.l.b16 %v4175
        %v4687 = vunpack.c.l.b16 %v4176
        %v4688 = vunpack.c.l.b16 %v4177
        %v4689 = vunpack.c.l.b16 %v4178
        %v4690 = vunpack.c.l.b16 %v4179
        %v4691 = vunpack.c.l.b16 %v4180
        %v4692 = vunpack.c.l.b16 %v4181
        %v4693 = vunpack.c.l.b16 %v4182
        %v4694 = vunpack.c.l.b16 %v4183
        %v4695 = vunpack.c.l.b16 %v4184
        %v4696 = vunpack.c.l.b16 %v4185
        %v4697 = vunpack.c.l.b16 %v4186
        %v4698 = vunpack.c.l.b16 %v4187
        %v4699 = vunpack.c.l.b16 %v4188
        %v4700 = vunpack.c.l.b16 %v4189
        %v4701 = vunpack.c.l.b16 %v4190
        %v4702 = vunpack.c.l.b16 %v4191
        %v4703 = vunpack.c.l.b16 %v4192
        %v4704 = vunpack.c.l.b16 %v4193
        %v4705 = vunpack.c.l.b16 %v4194
        %v4706 = vpack.c.b16 %v4563, %v4562
        %v4707 = vpack.c.b16 %v4565, %v4564
        %v4708 = vpack.c.b16 %v4567, %v4566
        %v4709 = vpack.c.b16 %v4569, %v4568
        %v4710 = vpack.c.b16 %v4571, %v4570
        %v4711 = vpack.c.b16 %v4573, %v4572
        %v4712 = vpack.c.b16 %v4575, %v4574
        %v4713 = vpack.c.b16 %v4577, %v4576
        %v4714 = vpack.c.b16 %v4579, %v4578
        %v4715 = vpack.c.b16 %v4581, %v4580
        %v4716 = vpack.c.b16 %v4583, %v4582
        %v4717 = vpack.c.b16 %v4585, %v4584
        %v4718 = vpack.c.b16 %v4587, %v4586
        %v4719 = vpack.c.b16 %v4589, %v4588
        %v4720 = vpack.c.b16 %v4591, %v4590
        %v4721 = vpack.c.b16 %v4593, %v4592
        %v4722 = vpack.c.b16 %v4595, %v4594
        %v4723 = vpack.c.b16 %v4597, %v4596
        %v4724 = vpack.c.b16 %v4599, %v4598
        %v4725 = vpack.c.b16 %v4601, %v4600
        %v4726 = vpack.c.b16 %v4603, %v4602
        %v4727 = vpack.c.b16 %v4605, %v4604
        %v4728 = vpack.c.b16 %v4607, %v4606
        %v4729 = vpack.c.b16 %v4609, %v4608
        %v4730 = vpack.c.b16 %v4611, %v4610
        %v4731 = vpack.c.b16 %v4613, %v4612
        %v4732 = vpack.c.b16 %v4615, %v4614
        %v4733 = vpack.c.b16 %v4617, %v4616
        %v4734 = vpack.c.b16 %v4619, %v4618
        %v4735 = vpack.c.b16 %v4621, %v4620
        %v4736 = vpack.c.b16 %v4623, %v4622
        %v4737 = vpack.c.b16 %v4625, %v4624
        %v4738 = vpack.c.b16 %v4627, %v4626
        %v4739 = vpack.c.b16 %v4629, %v4628
        %v4740 = vpack.c.b16 %v4631, %v4630
        %v4741 = vpack.c.b16 %v4633, %v4632
        %v4742 = vpack.c.b16 %v4635, %v4634
        %v4743 = vpack.c.b16 %v4637, %v4636
        %v4744 = vpack.c.b16 %v4639, %v4638
        %v4745 = vpack.c.b16 %v4641, %v4640
        %v4746 = vpack.c.b16 %v4643, %v4642
        %v4747 = vpack.c.b16 %v4645, %v4644
        %v4748 = vpack.c.b16 %v4647, %v4646
        %v4749 = vpack.c.b16 %v4649, %v4648
        %v4750 = vpack.c.b16 %v4651, %v4650
        %v4751 = vpack.c.b16 %v4653, %v4652
        %v4752 = vpack.c.b16 %v4655, %v4654
        %v4753 = vpack.c.b16 %v4657, %v4656
        %v4754 = vpack.c.b16 %v4659, %v4658
        %v4755 = vpack.c.b16 %v4661, %v4660
        %v4756 = vpack.c.b16 %v4663, %v4662
        %v4757 = vpack.c.b16 %v4665, %v4664
        %v4758 = vpack.c.b16 %v4667, %v4666
        %v4759 = vpack.c.b16 %v4669, %v4668
        %v4760 = vpack.c.b16 %v4671, %v4670
        %v4761 = vpack.c.b16 %v4673, %v4672
        %v4762 = vpack.c.b16 %v4675, %v4674
        %v4763 = vpack.c.b16 %v4677, %v4676
        %v4764 = vpack.c.b16 %v4679, %v4678
        %v4765 = vpack.c.b16 %v4681, %v4680
        %v4766 = vpack.c.b16 %v4683, %v4682
        %v4767 = vpack.c.b16 %v4685, %v4684
        %v4768 = vpack.c.b16 %v4687, %v4686
        %v4769 = vpack.c.b16 %v4689, %v4688
        %v4770 = vpack.c.b16 %v4691, %v4690
        %v4771 = vpack.c.b16 %v4693, %v4692
        %v4772 = vpack.c.b16 %v4695, %v4694
        %v4773 = vpack.c.b16 %v4697, %v4696
        %v4774 = vpack.c.b16 %v4699, %v4698
        %v4775 = vpack.c.b16 %v4701, %v4700
        %v4776 = vpack.c.b16 %v4703, %v4702
        %v4777 = vpack.c.b16 %v4705, %v4704
        %4850 = vmatprep.subr.bf16.mxu0 0
        %4851 = vmatpush1.bf16.msra.mxu0 %v4713
        %4852 = vmatprep.subr.bf16.mxu0 0
        %4853 = vmatpush1.bf16.msra.mxu0 %v4712
        %4854 = vmatprep.subr.bf16.mxu0 0
        %4855 = vmatpush1.bf16.msra.mxu0 %v4711
        %4856 = vmatprep.subr.bf16.mxu0 0
        %4857 = vmatpush1.bf16.msra.mxu0 %v4710
        %4858 = vmatprep.subr.bf16.mxu0 0
        %4859 = vmatpush1.bf16.msra.mxu0 %v4709
        %4860 = vmatprep.subr.bf16.mxu0 0
        %4861 = vmatpush1.bf16.msra.mxu0 %v4708
        %4862 = vmatprep.subr.bf16.mxu0 0
        %4863 = vmatpush1.bf16.msra.mxu0 %v4707
        %4864 = vmatprep.subr.bf16.mxu0 0
        %4865 = vmatpush1.bf16.msra.mxu0 %v4706
        %4866 = vmatprep.subr.bf16.mxu0 0
        %4867 = vmatpush2.bf16.msra.mxu0 %v4721
        %4868 = vmatprep.subr.bf16.mxu0 0
        %4869 = vmatpush2.bf16.msra.mxu0 %v4720
        %4870 = vmatprep.subr.bf16.mxu0 0
        %4871 = vmatpush2.bf16.msra.mxu0 %v4719
        %4872 = vmatprep.subr.bf16.mxu0 0
        %4873 = vmatpush2.bf16.msra.mxu0 %v4718
        %4874 = vmatprep.subr.bf16.mxu0 0
        %4875 = vmatpush2.bf16.msra.mxu0 %v4717
        %4876 = vmatprep.subr.bf16.mxu0 0
        %4877 = vmatpush2.bf16.msra.mxu0 %v4716
        %4878 = vmatprep.subr.bf16.mxu0 0
        %4879 = vmatpush2.bf16.msra.mxu0 %v4715
        %4880 = vmatprep.subr.bf16.mxu0 0
        %4881 = vmatpush2.bf16.msra.mxu0 %v4714
        %4882 = vmatprep.mubr.bf16.mxu0 %v4203
        %4883 = vmatmul.mubr.bf16.gmra.mxu0 %v4202
        %v4884 = vpop.f32.mrf.mxu0
        %v4885 = vadd.f32 %v4200, %v4884
        %v4886 = vpop.f32.mrf.mxu0
        %v4887 = vpop.f32.mrf.mxu0
        %v4888 = vadd.f32 %v4200, %v4887
        %v4889 = vpop.f32.mrf.mxu0
        %4890 = vmatprep.mubr.bf16.mxu0 %v4209
        %4891 = vmatmul.mubr.bf16.gmra.mxu0 %v4208
        %v4892 = vpop.f32.mrf.mxu0
        %v4893 = vadd.f32 %v4200, %v4892
        %v4894 = vpop.f32.mrf.mxu0
        %v4895 = vpop.f32.mrf.mxu0
        %v4896 = vadd.f32 %v4200, %v4895
        %v4897 = vpop.f32.mrf.mxu0
        %4898 = vmatprep.mubr.bf16.mxu0 %v4215
        %4899 = vmatmul.mubr.bf16.gmra.mxu0 %v4214
        %v4900 = vpop.f32.mrf.mxu0
        %v4901 = vadd.f32 %v4200, %v4900
        %v4902 = vpop.f32.mrf.mxu0
        %v4903 = vpop.f32.mrf.mxu0
        %v4904 = vadd.f32 %v4200, %v4903
        %v4905 = vpop.f32.mrf.mxu0
        %4906 = vmatprep.mubr.bf16.mxu0 %v4221
        %4907 = vmatmul.mubr.bf16.gmra.mxu0 %v4220
        %v4908 = vpop.f32.mrf.mxu0
        %v4909 = vadd.f32 %v4200, %v4908
        %v4910 = vpop.f32.mrf.mxu0
        %v4911 = vpop.f32.mrf.mxu0
        %v4912 = vadd.f32 %v4200, %v4911
        %v4913 = vpop.f32.mrf.mxu0
        %4914 = vmatprep.mubr.bf16.mxu0 %v4230
        %4915 = vmatmul.mubr.bf16.gmra.mxu0 %v4229
        %v4916 = vpop.f32.mrf.mxu0
        %v4917 = vadd.f32 %v4200, %v4916
        %v4918 = vpop.f32.mrf.mxu0
        %v4919 = vpop.f32.mrf.mxu0
        %v4920 = vadd.f32 %v4200, %v4919
        %v4921 = vpop.f32.mrf.mxu0
        %4922 = vmatprep.mubr.bf16.mxu0 %v4236
        %4923 = vmatmul.mubr.bf16.gmra.mxu0 %v4235
        %v4924 = vpop.f32.mrf.mxu0
        %v4925 = vadd.f32 %v4200, %v4924
        %v4926 = vpop.f32.mrf.mxu0
        %v4927 = vpop.f32.mrf.mxu0
        %v4928 = vadd.f32 %v4200, %v4927
        %v4929 = vpop.f32.mrf.mxu0
        %4930 = vmatprep.mubr.bf16.mxu0 %v4242
        %4931 = vmatmul.mubr.bf16.gmra.mxu0 %v4241
        %v4932 = vpop.f32.mrf.mxu0
        %v4933 = vadd.f32 %v4200, %v4932
        %v4934 = vpop.f32.mrf.mxu0
        %v4935 = vpop.f32.mrf.mxu0
        %v4936 = vadd.f32 %v4200, %v4935
        %v4937 = vpop.f32.mrf.mxu0
        %4938 = vmatprep.mubr.bf16.mxu0 %v4248
        %4939 = vmatmul.mubr.bf16.gmra.mxu0 %v4247
        %v4940 = vpop.f32.mrf.mxu0
        %v4941 = vadd.f32 %v4200, %v4940
        %v4942 = vpop.f32.mrf.mxu0
        %v4943 = vpop.f32.mrf.mxu0
        %v4944 = vadd.f32 %v4200, %v4943
        %v4945 = vpop.f32.mrf.mxu0
        %4946 = vmatprep.mubr.bf16.mxu0 %v4257
        %4947 = vmatmul.mubr.bf16.gmra.mxu0 %v4256
        %v4948 = vpop.f32.mrf.mxu0
        %v4949 = vadd.f32 %v4200, %v4948
        %v4950 = vpop.f32.mrf.mxu0
        %v4951 = vpop.f32.mrf.mxu0
        %v4952 = vadd.f32 %v4200, %v4951
        %v4953 = vpop.f32.mrf.mxu0
        %4954 = vmatprep.mubr.bf16.mxu0 %v4263
        %4955 = vmatmul.mubr.bf16.gmra.mxu0 %v4262
        %v4956 = vpop.f32.mrf.mxu0
        %v4957 = vadd.f32 %v4200, %v4956
        %v4958 = vpop.f32.mrf.mxu0
        %v4959 = vpop.f32.mrf.mxu0
        %v4960 = vadd.f32 %v4200, %v4959
        %v4961 = vpop.f32.mrf.mxu0
        %4962 = vmatprep.mubr.bf16.mxu0 %v4269
        %4963 = vmatmul.mubr.bf16.gmra.mxu0 %v4268
        %v4964 = vpop.f32.mrf.mxu0
        %v4965 = vadd.f32 %v4200, %v4964
        %v4966 = vpop.f32.mrf.mxu0
        %v4967 = vpop.f32.mrf.mxu0
        %v4968 = vadd.f32 %v4200, %v4967
        %v4969 = vpop.f32.mrf.mxu0
        %4970 = vmatprep.mubr.bf16.mxu0 %v4275
        %4971 = vmatmul.mubr.bf16.gmra.mxu0 %v4274
        %v4972 = vpop.f32.mrf.mxu0
        %v4973 = vadd.f32 %v4200, %v4972
        %v4974 = vpop.f32.mrf.mxu0
        %v4975 = vpop.f32.mrf.mxu0
        %v4976 = vadd.f32 %v4200, %v4975
        %v4977 = vpop.f32.mrf.mxu0
        %4978 = vmatprep.mubr.bf16.mxu0 %v4284
        %4979 = vmatmul.mubr.bf16.gmra.mxu0 %v4283
        %v4980 = vpop.f32.mrf.mxu0
        %v4981 = vadd.f32 %v4200, %v4980
        %v4982 = vpop.f32.mrf.mxu0
        %v4983 = vpop.f32.mrf.mxu0
        %v4984 = vadd.f32 %v4200, %v4983
        %v4985 = vpop.f32.mrf.mxu0
        %4986 = vmatprep.mubr.bf16.mxu0 %v4290
        %4987 = vmatmul.mubr.bf16.gmra.mxu0 %v4289
        %v4988 = vpop.f32.mrf.mxu0
        %v4989 = vadd.f32 %v4200, %v4988
        %v4990 = vpop.f32.mrf.mxu0
        %v4991 = vpop.f32.mrf.mxu0
        %v4992 = vadd.f32 %v4200, %v4991
        %v4993 = vpop.f32.mrf.mxu0
        %4994 = vmatprep.mubr.bf16.mxu0 %v4296
        %4995 = vmatmul.mubr.bf16.gmra.mxu0 %v4295
        %v4996 = vpop.f32.mrf.mxu0
        %v4997 = vadd.f32 %v4200, %v4996
        %v4998 = vpop.f32.mrf.mxu0
        %v4999 = vpop.f32.mrf.mxu0
        %v5000 = vadd.f32 %v4200, %v4999
        %v5001 = vpop.f32.mrf.mxu0
        %5002 = vmatprep.mubr.bf16.mxu0 %v4302
        %5003 = vmatmul.mubr.bf16.gmra.mxu0 %v4301
        %v5004 = vpop.f32.mrf.mxu0
        %v5005 = vadd.f32 %v4200, %v5004
        %v5006 = vpop.f32.mrf.mxu0
        %v5007 = vpop.f32.mrf.mxu0
        %v5008 = vadd.f32 %v4200, %v5007
        %v5009 = vpop.f32.mrf.mxu0
        %5010 = vdwg.mxu0
        %5011 = vmatprep.subr.bf16.mxu0 0
        %5012 = vmatpush1.bf16.msra.mxu0 %v4729
        %5013 = vmatprep.subr.bf16.mxu0 0
        %5014 = vmatpush1.bf16.msra.mxu0 %v4728
        %5015 = vmatprep.subr.bf16.mxu0 0
        %5016 = vmatpush1.bf16.msra.mxu0 %v4727
        %5017 = vmatprep.subr.bf16.mxu0 0
        %5018 = vmatpush1.bf16.msra.mxu0 %v4726
        %5019 = vmatprep.subr.bf16.mxu0 0
        %5020 = vmatpush1.bf16.msra.mxu0 %v4725
        %5021 = vmatprep.subr.bf16.mxu0 0
        %5022 = vmatpush1.bf16.msra.mxu0 %v4724
        %5023 = vmatprep.subr.bf16.mxu0 0
        %5024 = vmatpush1.bf16.msra.mxu0 %v4723
        %5025 = vmatprep.subr.bf16.mxu0 0
        %5026 = vmatpush1.bf16.msra.mxu0 %v4722
        %5027 = vmatprep.subr.bf16.mxu0 0
        %5028 = vmatpush2.bf16.msra.mxu0 %v4737
        %5029 = vmatprep.subr.bf16.mxu0 0
        %5030 = vmatpush2.bf16.msra.mxu0 %v4736
        %5031 = vmatprep.subr.bf16.mxu0 0
        %5032 = vmatpush2.bf16.msra.mxu0 %v4735
        %5033 = vmatprep.subr.bf16.mxu0 0
        %5034 = vmatpush2.bf16.msra.mxu0 %v4734
        %5035 = vmatprep.subr.bf16.mxu0 0
        %5036 = vmatpush2.bf16.msra.mxu0 %v4733
        %5037 = vmatprep.subr.bf16.mxu0 0
        %5038 = vmatpush2.bf16.msra.mxu0 %v4732
        %5039 = vmatprep.subr.bf16.mxu0 0
        %5040 = vmatpush2.bf16.msra.mxu0 %v4731
        %5041 = vmatprep.subr.bf16.mxu0 0
        %5042 = vmatpush2.bf16.msra.mxu0 %v4730
        %5043 = vmatprep.mubr.bf16.mxu0 %v4205
        %5044 = vmatmul.mubr.bf16.gmra.mxu0 %v4204
        %v5045 = vpop.f32.mrf.mxu0
        %v5046 = vadd.f32 %v4885, %v5045
        %v5047 = vpop.f32.mrf.mxu0
        %v5048 = vpop.f32.mrf.mxu0
        %v5049 = vadd.f32 %v4888, %v5048
        %v5050 = vpop.f32.mrf.mxu0
        %5051 = vmatprep.mubr.bf16.mxu0 %v4211
        %5052 = vmatmul.mubr.bf16.gmra.mxu0 %v4210
        %v5053 = vpop.f32.mrf.mxu0
        %v5054 = vadd.f32 %v4893, %v5053
        %v5055 = vpop.f32.mrf.mxu0
        %v5056 = vpop.f32.mrf.mxu0
        %v5057 = vadd.f32 %v4896, %v5056
        %v5058 = vpop.f32.mrf.mxu0
        %5059 = vmatprep.mubr.bf16.mxu0 %v4217
        %5060 = vmatmul.mubr.bf16.gmra.mxu0 %v4216
        %v5061 = vpop.f32.mrf.mxu0
        %v5062 = vadd.f32 %v4901, %v5061
        %v5063 = vpop.f32.mrf.mxu0
        %v5064 = vpop.f32.mrf.mxu0
        %v5065 = vadd.f32 %v4904, %v5064
        %v5066 = vpop.f32.mrf.mxu0
        %5067 = vmatprep.mubr.bf16.mxu0 %v4223
        %5068 = vmatmul.mubr.bf16.gmra.mxu0 %v4222
        %v5069 = vpop.f32.mrf.mxu0
        %v5070 = vadd.f32 %v4909, %v5069
        %v5071 = vpop.f32.mrf.mxu0
        %v5072 = vpop.f32.mrf.mxu0
        %v5073 = vadd.f32 %v4912, %v5072
        %v5074 = vpop.f32.mrf.mxu0
        %5075 = vmatprep.mubr.bf16.mxu0 %v4232
        %5076 = vmatmul.mubr.bf16.gmra.mxu0 %v4231
        %v5077 = vpop.f32.mrf.mxu0
        %v5078 = vadd.f32 %v4917, %v5077
        %v5079 = vpop.f32.mrf.mxu0
        %v5080 = vpop.f32.mrf.mxu0
        %v5081 = vadd.f32 %v4920, %v5080
        %v5082 = vpop.f32.mrf.mxu0
        %5083 = vmatprep.mubr.bf16.mxu0 %v4238
        %5084 = vmatmul.mubr.bf16.gmra.mxu0 %v4237
        %v5085 = vpop.f32.mrf.mxu0
        %v5086 = vadd.f32 %v4925, %v5085
        %v5087 = vpop.f32.mrf.mxu0
        %v5088 = vpop.f32.mrf.mxu0
        %v5089 = vadd.f32 %v4928, %v5088
        %v5090 = vpop.f32.mrf.mxu0
        %5091 = vmatprep.mubr.bf16.mxu0 %v4244
        %5092 = vmatmul.mubr.bf16.gmra.mxu0 %v4243
        %v5093 = vpop.f32.mrf.mxu0
        %v5094 = vadd.f32 %v4933, %v5093
        %v5095 = vpop.f32.mrf.mxu0
        %v5096 = vpop.f32.mrf.mxu0
        %v5097 = vadd.f32 %v4936, %v5096
        %v5098 = vpop.f32.mrf.mxu0
        %5099 = vmatprep.mubr.bf16.mxu0 %v4250
        %5100 = vmatmul.mubr.bf16.gmra.mxu0 %v4249
        %v5101 = vpop.f32.mrf.mxu0
        %v5102 = vadd.f32 %v4941, %v5101
        %v5103 = vpop.f32.mrf.mxu0
        %v5104 = vpop.f32.mrf.mxu0
        %v5105 = vadd.f32 %v4944, %v5104
        %v5106 = vpop.f32.mrf.mxu0
        %5107 = vmatprep.mubr.bf16.mxu0 %v4259
        %5108 = vmatmul.mubr.bf16.gmra.mxu0 %v4258
        %v5109 = vpop.f32.mrf.mxu0
        %v5110 = vadd.f32 %v4949, %v5109
        %v5111 = vpop.f32.mrf.mxu0
        %v5112 = vpop.f32.mrf.mxu0
        %v5113 = vadd.f32 %v4952, %v5112
        %v5114 = vpop.f32.mrf.mxu0
        %5115 = vmatprep.mubr.bf16.mxu0 %v4265
        %5116 = vmatmul.mubr.bf16.gmra.mxu0 %v4264
        %v5117 = vpop.f32.mrf.mxu0
        %v5118 = vadd.f32 %v4957, %v5117
        %v5119 = vpop.f32.mrf.mxu0
        %v5120 = vpop.f32.mrf.mxu0
        %v5121 = vadd.f32 %v4960, %v5120
        %v5122 = vpop.f32.mrf.mxu0
        %5123 = vmatprep.mubr.bf16.mxu0 %v4271
        %5124 = vmatmul.mubr.bf16.gmra.mxu0 %v4270
        %v5125 = vpop.f32.mrf.mxu0
        %v5126 = vadd.f32 %v4965, %v5125
        %v5127 = vpop.f32.mrf.mxu0
        %v5128 = vpop.f32.mrf.mxu0
        %v5129 = vadd.f32 %v4968, %v5128
        %v5130 = vpop.f32.mrf.mxu0
        %5131 = vmatprep.mubr.bf16.mxu0 %v4277
        %5132 = vmatmul.mubr.bf16.gmra.mxu0 %v4276
        %v5133 = vpop.f32.mrf.mxu0
        %v5134 = vadd.f32 %v4973, %v5133
        %v5135 = vpop.f32.mrf.mxu0
        %v5136 = vpop.f32.mrf.mxu0
        %v5137 = vadd.f32 %v4976, %v5136
        %v5138 = vpop.f32.mrf.mxu0
        %5139 = vmatprep.mubr.bf16.mxu0 %v4286
        %5140 = vmatmul.mubr.bf16.gmra.mxu0 %v4285
        %v5141 = vpop.f32.mrf.mxu0
        %v5142 = vadd.f32 %v4981, %v5141
        %v5143 = vpop.f32.mrf.mxu0
        %v5144 = vpop.f32.mrf.mxu0
        %v5145 = vadd.f32 %v4984, %v5144
        %v5146 = vpop.f32.mrf.mxu0
        %5147 = vmatprep.mubr.bf16.mxu0 %v4292
        %5148 = vmatmul.mubr.bf16.gmra.mxu0 %v4291
        %v5149 = vpop.f32.mrf.mxu0
        %v5150 = vadd.f32 %v4989, %v5149
        %v5151 = vpop.f32.mrf.mxu0
        %v5152 = vpop.f32.mrf.mxu0
        %v5153 = vadd.f32 %v4992, %v5152
        %v5154 = vpop.f32.mrf.mxu0
        %5155 = vmatprep.mubr.bf16.mxu0 %v4298
        %5156 = vmatmul.mubr.bf16.gmra.mxu0 %v4297
        %v5157 = vpop.f32.mrf.mxu0
        %v5158 = vadd.f32 %v4997, %v5157
        %v5159 = vpop.f32.mrf.mxu0
        %v5160 = vpop.f32.mrf.mxu0
        %v5161 = vadd.f32 %v5000, %v5160
        %v5162 = vpop.f32.mrf.mxu0
        %5163 = vmatprep.mubr.bf16.mxu0 %v4304
        %5164 = vmatmul.mubr.bf16.gmra.mxu0 %v4303
        %v5165 = vpop.f32.mrf.mxu0
        %v5166 = vadd.f32 %v5005, %v5165
        %v5167 = vpop.f32.mrf.mxu0
        %v5168 = vpop.f32.mrf.mxu0
        %v5169 = vadd.f32 %v5008, %v5168
        %v5170 = vpop.f32.mrf.mxu0
        %5171 = vdwg.mxu0
        %5172 = vmatprep.subr.bf16.mxu0 0
        %5173 = vmatpush1.bf16.msra.mxu0 %v4745
        %5174 = vmatprep.subr.bf16.mxu0 0
        %5175 = vmatpush1.bf16.msra.mxu0 %v4744
        %5176 = vmatprep.subr.bf16.mxu0 0
        %5177 = vmatpush1.bf16.msra.mxu0 %v4743
        %5178 = vmatprep.subr.bf16.mxu0 0
        %5179 = vmatpush1.bf16.msra.mxu0 %v4742
        %5180 = vmatprep.subr.bf16.mxu0 0
        %5181 = vmatpush1.bf16.msra.mxu0 %v4741
        %5182 = vmatprep.subr.bf16.mxu0 0
        %5183 = vmatpush1.bf16.msra.mxu0 %v4740
        %5184 = vmatprep.subr.bf16.mxu0 0
        %5185 = vmatpush1.bf16.msra.mxu0 %v4739
        %5186 = vmatprep.subr.bf16.mxu0 0
        %5187 = vmatpush1.bf16.msra.mxu0 %v4738
        %5188 = vmatprep.subr.bf16.mxu0 0
        %5189 = vmatpush2.bf16.msra.mxu0 %v4753
        %5190 = vmatprep.subr.bf16.mxu0 0
        %5191 = vmatpush2.bf16.msra.mxu0 %v4752
        %5192 = vmatprep.subr.bf16.mxu0 0
        %5193 = vmatpush2.bf16.msra.mxu0 %v4751
        %5194 = vmatprep.subr.bf16.mxu0 0
        %5195 = vmatpush2.bf16.msra.mxu0 %v4750
        %5196 = vmatprep.subr.bf16.mxu0 0
        %5197 = vmatpush2.bf16.msra.mxu0 %v4749
        %5198 = vmatprep.subr.bf16.mxu0 0
        %5199 = vmatpush2.bf16.msra.mxu0 %v4748
        %5200 = vmatprep.subr.bf16.mxu0 0
        %5201 = vmatpush2.bf16.msra.mxu0 %v4747
        %5202 = vmatprep.subr.bf16.mxu0 0
        %5203 = vmatpush2.bf16.msra.mxu0 %v4746
        %5204 = vmatprep.mubr.bf16.mxu0 %v4207
        %5205 = vmatmul.mubr.bf16.gmra.mxu0 %v4206
        %v5206 = vpop.f32.mrf.mxu0
        %v5207 = vadd.f32 %v5046, %v5206
        %v5208 = vpop.f32.mrf.mxu0
        %v5209 = vpop.f32.mrf.mxu0
        %v5210 = vadd.f32 %v5049, %v5209
        %v5211 = vpop.f32.mrf.mxu0
        %5212 = vmatprep.mubr.bf16.mxu0 %v4213
        %5213 = vmatmul.mubr.bf16.gmra.mxu0 %v4212
        %v5214 = vpop.f32.mrf.mxu0
        %v5215 = vadd.f32 %v5054, %v5214
        %v5216 = vpop.f32.mrf.mxu0
        %v5217 = vpop.f32.mrf.mxu0
        %v5218 = vadd.f32 %v5057, %v5217
        %v5219 = vpop.f32.mrf.mxu0
        %5220 = vmatprep.mubr.bf16.mxu0 %v4219
        %5221 = vmatmul.mubr.bf16.gmra.mxu0 %v4218
        %v5222 = vpop.f32.mrf.mxu0
        %v5223 = vadd.f32 %v5062, %v5222
        %v5224 = vpop.f32.mrf.mxu0
        %v5225 = vpop.f32.mrf.mxu0
        %v5226 = vadd.f32 %v5065, %v5225
        %v5227 = vpop.f32.mrf.mxu0
        %5228 = vmatprep.mubr.bf16.mxu0 %v4225
        %5229 = vmatmul.mubr.bf16.gmra.mxu0 %v4224
        %v5230 = vpop.f32.mrf.mxu0
        %v5231 = vadd.f32 %v5070, %v5230
        %v5232 = vpop.f32.mrf.mxu0
        %v5233 = vpop.f32.mrf.mxu0
        %v5234 = vadd.f32 %v5073, %v5233
        %v5235 = vpop.f32.mrf.mxu0
        %5236 = vmatprep.mubr.bf16.mxu0 %v4234
        %5237 = vmatmul.mubr.bf16.gmra.mxu0 %v4233
        %v5238 = vpop.f32.mrf.mxu0
        %v5239 = vadd.f32 %v5078, %v5238
        %v5240 = vpop.f32.mrf.mxu0
        %v5241 = vpop.f32.mrf.mxu0
        %v5242 = vadd.f32 %v5081, %v5241
        %v5243 = vpop.f32.mrf.mxu0
        %5244 = vmatprep.mubr.bf16.mxu0 %v4240
        %5245 = vmatmul.mubr.bf16.gmra.mxu0 %v4239
        %v5246 = vpop.f32.mrf.mxu0
        %v5247 = vadd.f32 %v5086, %v5246
        %v5248 = vpop.f32.mrf.mxu0
        %v5249 = vpop.f32.mrf.mxu0
        %v5250 = vadd.f32 %v5089, %v5249
        %v5251 = vpop.f32.mrf.mxu0
        %5252 = vmatprep.mubr.bf16.mxu0 %v4246
        %5253 = vmatmul.mubr.bf16.gmra.mxu0 %v4245
        %v5254 = vpop.f32.mrf.mxu0
        %v5255 = vadd.f32 %v5094, %v5254
        %v5256 = vpop.f32.mrf.mxu0
        %v5257 = vpop.f32.mrf.mxu0
        %v5258 = vadd.f32 %v5097, %v5257
        %v5259 = vpop.f32.mrf.mxu0
        %5260 = vmatprep.mubr.bf16.mxu0 %v4252
        %5261 = vmatmul.mubr.bf16.gmra.mxu0 %v4251
        %v5262 = vpop.f32.mrf.mxu0
        %v5263 = vadd.f32 %v5102, %v5262
        %v5264 = vpop.f32.mrf.mxu0
        %v5265 = vpop.f32.mrf.mxu0
        %v5266 = vadd.f32 %v5105, %v5265
        %v5267 = vpop.f32.mrf.mxu0
        %5268 = vmatprep.mubr.bf16.mxu0 %v4261
        %5269 = vmatmul.mubr.bf16.gmra.mxu0 %v4260
        %v5270 = vpop.f32.mrf.mxu0
        %v5271 = vadd.f32 %v5110, %v5270
        %v5272 = vpop.f32.mrf.mxu0
        %v5273 = vpop.f32.mrf.mxu0
        %v5274 = vadd.f32 %v5113, %v5273
        %v5275 = vpop.f32.mrf.mxu0
        %5276 = vmatprep.mubr.bf16.mxu0 %v4267
        %5277 = vmatmul.mubr.bf16.gmra.mxu0 %v4266
        %v5278 = vpop.f32.mrf.mxu0
        %v5279 = vadd.f32 %v5118, %v5278
        %v5280 = vpop.f32.mrf.mxu0
        %v5281 = vpop.f32.mrf.mxu0
        %v5282 = vadd.f32 %v5121, %v5281
        %v5283 = vpop.f32.mrf.mxu0
        %5284 = vmatprep.mubr.bf16.mxu0 %v4273
        %5285 = vmatmul.mubr.bf16.gmra.mxu0 %v4272
        %v5286 = vpop.f32.mrf.mxu0
        %v5287 = vadd.f32 %v5126, %v5286
        %v5288 = vpop.f32.mrf.mxu0
        %v5289 = vpop.f32.mrf.mxu0
        %v5290 = vadd.f32 %v5129, %v5289
        %v5291 = vpop.f32.mrf.mxu0
        %5292 = vmatprep.mubr.bf16.mxu0 %v4279
        %5293 = vmatmul.mubr.bf16.gmra.mxu0 %v4278
        %v5294 = vpop.f32.mrf.mxu0
        %v5295 = vadd.f32 %v5134, %v5294
        %v5296 = vpop.f32.mrf.mxu0
        %v5297 = vpop.f32.mrf.mxu0
        %v5298 = vadd.f32 %v5137, %v5297
        %v5299 = vpop.f32.mrf.mxu0
        %5300 = vmatprep.mubr.bf16.mxu0 %v4288
        %5301 = vmatmul.mubr.bf16.gmra.mxu0 %v4287
        %v5302 = vpop.f32.mrf.mxu0
        %v5303 = vadd.f32 %v5142, %v5302
        %v5304 = vpop.f32.mrf.mxu0
        %v5305 = vpop.f32.mrf.mxu0
        %v5306 = vadd.f32 %v5145, %v5305
        %v5307 = vpop.f32.mrf.mxu0
        %5308 = vmatprep.mubr.bf16.mxu0 %v4294
        %5309 = vmatmul.mubr.bf16.gmra.mxu0 %v4293
        %v5310 = vpop.f32.mrf.mxu0
        %v5311 = vadd.f32 %v5150, %v5310
        %v5312 = vpop.f32.mrf.mxu0
        %v5313 = vpop.f32.mrf.mxu0
        %v5314 = vadd.f32 %v5153, %v5313
        %v5315 = vpop.f32.mrf.mxu0
        %5316 = vmatprep.mubr.bf16.mxu0 %v4300
        %5317 = vmatmul.mubr.bf16.gmra.mxu0 %v4299
        %v5318 = vpop.f32.mrf.mxu0
        %v5319 = vadd.f32 %v5158, %v5318
        %v5320 = vpop.f32.mrf.mxu0
        %v5321 = vpop.f32.mrf.mxu0
        %v5322 = vadd.f32 %v5161, %v5321
        %v5323 = vpop.f32.mrf.mxu0
        %5324 = vmatprep.mubr.bf16.mxu0 %v4306
        %5325 = vmatmul.mubr.bf16.gmra.mxu0 %v4305
        %v5326 = vpop.f32.mrf.mxu0
        %v5327 = vadd.f32 %v5166, %v5326
        %v5328 = vpop.f32.mrf.mxu0
        %v5329 = vpop.f32.mrf.mxu0
        %v5330 = vadd.f32 %v5169, %v5329
        %v5331 = vpop.f32.mrf.mxu0
        %5332 = vdwg.mxu0
        %5333 = vmatprep.subr.bf16.mxu0 0
        %5334 = vmatpush1.bf16.msra.mxu0 %v4761
        %5335 = vmatprep.subr.bf16.mxu0 0
        %5336 = vmatpush1.bf16.msra.mxu0 %v4760
        %5337 = vmatprep.subr.bf16.mxu0 0
        %5338 = vmatpush1.bf16.msra.mxu0 %v4759
        %5339 = vmatprep.subr.bf16.mxu0 0
        %5340 = vmatpush1.bf16.msra.mxu0 %v4758
        %5341 = vmatprep.subr.bf16.mxu0 0
        %5342 = vmatpush1.bf16.msra.mxu0 %v4757
        %5343 = vmatprep.subr.bf16.mxu0 0
        %5344 = vmatpush1.bf16.msra.mxu0 %v4756
        %5345 = vmatprep.subr.bf16.mxu0 0
        %5346 = vmatpush1.bf16.msra.mxu0 %v4755
        %5347 = vmatprep.subr.bf16.mxu0 0
        %5348 = vmatpush1.bf16.msra.mxu0 %v4754
        %5349 = vmatprep.subr.bf16.mxu0 0
        %5350 = vmatpush2.bf16.msra.mxu0 %v4769
        %5351 = vmatprep.subr.bf16.mxu0 0
        %5352 = vmatpush2.bf16.msra.mxu0 %v4768
        %5353 = vmatprep.subr.bf16.mxu0 0
        %5354 = vmatpush2.bf16.msra.mxu0 %v4767
        %5355 = vmatprep.subr.bf16.mxu0 0
        %5356 = vmatpush2.bf16.msra.mxu0 %v4766
        %5357 = vmatprep.subr.bf16.mxu0 0
        %5358 = vmatpush2.bf16.msra.mxu0 %v4765
        %5359 = vmatprep.subr.bf16.mxu0 0
        %5360 = vmatpush2.bf16.msra.mxu0 %v4764
        %5361 = vmatprep.subr.bf16.mxu0 0
        %5362 = vmatpush2.bf16.msra.mxu0 %v4763
        %5363 = vmatprep.subr.bf16.mxu0 0
        %5364 = vmatpush2.bf16.msra.mxu0 %v4762
        %5365 = vmatprep.mubr.bf16.mxu0 %v4209
        %5366 = vmatmul.mubr.bf16.gmra.mxu0 %v4208
        %v5367 = vpop.f32.mrf.mxu0
        %v5368 = vadd.f32 %v5207, %v5367
        %v5369 = vpop.f32.mrf.mxu0
        %v5370 = vpop.f32.mrf.mxu0
        %v5371 = vadd.f32 %v5210, %v5370
        %v5372 = vpop.f32.mrf.mxu0
        %5373 = vmatprep.mubr.bf16.mxu0 %v4215
        %5374 = vmatmul.mubr.bf16.gmra.mxu0 %v4214
        %v5375 = vpop.f32.mrf.mxu0
        %v5376 = vadd.f32 %v5215, %v5375
        %v5377 = vpop.f32.mrf.mxu0
        %v5378 = vpop.f32.mrf.mxu0
        %v5379 = vadd.f32 %v5218, %v5378
        %v5380 = vpop.f32.mrf.mxu0
        %5381 = vmatprep.mubr.bf16.mxu0 %v4221
        %5382 = vmatmul.mubr.bf16.gmra.mxu0 %v4220
        %v5383 = vpop.f32.mrf.mxu0
        %v5384 = vadd.f32 %v5223, %v5383
        %v5385 = vpop.f32.mrf.mxu0
        %v5386 = vpop.f32.mrf.mxu0
        %v5387 = vadd.f32 %v5226, %v5386
        %v5388 = vpop.f32.mrf.mxu0
        %5389 = vmatprep.mubr.bf16.mxu0 %v4227
        %5390 = vmatmul.mubr.bf16.gmra.mxu0 %v4226
        %v5391 = vpop.f32.mrf.mxu0
        %v5392 = vadd.f32 %v5231, %v5391
        %v5393 = vpop.f32.mrf.mxu0
        %v5394 = vpop.f32.mrf.mxu0
        %v5395 = vadd.f32 %v5234, %v5394
        %v5396 = vpop.f32.mrf.mxu0
        %5397 = vmatprep.mubr.bf16.mxu0 %v4236
        %5398 = vmatmul.mubr.bf16.gmra.mxu0 %v4235
        %v5399 = vpop.f32.mrf.mxu0
        %v5400 = vadd.f32 %v5239, %v5399
        %v5401 = vpop.f32.mrf.mxu0
        %v5402 = vpop.f32.mrf.mxu0
        %v5403 = vadd.f32 %v5242, %v5402
        %v5404 = vpop.f32.mrf.mxu0
        %5405 = vmatprep.mubr.bf16.mxu0 %v4242
        %5406 = vmatmul.mubr.bf16.gmra.mxu0 %v4241
        %v5407 = vpop.f32.mrf.mxu0
        %v5408 = vadd.f32 %v5247, %v5407
        %v5409 = vpop.f32.mrf.mxu0
        %v5410 = vpop.f32.mrf.mxu0
        %v5411 = vadd.f32 %v5250, %v5410
        %v5412 = vpop.f32.mrf.mxu0
        %5413 = vmatprep.mubr.bf16.mxu0 %v4248
        %5414 = vmatmul.mubr.bf16.gmra.mxu0 %v4247
        %v5415 = vpop.f32.mrf.mxu0
        %v5416 = vadd.f32 %v5255, %v5415
        %v5417 = vpop.f32.mrf.mxu0
        %v5418 = vpop.f32.mrf.mxu0
        %v5419 = vadd.f32 %v5258, %v5418
        %v5420 = vpop.f32.mrf.mxu0
        %5421 = vmatprep.mubr.bf16.mxu0 %v4254
        %5422 = vmatmul.mubr.bf16.gmra.mxu0 %v4253
        %v5423 = vpop.f32.mrf.mxu0
        %v5424 = vadd.f32 %v5263, %v5423
        %v5425 = vpop.f32.mrf.mxu0
        %v5426 = vpop.f32.mrf.mxu0
        %v5427 = vadd.f32 %v5266, %v5426
        %v5428 = vpop.f32.mrf.mxu0
        %5429 = vmatprep.mubr.bf16.mxu0 %v4263
        %5430 = vmatmul.mubr.bf16.gmra.mxu0 %v4262
        %v5431 = vpop.f32.mrf.mxu0
        %v5432 = vadd.f32 %v5271, %v5431
        %v5433 = vpop.f32.mrf.mxu0
        %v5434 = vpop.f32.mrf.mxu0
        %v5435 = vadd.f32 %v5274, %v5434
        %v5436 = vpop.f32.mrf.mxu0
        %5437 = vmatprep.mubr.bf16.mxu0 %v4269
        %5438 = vmatmul.mubr.bf16.gmra.mxu0 %v4268
        %v5439 = vpop.f32.mrf.mxu0
        %v5440 = vadd.f32 %v5279, %v5439
        %v5441 = vpop.f32.mrf.mxu0
        %v5442 = vpop.f32.mrf.mxu0
        %v5443 = vadd.f32 %v5282, %v5442
        %v5444 = vpop.f32.mrf.mxu0
        %5445 = vmatprep.mubr.bf16.mxu0 %v4275
        %5446 = vmatmul.mubr.bf16.gmra.mxu0 %v4274
        %v5447 = vpop.f32.mrf.mxu0
        %v5448 = vadd.f32 %v5287, %v5447
        %v5449 = vpop.f32.mrf.mxu0
        %v5450 = vpop.f32.mrf.mxu0
        %v5451 = vadd.f32 %v5290, %v5450
        %v5452 = vpop.f32.mrf.mxu0
        %5453 = vmatprep.mubr.bf16.mxu0 %v4281
        %5454 = vmatmul.mubr.bf16.gmra.mxu0 %v4280
        %v5455 = vpop.f32.mrf.mxu0
        %v5456 = vadd.f32 %v5295, %v5455
        %v5457 = vpop.f32.mrf.mxu0
        %v5458 = vpop.f32.mrf.mxu0
        %v5459 = vadd.f32 %v5298, %v5458
        %v5460 = vpop.f32.mrf.mxu0
        %5461 = vmatprep.mubr.bf16.mxu0 %v4290
        %5462 = vmatmul.mubr.bf16.gmra.mxu0 %v4289
        %v5463 = vpop.f32.mrf.mxu0
        %v5464 = vadd.f32 %v5303, %v5463
        %v5465 = vpop.f32.mrf.mxu0
        %v5466 = vpop.f32.mrf.mxu0
        %v5467 = vadd.f32 %v5306, %v5466
        %v5468 = vpop.f32.mrf.mxu0
        %5469 = vmatprep.mubr.bf16.mxu0 %v4296
        %5470 = vmatmul.mubr.bf16.gmra.mxu0 %v4295
        %v5471 = vpop.f32.mrf.mxu0
        %v5472 = vadd.f32 %v5311, %v5471
        %v5473 = vpop.f32.mrf.mxu0
        %v5474 = vpop.f32.mrf.mxu0
        %v5475 = vadd.f32 %v5314, %v5474
        %v5476 = vpop.f32.mrf.mxu0
        %5477 = vmatprep.mubr.bf16.mxu0 %v4302
        %5478 = vmatmul.mubr.bf16.gmra.mxu0 %v4301
        %v5479 = vpop.f32.mrf.mxu0
        %v5480 = vadd.f32 %v5319, %v5479
        %v5481 = vpop.f32.mrf.mxu0
        %v5482 = vpop.f32.mrf.mxu0
        %v5483 = vadd.f32 %v5322, %v5482
        %v5484 = vpop.f32.mrf.mxu0
        %5485 = vmatprep.mubr.bf16.mxu0 %v4308
        %5486 = vmatmul.mubr.bf16.gmra.mxu0 %v4307
        %v5487 = vpop.f32.mrf.mxu0
        %v5488 = vadd.f32 %v5327, %v5487
        %v5489 = vpop.f32.mrf.mxu0
        %v5490 = vpop.f32.mrf.mxu0
        %v5491 = vadd.f32 %v5330, %v5490
        %v5492 = vpop.f32.mrf.mxu0
        %5493 = vdwg.mxu0
        %5494 = vmatprep.subr.bf16.mxu0 0
        %5495 = vmatpush1.bf16.msra.mxu0 %v4777
        %5496 = vmatprep.subr.bf16.mxu0 0
        %5497 = vmatpush1.bf16.msra.mxu0 %v4776
        %5498 = vmatprep.subr.bf16.mxu0 0
        %5499 = vmatpush1.bf16.msra.mxu0 %v4775
        %5500 = vmatprep.subr.bf16.mxu0 0
        %5501 = vmatpush1.bf16.msra.mxu0 %v4774
        %5502 = vmatprep.subr.bf16.mxu0 0
        %5503 = vmatpush1.bf16.msra.mxu0 %v4773
        %5504 = vmatprep.subr.bf16.mxu0 0
        %5505 = vmatpush1.bf16.msra.mxu0 %v4772
        %5506 = vmatprep.subr.bf16.mxu0 0
        %5507 = vmatpush1.bf16.msra.mxu0 %v4771
        %5508 = vmatprep.subr.bf16.mxu0 0
        %5509 = vmatpush1.bf16.msra.mxu0 %v4770
        %5510 = vmatprep.subr.bf16.mxu0 0
        %5511 = vmatpush2.bf16.msra.mxu0 0
        %5512 = vmatprep.subr.bf16.mxu0 0
        %5513 = vmatpush2.bf16.msra.mxu0 0
        %5514 = vmatprep.subr.bf16.mxu0 0
        %5515 = vmatpush2.bf16.msra.mxu0 0
        %5516 = vmatprep.subr.bf16.mxu0 0
        %5517 = vmatpush2.bf16.msra.mxu0 0
        %5518 = vmatprep.subr.bf16.mxu0 0
        %5519 = vmatpush2.bf16.msra.mxu0 0
        %5520 = vmatprep.subr.bf16.mxu0 0
        %5521 = vmatpush2.bf16.msra.mxu0 0
        %5522 = vmatprep.subr.bf16.mxu0 0
        %5523 = vmatpush2.bf16.msra.mxu0 0
        %5524 = vmatprep.subr.bf16.mxu0 0
        %5525 = vmatpush2.bf16.msra.mxu0 0
        %5526 = vmatprep.mubr.bf16.mxu0 0
        %5527 = vmatmul.mubr.bf16.gmra.mxu0 %v4210
        %v5528 = vpop.f32.mrf.mxu0
        %v5529 = vadd.f32 %v5368, %v5528
        %v5530 = vpop.f32.mrf.mxu0
        %v5531 = vpop.f32.mrf.mxu0
        %v5532 = vadd.f32 %v5371, %v5531
        %v5533 = vpop.f32.mrf.mxu0
        %5534 = vmatprep.mubr.bf16.mxu0 0
        %5535 = vmatmul.mubr.bf16.gmra.mxu0 %v4216
        %v5536 = vpop.f32.mrf.mxu0
        %v5537 = vadd.f32 %v5376, %v5536
        %v5538 = vpop.f32.mrf.mxu0
        %v5539 = vpop.f32.mrf.mxu0
        %v5540 = vadd.f32 %v5379, %v5539
        %v5541 = vpop.f32.mrf.mxu0
        %5542 = vmatprep.mubr.bf16.mxu0 0
        %5543 = vmatmul.mubr.bf16.gmra.mxu0 %v4222
        %v5544 = vpop.f32.mrf.mxu0
        %v5545 = vadd.f32 %v5384, %v5544
        %v5546 = vpop.f32.mrf.mxu0
        %v5547 = vpop.f32.mrf.mxu0
        %v5548 = vadd.f32 %v5387, %v5547
        %v5549 = vpop.f32.mrf.mxu0
        %5550 = vmatprep.mubr.bf16.mxu0 0
        %5551 = vmatmul.mubr.bf16.gmra.mxu0 %v4228
        %v5552 = vpop.f32.mrf.mxu0
        %v5553 = vadd.f32 %v5392, %v5552
        %v5554 = vpop.f32.mrf.mxu0
        %v5555 = vpop.f32.mrf.mxu0
        %v5556 = vadd.f32 %v5395, %v5555
        %v5557 = vpop.f32.mrf.mxu0
        %5558 = vmatprep.mubr.bf16.mxu0 0
        %5559 = vmatmul.mubr.bf16.gmra.mxu0 %v4237
        %v5560 = vpop.f32.mrf.mxu0
        %v5561 = vadd.f32 %v5400, %v5560
        %v5562 = vpop.f32.mrf.mxu0
        %v5563 = vpop.f32.mrf.mxu0
        %v5564 = vadd.f32 %v5403, %v5563
        %v5565 = vpop.f32.mrf.mxu0
        %5566 = vmatprep.mubr.bf16.mxu0 0
        %5567 = vmatmul.mubr.bf16.gmra.mxu0 %v4243
        %v5568 = vpop.f32.mrf.mxu0
        %v5569 = vadd.f32 %v5408, %v5568
        %v5570 = vpop.f32.mrf.mxu0
        %v5571 = vpop.f32.mrf.mxu0
        %v5572 = vadd.f32 %v5411, %v5571
        %v5573 = vpop.f32.mrf.mxu0
        %5574 = vmatprep.mubr.bf16.mxu0 0
        %5575 = vmatmul.mubr.bf16.gmra.mxu0 %v4249
        %v5576 = vpop.f32.mrf.mxu0
        %v5577 = vadd.f32 %v5416, %v5576
        %v5578 = vpop.f32.mrf.mxu0
        %v5579 = vpop.f32.mrf.mxu0
        %v5580 = vadd.f32 %v5419, %v5579
        %v5581 = vpop.f32.mrf.mxu0
        %5582 = vmatprep.mubr.bf16.mxu0 0
        %5583 = vmatmul.mubr.bf16.gmra.mxu0 %v4255
        %v5584 = vpop.f32.mrf.mxu0
        %v5585 = vadd.f32 %v5424, %v5584
        %v5586 = vpop.f32.mrf.mxu0
        %v5587 = vpop.f32.mrf.mxu0
        %v5588 = vadd.f32 %v5427, %v5587
        %v5589 = vpop.f32.mrf.mxu0
        %5590 = vmatprep.mubr.bf16.mxu0 0
        %5591 = vmatmul.mubr.bf16.gmra.mxu0 %v4264
        %v5592 = vpop.f32.mrf.mxu0
        %v5593 = vadd.f32 %v5432, %v5592
        %v5594 = vpop.f32.mrf.mxu0
        %v5595 = vpop.f32.mrf.mxu0
        %v5596 = vadd.f32 %v5435, %v5595
        %v5597 = vpop.f32.mrf.mxu0
        %5598 = vmatprep.mubr.bf16.mxu0 0
        %5599 = vmatmul.mubr.bf16.gmra.mxu0 %v4270
        %v5600 = vpop.f32.mrf.mxu0
        %v5601 = vadd.f32 %v5440, %v5600
        %v5602 = vpop.f32.mrf.mxu0
        %v5603 = vpop.f32.mrf.mxu0
        %v5604 = vadd.f32 %v5443, %v5603
        %v5605 = vpop.f32.mrf.mxu0
        %5606 = vmatprep.mubr.bf16.mxu0 0
        %5607 = vmatmul.mubr.bf16.gmra.mxu0 %v4276
        %v5608 = vpop.f32.mrf.mxu0
        %v5609 = vadd.f32 %v5448, %v5608
        %v5610 = vpop.f32.mrf.mxu0
        %v5611 = vpop.f32.mrf.mxu0
        %v5612 = vadd.f32 %v5451, %v5611
        %v5613 = vpop.f32.mrf.mxu0
        %5614 = vmatprep.mubr.bf16.mxu0 0
        %5615 = vmatmul.mubr.bf16.gmra.mxu0 %v4282
        %v5616 = vpop.f32.mrf.mxu0
        %v5617 = vadd.f32 %v5456, %v5616
        %v5618 = vpop.f32.mrf.mxu0
        %v5619 = vpop.f32.mrf.mxu0
        %v5620 = vadd.f32 %v5459, %v5619
        %v5621 = vpop.f32.mrf.mxu0
        %5622 = vmatprep.mubr.bf16.mxu0 0
        %5623 = vmatmul.mubr.bf16.gmra.mxu0 %v4291
        %v5624 = vpop.f32.mrf.mxu0
        %v5625 = vadd.f32 %v5464, %v5624
        %v5626 = vpop.f32.mrf.mxu0
        %v5627 = vpop.f32.mrf.mxu0
        %v5628 = vadd.f32 %v5467, %v5627
        %v5629 = vpop.f32.mrf.mxu0
        %5630 = vmatprep.mubr.bf16.mxu0 0
        %5631 = vmatmul.mubr.bf16.gmra.mxu0 %v4297
        %v5632 = vpop.f32.mrf.mxu0
        %v5633 = vadd.f32 %v5472, %v5632
        %v5634 = vpop.f32.mrf.mxu0
        %v5635 = vpop.f32.mrf.mxu0
        %v5636 = vadd.f32 %v5475, %v5635
        %v5637 = vpop.f32.mrf.mxu0
        %5638 = vmatprep.mubr.bf16.mxu0 0
        %5639 = vmatmul.mubr.bf16.gmra.mxu0 %v4303
        %v5640 = vpop.f32.mrf.mxu0
        %v5641 = vadd.f32 %v5480, %v5640
        %v5642 = vpop.f32.mrf.mxu0
        %v5643 = vpop.f32.mrf.mxu0
        %v5644 = vadd.f32 %v5483, %v5643
        %v5645 = vpop.f32.mrf.mxu0
        %5646 = vmatprep.mubr.bf16.mxu0 0
        %5647 = vmatmul.mubr.bf16.gmra.mxu0 %v4309
        %v5648 = vpop.f32.mrf.mxu0
        %v5649 = vadd.f32 %v5488, %v5648
        %v5650 = vpop.f32.mrf.mxu0
        %v5651 = vpop.f32.mrf.mxu0
        %v5652 = vadd.f32 %v5491, %v5651
        %v5653 = vpop.f32.mrf.mxu0
        %5654 = vdwg.mxu0
        %v5655 = vmax.f32 %v5529, 0.0
        %v5656 = vmax.f32 %v5532, 0.0
        %v5657 = vmax.f32 %v5537, 0.0
        %v5658 = vmax.f32 %v5540, 0.0
        %v5659 = vmax.f32 %v5545, 0.0
        %v5660 = vmax.f32 %v5548, 0.0
        %v5661 = vmax.f32 %v5553, 0.0
        %v5662 = vmax.f32 %v5556, 0.0
        %v5663 = vmax.f32 %v5561, 0.0
        %v5664 = vmax.f32 %v5564, 0.0
        %v5665 = vmax.f32 %v5569, 0.0
        %v5666 = vmax.f32 %v5572, 0.0
        %v5667 = vmax.f32 %v5577, 0.0
        %v5668 = vmax.f32 %v5580, 0.0
        %v5669 = vmax.f32 %v5585, 0.0
        %v5670 = vmax.f32 %v5588, 0.0
        %v5671 = vmax.f32 %v5593, 0.0
        %v5672 = vmax.f32 %v5596, 0.0
        %v5673 = vmax.f32 %v5601, 0.0
        %v5674 = vmax.f32 %v5604, 0.0
        %v5675 = vmax.f32 %v5609, 0.0
        %v5676 = vmax.f32 %v5612, 0.0
        %v5677 = vmax.f32 %v5617, 0.0
        %v5678 = vmax.f32 %v5620, 0.0
        %v5679 = vmax.f32 %v5625, 0.0
        %v5680 = vmax.f32 %v5628, 0.0
        %v5681 = vmax.f32 %v5633, 0.0
        %v5682 = vmax.f32 %v5636, 0.0
        %v5683 = vmax.f32 %v5641, 0.0
        %v5684 = vmax.f32 %v5644, 0.0
        %v5685 = vmax.f32 %v5649, 0.0
        %v5686 = vmax.f32 %v5652, 0.0
        %v5687 = vpack.c.bf16 %v5656, %v5655
        %v5688 = vpack.c.bf16 %v5658, %v5657
        %v5689 = vpack.c.bf16 %v5660, %v5659
        %v5690 = vpack.c.bf16 %v5662, %v5661
        %v5691 = vpack.c.bf16 %v5664, %v5663
        %v5692 = vpack.c.bf16 %v5666, %v5665
        %v5693 = vpack.c.bf16 %v5668, %v5667
        %v5694 = vpack.c.bf16 %v5670, %v5669
        %v5695 = vpack.c.bf16 %v5672, %v5671
        %v5696 = vpack.c.bf16 %v5674, %v5673
        %v5697 = vpack.c.bf16 %v5676, %v5675
        %v5698 = vpack.c.bf16 %v5678, %v5677
        %v5699 = vpack.c.bf16 %v5680, %v5679
        %v5700 = vpack.c.bf16 %v5682, %v5681
        %v5701 = vpack.c.bf16 %v5684, %v5683
        %v5702 = vpack.c.bf16 %v5686, %v5685
        %v5719 = vunpack.c.l.b16 %v5687
        %v5720 = vunpack.c.h.b16 %v5687
        %v5721 = vunpack.c.l.b16 %v5688
        %v5722 = vunpack.c.h.b16 %v5688
        %v5723 = vunpack.c.l.b16 %v5689
        %v5724 = vunpack.c.h.b16 %v5689
        %v5725 = vunpack.c.l.b16 %v5690
        %v5726 = vunpack.c.h.b16 %v5690
        %v5727 = vunpack.c.l.b16 %v5691
        %v5728 = vunpack.c.h.b16 %v5691
        %v5729 = vunpack.c.l.b16 %v5692
        %v5730 = vunpack.c.h.b16 %v5692
        %v5731 = vunpack.c.l.b16 %v5693
        %v5732 = vunpack.c.h.b16 %v5693
        %v5733 = vunpack.c.l.b16 %v5694
        %v5734 = vunpack.c.h.b16 %v5694
        %v5735 = vunpack.c.l.b16 %v5695
        %v5736 = vunpack.c.h.b16 %v5695
        %v5737 = vunpack.c.l.b16 %v5696
        %v5738 = vunpack.c.h.b16 %v5696
        %v5739 = vunpack.c.l.b16 %v5697
        %v5740 = vunpack.c.h.b16 %v5697
        %v5741 = vunpack.c.l.b16 %v5698
        %v5742 = vunpack.c.h.b16 %v5698
        %v5743 = vunpack.c.l.b16 %v5699
        %v5744 = vunpack.c.h.b16 %v5699
        %v5745 = vunpack.c.l.b16 %v5700
        %v5746 = vunpack.c.h.b16 %v5700
        %v5747 = vunpack.c.l.b16 %v5701
        %v5748 = vunpack.c.h.b16 %v5701
        %v5749 = vunpack.c.l.b16 %v5702
        %v5750 = vunpack.c.h.b16 %v5702
        %v5751 = vld [vmem:[#allocation10] sm:$0xf]
        %v5752 = vld [vmem:[#allocation10 + $0x4] sm:$0xf]
        %v5753 = vld [vmem:[#allocation10 + $0x8] sm:$0xf]
        %v5754 = vld [vmem:[#allocation10 + $0xc] sm:$0xf]
        %v5755 = vld [vmem:[#allocation10 + $0x10] sm:$0xf]
        %v5756 = vld [vmem:[#allocation10 + $0x14] sm:$0xf]
        %v5757 = vld [vmem:[#allocation10 + $0x18] sm:$0xf]
        %v5758 = vld [vmem:[#allocation10 + $0x1c] sm:$0xf]
        %v5759 = vld [vmem:[#allocation10 + $0x20] sm:$0xf]
        %v5760 = vld [vmem:[#allocation10 + $0x24] sm:$0xf]
        %v5761 = vld [vmem:[#allocation10 + $0x28] sm:$0xf]
        %v5762 = vld [vmem:[#allocation10 + $0x2c] sm:$0xf]
        %v5763 = vld [vmem:[#allocation10 + $0x30] sm:$0xf]
        %v5764 = vld [vmem:[#allocation10 + $0x34] sm:$0xf]
        %v5765 = vld [vmem:[#allocation10 + $0x38] sm:$0xf]
        %v5766 = vld [vmem:[#allocation10 + $0x3c] sm:$0xf]
        %v5767 = vld [vmem:[#allocation10 + $0x40] sm:$0xf]
        %v5768 = vld [vmem:[#allocation10 + $0x44] sm:$0xf]
        %v5769 = vld [vmem:[#allocation10 + $0x48] sm:$0xf]
        %v5770 = vld [vmem:[#allocation10 + $0x4c] sm:$0xf]
        %v5771 = vld [vmem:[#allocation10 + $0x50] sm:$0xf]
        %v5772 = vld [vmem:[#allocation10 + $0x54] sm:$0xf]
        %v5773 = vld [vmem:[#allocation10 + $0x58] sm:$0xf]
        %v5774 = vld [vmem:[#allocation10 + $0x5c] sm:$0xf]
        %v5775 = vld [vmem:[#allocation10 + $0x60] sm:$0xf]
        %v5776 = vld [vmem:[#allocation10 + $0x64] sm:$0xf]
        %v5777 = vld [vmem:[#allocation10 + $0x68] sm:$0xf]
        %v5778 = vld [vmem:[#allocation10 + $0x6c] sm:$0xf]
        %v5779 = vld [vmem:[#allocation10 + $0x70] sm:$0xf]
        %v5780 = vld [vmem:[#allocation10 + $0x74] sm:$0xf]
        %v5781 = vld [vmem:[#allocation10 + $0x78] sm:$0xf]
        %v5782 = vld [vmem:[#allocation10 + $0x7c] sm:$0xf]
        %v5783 = vld [vmem:[#allocation10 + $0x80] sm:$0xf]
        %v5784 = vld [vmem:[#allocation10 + $0x84] sm:$0xf]
        %v5785 = vld [vmem:[#allocation10 + $0x88] sm:$0xf]
        %v5786 = vld [vmem:[#allocation10 + $0x8c] sm:$0xf]
        %v5787 = vld [vmem:[#allocation10 + $0x90] sm:$0xf]
        %v5788 = vld [vmem:[#allocation10 + $0x94] sm:$0xf]
        %v5789 = vld [vmem:[#allocation10 + $0x98] sm:$0xf]
        %v5790 = vld [vmem:[#allocation10 + $0x9c] sm:$0xf]
        %v5791 = vld [vmem:[#allocation10 + $0xa0] sm:$0xf]
        %v5792 = vld [vmem:[#allocation10 + $0xa4] sm:$0xf]
        %v5793 = vld [vmem:[#allocation10 + $0xa8] sm:$0xf]
        %v5794 = vld [vmem:[#allocation10 + $0xac] sm:$0xf]
        %v5795 = vld [vmem:[#allocation10 + $0xb0] sm:$0xf]
        %v5796 = vld [vmem:[#allocation10 + $0xb4] sm:$0xf]
        %v5797 = vld [vmem:[#allocation10 + $0xb8] sm:$0xf]
        %v5798 = vld [vmem:[#allocation10 + $0xbc] sm:$0xf]
        %v5799 = vld [vmem:[%s8] sm:$0x1]
        %v5801 = vlaneseq
        %v5802 = vshrl.u32 %v5801, 7
        %v5803 = vsub.s32 0, %v5802
        %v5804 = vrot.slane %v5799, %v5803
        %v5806 = vpack.c.b16 %v5720, %v5719
        %v5807 = vpack.c.b16 %v5728, %v5727
        %v5808 = vpack.c.b16 %v5722, %v5721
        %v5809 = vpack.c.b16 %v5730, %v5729
        %v5810 = vpack.c.b16 %v5724, %v5723
        %v5811 = vpack.c.b16 %v5732, %v5731
        %v5812 = vpack.c.b16 %v5726, %v5725
        %v5813 = vpack.c.b16 %v5734, %v5733
        %v5814 = vpack.c.b16 %v5736, %v5735
        %v5815 = vpack.c.b16 %v5738, %v5737
        %v5816 = vpack.c.b16 %v5740, %v5739
        %v5817 = vpack.c.b16 %v5742, %v5741
        %v5818 = vpack.c.b16 %v5744, %v5743
        %v5819 = vpack.c.b16 %v5746, %v5745
        %v5820 = vpack.c.b16 %v5748, %v5747
        %v5821 = vpack.c.b16 %v5750, %v5749
        %v5886 = vunpack.c.l.b16 %v5751
        %v5887 = vunpack.c.l.b16 %v5752
        %v5888 = vunpack.c.l.b16 %v5753
        %v5889 = vunpack.c.l.b16 %v5754
        %v5890 = vunpack.c.l.b16 %v5755
        %v5891 = vunpack.c.l.b16 %v5756
        %v5892 = vunpack.c.l.b16 %v5757
        %v5893 = vunpack.c.l.b16 %v5758
        %v5894 = vunpack.c.l.b16 %v5759
        %v5895 = vunpack.c.l.b16 %v5760
        %v5896 = vunpack.c.l.b16 %v5761
        %v5897 = vunpack.c.l.b16 %v5762
        %v5898 = vunpack.c.l.b16 %v5763
        %v5899 = vunpack.c.l.b16 %v5764
        %v5900 = vunpack.c.l.b16 %v5765
        %v5901 = vunpack.c.l.b16 %v5766
        %v5902 = vunpack.c.l.b16 %v5767
        %v5903 = vunpack.c.l.b16 %v5768
        %v5904 = vunpack.c.l.b16 %v5769
        %v5905 = vunpack.c.l.b16 %v5770
        %v5906 = vunpack.c.l.b16 %v5771
        %v5907 = vunpack.c.l.b16 %v5772
        %v5908 = vunpack.c.l.b16 %v5773
        %v5909 = vunpack.c.l.b16 %v5774
        %v5910 = vunpack.c.l.b16 %v5775
        %v5911 = vunpack.c.l.b16 %v5776
        %v5912 = vunpack.c.l.b16 %v5777
        %v5913 = vunpack.c.l.b16 %v5778
        %v5914 = vunpack.c.l.b16 %v5779
        %v5915 = vunpack.c.l.b16 %v5780
        %v5916 = vunpack.c.l.b16 %v5781
        %v5917 = vunpack.c.l.b16 %v5782
        %v5918 = vunpack.c.l.b16 %v5783
        %v5919 = vunpack.c.l.b16 %v5784
        %v5920 = vunpack.c.l.b16 %v5785
        %v5921 = vunpack.c.l.b16 %v5786
        %v5922 = vunpack.c.l.b16 %v5787
        %v5923 = vunpack.c.l.b16 %v5788
        %v5924 = vunpack.c.l.b16 %v5789
        %v5925 = vunpack.c.l.b16 %v5790
        %v5926 = vunpack.c.l.b16 %v5791
        %v5927 = vunpack.c.l.b16 %v5792
        %v5928 = vunpack.c.l.b16 %v5793
        %v5929 = vunpack.c.l.b16 %v5794
        %v5930 = vunpack.c.l.b16 %v5795
        %v5931 = vunpack.c.l.b16 %v5796
        %v5932 = vunpack.c.l.b16 %v5797
        %v5933 = vunpack.c.l.b16 %v5798
        %v5934 = vpack.c.b16 %v5887, %v5886
        %v5935 = vpack.c.b16 %v5889, %v5888
        %v5936 = vpack.c.b16 %v5891, %v5890
        %v5937 = vpack.c.b16 %v5893, %v5892
        %v5938 = vpack.c.b16 %v5895, %v5894
        %v5939 = vpack.c.b16 %v5897, %v5896
        %v5940 = vpack.c.b16 %v5899, %v5898
        %v5941 = vpack.c.b16 %v5901, %v5900
        %v5942 = vpack.c.b16 %v5903, %v5902
        %v5943 = vpack.c.b16 %v5905, %v5904
        %v5944 = vpack.c.b16 %v5907, %v5906
        %v5945 = vpack.c.b16 %v5909, %v5908
        %v5946 = vpack.c.b16 %v5911, %v5910
        %v5947 = vpack.c.b16 %v5913, %v5912
        %v5948 = vpack.c.b16 %v5915, %v5914
        %v5949 = vpack.c.b16 %v5917, %v5916
        %v5950 = vpack.c.b16 %v5919, %v5918
        %v5951 = vpack.c.b16 %v5921, %v5920
        %v5952 = vpack.c.b16 %v5923, %v5922
        %v5953 = vpack.c.b16 %v5925, %v5924
        %v5954 = vpack.c.b16 %v5927, %v5926
        %v5955 = vpack.c.b16 %v5929, %v5928
        %v5956 = vpack.c.b16 %v5931, %v5930
        %v5957 = vpack.c.b16 %v5933, %v5932
        %5982 = vmatprep.subr.bf16.mxu0 0
        %5983 = vmatpush1.bf16.msra.mxu0 %v5941
        %5984 = vmatprep.subr.bf16.mxu0 0
        %5985 = vmatpush1.bf16.msra.mxu0 %v5940
        %5986 = vmatprep.subr.bf16.mxu0 0
        %5987 = vmatpush1.bf16.msra.mxu0 %v5939
        %5988 = vmatprep.subr.bf16.mxu0 0
        %5989 = vmatpush1.bf16.msra.mxu0 %v5938
        %5990 = vmatprep.subr.bf16.mxu0 0
        %5991 = vmatpush1.bf16.msra.mxu0 %v5937
        %5992 = vmatprep.subr.bf16.mxu0 0
        %5993 = vmatpush1.bf16.msra.mxu0 %v5936
        %5994 = vmatprep.subr.bf16.mxu0 0
        %5995 = vmatpush1.bf16.msra.mxu0 %v5935
        %5996 = vmatprep.subr.bf16.mxu0 0
        %5997 = vmatpush1.bf16.msra.mxu0 %v5934
        %5998 = vmatprep.subr.bf16.mxu0 0
        %5999 = vmatpush2.bf16.msra.mxu0 %v5949
        %6000 = vmatprep.subr.bf16.mxu0 0
        %6001 = vmatpush2.bf16.msra.mxu0 %v5948
        %6002 = vmatprep.subr.bf16.mxu0 0
        %6003 = vmatpush2.bf16.msra.mxu0 %v5947
        %6004 = vmatprep.subr.bf16.mxu0 0
        %6005 = vmatpush2.bf16.msra.mxu0 %v5946
        %6006 = vmatprep.subr.bf16.mxu0 0
        %6007 = vmatpush2.bf16.msra.mxu0 %v5945
        %6008 = vmatprep.subr.bf16.mxu0 0
        %6009 = vmatpush2.bf16.msra.mxu0 %v5944
        %6010 = vmatprep.subr.bf16.mxu0 0
        %6011 = vmatpush2.bf16.msra.mxu0 %v5943
        %6012 = vmatprep.subr.bf16.mxu0 0
        %6013 = vmatpush2.bf16.msra.mxu0 %v5942
        %6014 = vmatprep.mubr.bf16.mxu0 %v5806
        %6015 = vmatmul.mubr.bf16.gmra.mxu0 %v2862
        %v6016 = vpop.f32.mrf.mxu0
        %v6017 = vadd.f32 %v5804, %v6016
        %v6018 = vpop.f32.mrf.mxu0
        %v6019 = vpop.f32.mrf.mxu0
        %v6020 = vadd.f32 %v5804, %v6019
        %v6021 = vpop.f32.mrf.mxu0
        %6022 = vmatprep.mubr.bf16.mxu0 %v5808
        %6023 = vmatmul.mubr.bf16.gmra.mxu0 %v2862
        %v6024 = vpop.f32.mrf.mxu0
        %v6025 = vadd.f32 %v5804, %v6024
        %v6026 = vpop.f32.mrf.mxu0
        %v6027 = vpop.f32.mrf.mxu0
        %v6028 = vadd.f32 %v5804, %v6027
        %v6029 = vpop.f32.mrf.mxu0
        %6030 = vmatprep.mubr.bf16.mxu0 %v5810
        %6031 = vmatmul.mubr.bf16.gmra.mxu0 %v2862
        %v6032 = vpop.f32.mrf.mxu0
        %v6033 = vadd.f32 %v5804, %v6032
        %v6034 = vpop.f32.mrf.mxu0
        %v6035 = vpop.f32.mrf.mxu0
        %v6036 = vadd.f32 %v5804, %v6035
        %v6037 = vpop.f32.mrf.mxu0
        %6038 = vmatprep.mubr.bf16.mxu0 %v5812
        %6039 = vmatmul.mubr.bf16.gmra.mxu0 %v2862
        %v6040 = vpop.f32.mrf.mxu0
        %v6041 = vadd.f32 %v5804, %v6040
        %v6042 = vpop.f32.mrf.mxu0
        %v6043 = vpop.f32.mrf.mxu0
        %v6044 = vadd.f32 %v5804, %v6043
        %v6045 = vpop.f32.mrf.mxu0
        %6046 = vmatprep.mubr.bf16.mxu0 %v5807
        %6047 = vmatmul.mubr.bf16.gmra.mxu0 %v5806
        %v6048 = vpop.f32.mrf.mxu0
        %v6049 = vadd.f32 %v5804, %v6048
        %v6050 = vpop.f32.mrf.mxu0
        %v6051 = vpop.f32.mrf.mxu0
        %v6052 = vadd.f32 %v5804, %v6051
        %v6053 = vpop.f32.mrf.mxu0
        %6054 = vmatprep.mubr.bf16.mxu0 %v5809
        %6055 = vmatmul.mubr.bf16.gmra.mxu0 %v5808
        %v6056 = vpop.f32.mrf.mxu0
        %v6057 = vadd.f32 %v5804, %v6056
        %v6058 = vpop.f32.mrf.mxu0
        %v6059 = vpop.f32.mrf.mxu0
        %v6060 = vadd.f32 %v5804, %v6059
        %v6061 = vpop.f32.mrf.mxu0
        %6062 = vmatprep.mubr.bf16.mxu0 %v5811
        %6063 = vmatmul.mubr.bf16.gmra.mxu0 %v5810
        %v6064 = vpop.f32.mrf.mxu0
        %v6065 = vadd.f32 %v5804, %v6064
        %v6066 = vpop.f32.mrf.mxu0
        %v6067 = vpop.f32.mrf.mxu0
        %v6068 = vadd.f32 %v5804, %v6067
        %v6069 = vpop.f32.mrf.mxu0
        %6070 = vmatprep.mubr.bf16.mxu0 %v5813
        %6071 = vmatmul.mubr.bf16.gmra.mxu0 %v5812
        %v6072 = vpop.f32.mrf.mxu0
        %v6073 = vadd.f32 %v5804, %v6072
        %v6074 = vpop.f32.mrf.mxu0
        %v6075 = vpop.f32.mrf.mxu0
        %v6076 = vadd.f32 %v5804, %v6075
        %v6077 = vpop.f32.mrf.mxu0
        %6078 = vmatprep.mubr.bf16.mxu0 %v5814
        %6079 = vmatmul.mubr.bf16.gmra.mxu0 %v5807
        %v6080 = vpop.f32.mrf.mxu0
        %v6081 = vadd.f32 %v5804, %v6080
        %v6082 = vpop.f32.mrf.mxu0
        %v6083 = vpop.f32.mrf.mxu0
        %v6084 = vadd.f32 %v5804, %v6083
        %v6085 = vpop.f32.mrf.mxu0
        %6086 = vmatprep.mubr.bf16.mxu0 %v5815
        %6087 = vmatmul.mubr.bf16.gmra.mxu0 %v5809
        %v6088 = vpop.f32.mrf.mxu0
        %v6089 = vadd.f32 %v5804, %v6088
        %v6090 = vpop.f32.mrf.mxu0
        %v6091 = vpop.f32.mrf.mxu0
        %v6092 = vadd.f32 %v5804, %v6091
        %v6093 = vpop.f32.mrf.mxu0
        %6094 = vmatprep.mubr.bf16.mxu0 %v5816
        %6095 = vmatmul.mubr.bf16.gmra.mxu0 %v5811
        %v6096 = vpop.f32.mrf.mxu0
        %v6097 = vadd.f32 %v5804, %v6096
        %v6098 = vpop.f32.mrf.mxu0
        %v6099 = vpop.f32.mrf.mxu0
        %v6100 = vadd.f32 %v5804, %v6099
        %v6101 = vpop.f32.mrf.mxu0
        %6102 = vmatprep.mubr.bf16.mxu0 %v5817
        %6103 = vmatmul.mubr.bf16.gmra.mxu0 %v5813
        %v6104 = vpop.f32.mrf.mxu0
        %v6105 = vadd.f32 %v5804, %v6104
        %v6106 = vpop.f32.mrf.mxu0
        %v6107 = vpop.f32.mrf.mxu0
        %v6108 = vadd.f32 %v5804, %v6107
        %v6109 = vpop.f32.mrf.mxu0
        %6110 = vmatprep.mubr.bf16.mxu0 %v5818
        %6111 = vmatmul.mubr.bf16.gmra.mxu0 %v5814
        %v6112 = vpop.f32.mrf.mxu0
        %v6113 = vadd.f32 %v5804, %v6112
        %v6114 = vpop.f32.mrf.mxu0
        %v6115 = vpop.f32.mrf.mxu0
        %v6116 = vadd.f32 %v5804, %v6115
        %v6117 = vpop.f32.mrf.mxu0
        %6118 = vmatprep.mubr.bf16.mxu0 %v5819
        %6119 = vmatmul.mubr.bf16.gmra.mxu0 %v5815
        %v6120 = vpop.f32.mrf.mxu0
        %v6121 = vadd.f32 %v5804, %v6120
        %v6122 = vpop.f32.mrf.mxu0
        %v6123 = vpop.f32.mrf.mxu0
        %v6124 = vadd.f32 %v5804, %v6123
        %v6125 = vpop.f32.mrf.mxu0
        %6126 = vmatprep.mubr.bf16.mxu0 %v5820
        %6127 = vmatmul.mubr.bf16.gmra.mxu0 %v5816
        %v6128 = vpop.f32.mrf.mxu0
        %v6129 = vadd.f32 %v5804, %v6128
        %v6130 = vpop.f32.mrf.mxu0
        %v6131 = vpop.f32.mrf.mxu0
        %v6132 = vadd.f32 %v5804, %v6131
        %v6133 = vpop.f32.mrf.mxu0
        %6134 = vmatprep.mubr.bf16.mxu0 %v5821
        %6135 = vmatmul.mubr.bf16.gmra.mxu0 %v5817
        %v6136 = vpop.f32.mrf.mxu0
        %v6137 = vadd.f32 %v5804, %v6136
        %v6138 = vpop.f32.mrf.mxu0
        %v6139 = vpop.f32.mrf.mxu0
        %v6140 = vadd.f32 %v5804, %v6139
        %v6141 = vpop.f32.mrf.mxu0
        %6142 = vdwg.mxu0
        %6143 = vmatprep.subr.bf16.mxu0 0
        %6144 = vmatpush1.bf16.msra.mxu0 %v5957
        %6145 = vmatprep.subr.bf16.mxu0 0
        %6146 = vmatpush1.bf16.msra.mxu0 %v5956
        %6147 = vmatprep.subr.bf16.mxu0 0
        %6148 = vmatpush1.bf16.msra.mxu0 %v5955
        %6149 = vmatprep.subr.bf16.mxu0 0
        %6150 = vmatpush1.bf16.msra.mxu0 %v5954
        %6151 = vmatprep.subr.bf16.mxu0 0
        %6152 = vmatpush1.bf16.msra.mxu0 %v5953
        %6153 = vmatprep.subr.bf16.mxu0 0
        %6154 = vmatpush1.bf16.msra.mxu0 %v5952
        %6155 = vmatprep.subr.bf16.mxu0 0
        %6156 = vmatpush1.bf16.msra.mxu0 %v5951
        %6157 = vmatprep.subr.bf16.mxu0 0
        %6158 = vmatpush1.bf16.msra.mxu0 %v5950
        %6159 = vmatprep.subr.bf16.mxu0 0
        %6160 = vmatpush2.bf16.msra.mxu0 0
        %6161 = vmatprep.subr.bf16.mxu0 0
        %6162 = vmatpush2.bf16.msra.mxu0 0
        %6163 = vmatprep.subr.bf16.mxu0 0
        %6164 = vmatpush2.bf16.msra.mxu0 0
        %6165 = vmatprep.subr.bf16.mxu0 0
        %6166 = vmatpush2.bf16.msra.mxu0 0
        %6167 = vmatprep.subr.bf16.mxu0 0
        %6168 = vmatpush2.bf16.msra.mxu0 0
        %6169 = vmatprep.subr.bf16.mxu0 0
        %6170 = vmatpush2.bf16.msra.mxu0 0
        %6171 = vmatprep.subr.bf16.mxu0 0
        %6172 = vmatpush2.bf16.msra.mxu0 0
        %6173 = vmatprep.subr.bf16.mxu0 0
        %6174 = vmatpush2.bf16.msra.mxu0 0
        %6175 = vmatprep.mubr.bf16.mxu0 0
        %6176 = vmatmul.mubr.bf16.gmra.mxu0 %v5807
        %v6177 = vpop.f32.mrf.mxu0
        %v6178 = vadd.f32 %v6017, %v6177
        %v6179 = vpop.f32.mrf.mxu0
        %v6180 = vpop.f32.mrf.mxu0
        %v6181 = vadd.f32 %v6020, %v6180
        %v6182 = vpop.f32.mrf.mxu0
        %6183 = vmatprep.mubr.bf16.mxu0 0
        %6184 = vmatmul.mubr.bf16.gmra.mxu0 %v5809
        %v6185 = vpop.f32.mrf.mxu0
        %v6186 = vadd.f32 %v6025, %v6185
        %v6187 = vpop.f32.mrf.mxu0
        %v6188 = vpop.f32.mrf.mxu0
        %v6189 = vadd.f32 %v6028, %v6188
        %v6190 = vpop.f32.mrf.mxu0
        %6191 = vmatprep.mubr.bf16.mxu0 0
        %6192 = vmatmul.mubr.bf16.gmra.mxu0 %v5811
        %v6193 = vpop.f32.mrf.mxu0
        %v6194 = vadd.f32 %v6033, %v6193
        %v6195 = vpop.f32.mrf.mxu0
        %v6196 = vpop.f32.mrf.mxu0
        %v6197 = vadd.f32 %v6036, %v6196
        %v6198 = vpop.f32.mrf.mxu0
        %6199 = vmatprep.mubr.bf16.mxu0 0
        %6200 = vmatmul.mubr.bf16.gmra.mxu0 %v5813
        %v6201 = vpop.f32.mrf.mxu0
        %v6202 = vadd.f32 %v6041, %v6201
        %v6203 = vpop.f32.mrf.mxu0
        %v6204 = vpop.f32.mrf.mxu0
        %v6205 = vadd.f32 %v6044, %v6204
        %v6206 = vpop.f32.mrf.mxu0
        %6207 = vmatprep.mubr.bf16.mxu0 0
        %6208 = vmatmul.mubr.bf16.gmra.mxu0 %v5814
        %v6209 = vpop.f32.mrf.mxu0
        %v6210 = vadd.f32 %v6049, %v6209
        %v6211 = vpop.f32.mrf.mxu0
        %v6212 = vpop.f32.mrf.mxu0
        %v6213 = vadd.f32 %v6052, %v6212
        %v6214 = vpop.f32.mrf.mxu0
        %6215 = vmatprep.mubr.bf16.mxu0 0
        %6216 = vmatmul.mubr.bf16.gmra.mxu0 %v5815
        %v6217 = vpop.f32.mrf.mxu0
        %v6218 = vadd.f32 %v6057, %v6217
        %v6219 = vpop.f32.mrf.mxu0
        %v6220 = vpop.f32.mrf.mxu0
        %v6221 = vadd.f32 %v6060, %v6220
        %v6222 = vpop.f32.mrf.mxu0
        %6223 = vmatprep.mubr.bf16.mxu0 0
        %6224 = vmatmul.mubr.bf16.gmra.mxu0 %v5816
        %v6225 = vpop.f32.mrf.mxu0
        %v6226 = vadd.f32 %v6065, %v6225
        %v6227 = vpop.f32.mrf.mxu0
        %v6228 = vpop.f32.mrf.mxu0
        %v6229 = vadd.f32 %v6068, %v6228
        %v6230 = vpop.f32.mrf.mxu0
        %6231 = vmatprep.mubr.bf16.mxu0 0
        %6232 = vmatmul.mubr.bf16.gmra.mxu0 %v5817
        %v6233 = vpop.f32.mrf.mxu0
        %v6234 = vadd.f32 %v6073, %v6233
        %v6235 = vpop.f32.mrf.mxu0
        %v6236 = vpop.f32.mrf.mxu0
        %v6237 = vadd.f32 %v6076, %v6236
        %v6238 = vpop.f32.mrf.mxu0
        %6239 = vmatprep.mubr.bf16.mxu0 0
        %6240 = vmatmul.mubr.bf16.gmra.mxu0 %v5818
        %v6241 = vpop.f32.mrf.mxu0
        %v6242 = vadd.f32 %v6081, %v6241
        %v6243 = vpop.f32.mrf.mxu0
        %v6244 = vpop.f32.mrf.mxu0
        %v6245 = vadd.f32 %v6084, %v6244
        %v6246 = vpop.f32.mrf.mxu0
        %6247 = vmatprep.mubr.bf16.mxu0 0
        %6248 = vmatmul.mubr.bf16.gmra.mxu0 %v5819
        %v6249 = vpop.f32.mrf.mxu0
        %v6250 = vadd.f32 %v6089, %v6249
        %v6251 = vpop.f32.mrf.mxu0
        %v6252 = vpop.f32.mrf.mxu0
        %v6253 = vadd.f32 %v6092, %v6252
        %v6254 = vpop.f32.mrf.mxu0
        %6255 = vmatprep.mubr.bf16.mxu0 0
        %6256 = vmatmul.mubr.bf16.gmra.mxu0 %v5820
        %v6257 = vpop.f32.mrf.mxu0
        %v6258 = vadd.f32 %v6097, %v6257
        %v6259 = vpop.f32.mrf.mxu0
        %v6260 = vpop.f32.mrf.mxu0
        %v6261 = vadd.f32 %v6100, %v6260
        %v6262 = vpop.f32.mrf.mxu0
        %6263 = vmatprep.mubr.bf16.mxu0 0
        %6264 = vmatmul.mubr.bf16.gmra.mxu0 %v5821
        %v6265 = vpop.f32.mrf.mxu0
        %v6266 = vadd.f32 %v6105, %v6265
        %v6267 = vpop.f32.mrf.mxu0
        %v6268 = vpop.f32.mrf.mxu0
        %v6269 = vadd.f32 %v6108, %v6268
        %v6270 = vpop.f32.mrf.mxu0
        %6271 = vmatprep.mubr.bf16.mxu0 0
        %6272 = vmatmul.mubr.bf16.gmra.mxu0 %v2862
        %v6273 = vpop.f32.mrf.mxu0
        %v6274 = vadd.f32 %v6113, %v6273
        %v6275 = vpop.f32.mrf.mxu0
        %v6276 = vpop.f32.mrf.mxu0
        %v6277 = vadd.f32 %v6116, %v6276
        %v6278 = vpop.f32.mrf.mxu0
        %6279 = vmatprep.mubr.bf16.mxu0 0
        %6280 = vmatmul.mubr.bf16.gmra.mxu0 %v2862
        %v6281 = vpop.f32.mrf.mxu0
        %v6282 = vadd.f32 %v6121, %v6281
        %v6283 = vpop.f32.mrf.mxu0
        %v6284 = vpop.f32.mrf.mxu0
        %v6285 = vadd.f32 %v6124, %v6284
        %v6286 = vpop.f32.mrf.mxu0
        %6287 = vmatprep.mubr.bf16.mxu0 0
        %6288 = vmatmul.mubr.bf16.gmra.mxu0 %v2862
        %v6289 = vpop.f32.mrf.mxu0
        %v6290 = vadd.f32 %v6129, %v6289
        %v6291 = vpop.f32.mrf.mxu0
        %v6292 = vpop.f32.mrf.mxu0
        %v6293 = vadd.f32 %v6132, %v6292
        %v6294 = vpop.f32.mrf.mxu0
        %6295 = vmatprep.mubr.bf16.mxu0 0
        %6296 = vmatmul.mubr.bf16.gmra.mxu0 %v2862
        %v6297 = vpop.f32.mrf.mxu0
        %v6298 = vadd.f32 %v6137, %v6297
        %v6299 = vpop.f32.mrf.mxu0
        %v6300 = vpop.f32.mrf.mxu0
        %v6301 = vadd.f32 %v6140, %v6300
        %v6302 = vpop.f32.mrf.mxu0
        %6303 = vdwg.mxu0
        %v6304 = vadd.f32 %v6178, %v410
        %v6305 = vadd.f32 %v6181, %v411
        %v6306 = vadd.f32 %v6186, %v412
        %v6307 = vadd.f32 %v6189, %v413
        %v6308 = vadd.f32 %v6194, %v414
        %v6309 = vadd.f32 %v6197, %v415
        %v6310 = vadd.f32 %v6202, %v416
        %v6311 = vadd.f32 %v6205, %v417
        %v6312 = vadd.f32 %v6210, %v418
        %v6313 = vadd.f32 %v6213, %v419
        %v6314 = vadd.f32 %v6218, %v420
        %v6315 = vadd.f32 %v6221, %v421
        %v6316 = vadd.f32 %v6226, %v422
        %v6317 = vadd.f32 %v6229, %v423
        %v6318 = vadd.f32 %v6234, %v424
        %v6319 = vadd.f32 %v6237, %v425
        %v6320 = vadd.f32 %v6242, %v426
        %v6321 = vadd.f32 %v6245, %v427
        %v6322 = vadd.f32 %v6250, %v428
        %v6323 = vadd.f32 %v6253, %v429
        %v6324 = vadd.f32 %v6258, %v430
        %v6325 = vadd.f32 %v6261, %v431
        %v6326 = vadd.f32 %v6266, %v432
        %v6327 = vadd.f32 %v6269, %v433
        %v6328 = vadd.f32 %v6274, %v434
        %v6329 = vadd.f32 %v6277, %v435
        %v6330 = vadd.f32 %v6282, %v436
        %v6331 = vadd.f32 %v6285, %v437
        %v6332 = vadd.f32 %v6290, %v438
        %v6333 = vadd.f32 %v6293, %v439
        %v6334 = vadd.f32 %v6298, %v440
        %v6335 = vadd.f32 %v6301, %v441
        %v6336 = vmax.f32 %v6304, 0.0
        %v6337 = vmax.f32 %v6305, 0.0
        %v6338 = vmax.f32 %v6306, 0.0
        %v6339 = vmax.f32 %v6307, 0.0
        %v6340 = vmax.f32 %v6308, 0.0
        %v6341 = vmax.f32 %v6309, 0.0
        %v6342 = vmax.f32 %v6310, 0.0
        %v6343 = vmax.f32 %v6311, 0.0
        %v6344 = vmax.f32 %v6312, 0.0
        %v6345 = vmax.f32 %v6313, 0.0
        %v6346 = vmax.f32 %v6314, 0.0
        %v6347 = vmax.f32 %v6315, 0.0
        %v6348 = vmax.f32 %v6316, 0.0
        %v6349 = vmax.f32 %v6317, 0.0
        %v6350 = vmax.f32 %v6318, 0.0
        %v6351 = vmax.f32 %v6319, 0.0
        %v6352 = vmax.f32 %v6320, 0.0
        %v6353 = vmax.f32 %v6321, 0.0
        %v6354 = vmax.f32 %v6322, 0.0
        %v6355 = vmax.f32 %v6323, 0.0
        %v6356 = vmax.f32 %v6324, 0.0
        %v6357 = vmax.f32 %v6325, 0.0
        %v6358 = vmax.f32 %v6326, 0.0
        %v6359 = vmax.f32 %v6327, 0.0
        %v6360 = vmax.f32 %v6328, 0.0
        %v6361 = vmax.f32 %v6329, 0.0
        %v6362 = vmax.f32 %v6330, 0.0
        %v6363 = vmax.f32 %v6331, 0.0
        %v6364 = vmax.f32 %v6332, 0.0
        %v6365 = vmax.f32 %v6333, 0.0
        %v6366 = vmax.f32 %v6334, 0.0
        %v6367 = vmax.f32 %v6335, 0.0
        %6368 = vst [vmem:[%s408] sm:$0xff] %v6336
        %6369 = vst [vmem:[%s408 + $0x8] sm:$0xff] %v6337
        %6370 = vst [vmem:[%s408 + $0x10] sm:$0xff] %v6338
        %6371 = vst [vmem:[%s408 + $0x18] sm:$0xff] %v6339
        %6372 = vst [vmem:[%s408 + $0x20] sm:$0xff] %v6340
        %6373 = vst [vmem:[%s408 + $0x28] sm:$0xff] %v6341
        %6374 = vst [vmem:[%s408 + $0x30] sm:$0xff] %v6342
        %6375 = vst [vmem:[%s408 + $0x38] sm:$0xff] %v6343
        %6376 = vst [vmem:[%s408 + $0x40] sm:$0xff] %v6344
        %6377 = vst [vmem:[%s408 + $0x48] sm:$0xff] %v6345
        %6378 = vst [vmem:[%s408 + $0x50] sm:$0xff] %v6346
        %6379 = vst [vmem:[%s408 + $0x58] sm:$0xff] %v6347
        %6380 = vst [vmem:[%s408 + $0x60] sm:$0xff] %v6348
        %6381 = vst [vmem:[%s408 + $0x68] sm:$0xff] %v6349
        %6382 = vst [vmem:[%s408 + $0x70] sm:$0xff] %v6350
        %6383 = vst [vmem:[%s408 + $0x78] sm:$0xff] %v6351
        %6384 = vst [vmem:[%s408 + $0x80] sm:$0xff] %v6352
        %6385 = vst [vmem:[%s408 + $0x88] sm:$0xff] %v6353
        %6386 = vst [vmem:[%s408 + $0x90] sm:$0xff] %v6354
        %6387 = vst [vmem:[%s408 + $0x98] sm:$0xff] %v6355
        %6388 = vst [vmem:[%s408 + $0xa0] sm:$0xff] %v6356
        %6389 = vst [vmem:[%s408 + $0xa8] sm:$0xff] %v6357
        %6390 = vst [vmem:[%s408 + $0xb0] sm:$0xff] %v6358
        %6391 = vst [vmem:[%s408 + $0xb8] sm:$0xff] %v6359
        %6392 = vst [vmem:[%s408 + $0xc0] sm:$0xff] %v6360
        %6393 = vst [vmem:[%s408 + $0xc8] sm:$0xff] %v6361
        %6394 = vst [vmem:[%s408 + $0xd0] sm:$0xff] %v6362
        %6395 = vst [vmem:[%s408 + $0xd8] sm:$0xff] %v6363
        %6396 = vst [vmem:[%s408 + $0xe0] sm:$0xff] %v6364
        %6397 = vst [vmem:[%s408 + $0xe8] sm:$0xff] %v6365
        %6398 = vst [vmem:[%s408 + $0xf0] sm:$0xff] %v6366
        %6399 = vst [vmem:[%s408 + $0xf8] sm:$0xff] %v6367
        %s6400 = sand.u32 %s230, 1
        %s6401 = scalar_lea.sflag [#allocation4], %s6400
        %s6402 = sand.u32 %s230, 1
        %s6403 = smul.addr %s6402, 256
        %s6404 = scalar_lea.vmem [#allocation11], %s6403
        // Predicated region
        $region77: #{tpu_custom_call.1} parent=55 // pred_check
          %p6405 = pneg %p240
        $region78: #{tpu_custom_call.1} parent=55 // pred_check_branch
          %6407 = sbr.rel (%p6405) target = $region80
        $region79: #{tpu_custom_call.1} parent=55 // pred_region
          %s6409 = ssub.s32 4096, 4096
          %6410 = vsyncadd %s6401, %s6409
          %s6411 = smul.addr %s28, 32
          %s6412 = smul.addr %s6411, 128
          %s6413 = scalar_lea.hbm %s9, %s6412
          %s6414 = sshll.u32 %s6404, 4
          %s6415 = int_to_ptr.vmem [resolvable:$true] %s6414
          %6420 = dma.vmem_to_hbm [thread:$0]  %s6415, 4096, %s6413, %s6401, 128, 128, 8
        $region80: #{tpu_custom_call.1} parent=55 // pred_fallthru
          _
      $region56: #{tpu_custom_call.1} parent=5 // pred_fallthru
        _
      %p6421 = scmp.le.s32.totalorder 2, %s23
      // Predicated region
      $region81: #{tpu_custom_call.1} parent=5 // pred_check
        %p6422 = pneg %p6421
      $region82: #{tpu_custom_call.1} parent=5 // pred_check_branch
        %6424 = sbr.rel (%p6422) target = $region84
      $region83: #{tpu_custom_call.1} parent=5 // pred_region
        %s6425 = ssub.s32 %s23, 2
        // Predicated region
        $region85: #{tpu_custom_call.1} parent=83 // pred_check
          %p6426 = pneg %p246
        $region86: #{tpu_custom_call.1} parent=83 // pred_check_branch
          %6428 = sbr.rel (%p6426) target = $region88
        $region87: #{tpu_custom_call.1} parent=83 // pred_region
          %s6429 = sand.u32 %s231, 1
          %s6430 = scalar_lea.sflag [#allocation4], %s6429
          %s6431 = sand.u32 %s231, 1
          %s6432 = smul.addr %s6431, 256
          %s6433 = scalar_lea.vmem [#allocation11], %s6432
          %6434 = dma.done %s6430, 4096
        $region88: #{tpu_custom_call.1} parent=83 // pred_fallthru
          _
      $region84: #{tpu_custom_call.1} parent=5 // pred_fallthru
        _
    $region6: #{tpu_custom_call.1} parent=1 // loop_footer
      %s27 = sadd.s32 1, %s23
    $region7: #{tpu_custom_call.1} parent=1 // loop_footer_branch
      %22 = sbr.rel target = $region3
    $region8: #{tpu_custom_call.1} parent=1 // loop_exit
      _
    %6435 = vsyncpa [#allocation3], 1
    %s6436 = scalar_lea.sflag [#allocation3], 1
    %6437 = vsyncpa %s6436, 1
    %6438 = vsyncpa [#allocation6], 1
    %6439 = vsyncpa [#allocation9], 1
    %6440 = vsyncpa [#allocation4], 1
    %s6441 = scalar_lea.sflag [#allocation4], 1
    %6442 = vsyncpa %s6441, 1

</llo_original>
